<compile_context>
chip_gen: v7x
topology: tpu7x:2x2x1
jax: 0.10.0
libtpu: 0.0.40
codegen_flags: <defaults>
</compile_context>

<pallas_src>
import functools

import jax
import jax.numpy as jnp
from jax.experimental import pallas as pl
from jax.experimental.pallas import tpu as pltpu

EPS = 1e-5          # F.layer_norm default eps
KSIZE = 17          # depthwise conv kernel size
PAD = KSIZE // 2    # = 8 (halo size; equals the 8-row sublane tile)
CHUNK = 32          # depthwise-conv register-blocking chunk (multiple of 8)


def _round_up(n, m):
    return ((n + m - 1) // m) * m


def _layer_norm(v, gamma, beta):
    """Two-pass LayerNorm over the last (lane) axis (numerically safe)."""
    mu = jnp.mean(v, axis=-1, keepdims=True)
    d = v - mu
    var = jnp.mean(d * d, axis=-1, keepdims=True)
    return d * jax.lax.rsqrt(var + EPS) * gamma + beta


def prepare_weights(params):
    """Fuse pointwise_conv into the GLU projection; split the GLU bias into
    (a, gate) halves; cast MXU weights to bf16."""
    dim = params["w1_t"].shape[0]
    w_fused = jnp.dot(params["w1_t"], params["wg_t"],
                      precision=jax.lax.Precision.HIGHEST).astype(jnp.bfloat16)
    b_a = params["bg"][:, :dim]
    b_g = params["bg"][:, dim:]
    w2 = params["w2_t"].astype(jnp.bfloat16)
    return w_fused, b_a, b_g, w2


def conformer_kernel(x_ref, xl_ref, xr_ref, g1_ref, b1_ref, wf_ref, ba_ref,
                     bg_ref, wdw_ref, g2_ref, b2_ref, w2_ref, o_ref,
                     hp_ref, cv_ref, *, n_real):
    tile_n = x_ref.shape[1]
    D = x_ref.shape[2]
    j = pl.program_id(1)

    # ---- in_norm -> fused (pointwise_conv + GLU projection): one bf16 matmul.
    #      xs is built straight from the three input refs (8-row-aligned
    #      concat); raw x is never staged through VMEM scratch.
    xs = jnp.concatenate([xl_ref[0], x_ref[0], xr_ref[0]],
                         axis=0).astype(jnp.float32)        # (tile_n + 16, D)
    h = _layer_norm(xs, g1_ref[0], b1_ref[0])
    gl = jnp.dot(h.astype(jnp.bfloat16), wf_ref[...],
                 preferred_element_type=jnp.float32)         # (tile_n + 16, 2D)
    a = gl[:, :D] + ba_ref[0]            # D % 128 == 0 -> lane-aligned split
    g = gl[:, D:] + bg_ref[0]
    h = a * (g * jax.nn.sigmoid(g))      # GLU with SiLU gate
    hp_ref[...] = h.astype(hp_ref.dtype)

    # ---- conv zero padding / ragged-tail masking: only boundary tiles pay.
    @pl.when(jnp.logical_or(j == 0, (j + 1) * tile_n + PAD > n_real))
    def _():
        row = jax.lax.broadcasted_iota(jnp.int32, (tile_n + 2 * PAD, 1), 0)
        gpos = j * tile_n - PAD + row                        # global sequence idx
        keep = jnp.logical_and(gpos >= 0, gpos < n_real)
        hp_ref[...] = jnp.where(keep, hp_ref[...], jnp.zeros((), hp_ref.dtype))

    # ---- depthwise_conv (17 taps), register-blocked over CHUNK-row windows.
    #      Per chunk: one aligned load for the k=16 tap plus one window load per
    #      sub-sublane offset r = 0..7; each window yields two taps (k = r and
    #      k = r + 8) via aligned in-register slices.
    wdw = wdw_ref[...].astype(hp_ref.dtype)                  # (17, D), loaded once
    w_rows = [wdw[k] for k in range(KSIZE)]                  # hoisted out of loops
    for base in range(0, tile_n, CHUNK):
        acc = hp_ref[pl.ds(base + 2 * PAD, CHUNK), :] * w_rows[2 * PAD]   # k = 16
        for r in range(PAD):
            win = hp_ref[pl.ds(base + r, CHUNK + PAD), :]    # rows [base+r, +CHUNK+8)
            acc = acc + win[:CHUNK, :] * w_rows[r]           # k = r
            acc = acc + win[PAD:, :] * w_rows[PAD + r]       # k = r + 8
        cv_ref[pl.ds(base, CHUNK), :] = acc.astype(jnp.float32)

    # ---- mid_norm -> swish -> pointwise_conv_2 (bf16 MXU matmul).
    h2 = _layer_norm(cv_ref[...], g2_ref[0], b2_ref[0])
    h2 = h2 * jax.nn.sigmoid(h2)
    out = jnp.dot(h2.astype(jnp.bfloat16), w2_ref[...],
                  preferred_element_type=jnp.float32)
    o_ref[0] = out.astype(o_ref.dtype)


def _vmem_capacity_bytes():
    get_info = getattr(pltpu, "get_tpu_info", None)
    if get_info is not None:
        try:
            cap = int(getattr(get_info(), "vmem_capacity_bytes", 0) or 0)
            if cap > 0:
                return cap
        except Exception:  # narrow fallback: only the hardware query
            pass
    return 64 * 1024 * 1024      # conservative default (v7x per-core capacity)


def _vmem_bytes(tile_n, D, act_bytes, hp_bytes):
    rows = tile_n + 2 * PAD
    est = 2 * rows * D * act_bytes           # x tile + halos (double-buffered)
    est += 2 * tile_n * D * act_bytes        # output tile (double-buffered)
    est += rows * D * hp_bytes               # padded GLU scratch
    est += tile_n * D * 4                    # depthwise-conv output scratch
    est += rows * 3 * D * 4                  # xs / gl / h f32 temporaries
    est += 2 * 3 * D * D * 2                 # bf16 weights (worst-case 2 buffers)
    est += 16 * D * 4
    return est


def conformer_module(x, params, tile_n=512, conv_in_bf16=False):
    """Pallas TPU forward of ConformerModule on (B, N, D) activations.

    conv_in_bf16: run the depthwise-conv multiply-accumulate in bf16
    (worthwhile on v6e/v7x which have bf16 VALUs; keep False on v5e).
    """
    B, N, D = x.shape
    assert D % 128 == 0, "channel dim must be a multiple of 128 (lane tile)"
    w_fused, b_a, b_g, w2 = prepare_weights(params)

    hp_dtype = jnp.bfloat16 if conv_in_bf16 else jnp.float32
    act_bytes = x.dtype.itemsize
    hp_bytes = jnp.dtype(hp_dtype).itemsize

    # Sequence tile: multiple of CHUNK, as large as the per-chip VMEM budget
    # allows (leave headroom for Mosaic internal scratch).
    cap = _vmem_capacity_bytes()
    budget = max(32 * 1024 * 1024, cap - 16 * 1024 * 1024)
    tile_n = _round_up(max(CHUNK, min(tile_n, _round_up(N, CHUNK))), CHUNK)
    while tile_n > CHUNK and _vmem_bytes(tile_n, D, act_bytes, hp_bytes) > budget:
        tile_n = max(CHUNK, _round_up(tile_n // 2, CHUNK))

    # No wrapper-level padding / slicing: the grid covers N with a ragged last
    # tile (Pallas clips edge-block DMAs; in-kernel masking zeroes the rows
    # outside the real sequence before the depthwise conv).
    n_tiles = pl.cdiv(N, tile_n)
    nblk = tile_n // PAD                   # 8-row halo blocks per tile
    last_halo_blk = pl.cdiv(N, PAD) - 1

    kernel = functools.partial(conformer_kernel, n_real=N)

    def const_spec(shape):
        nd = len(shape)
        return pl.BlockSpec(shape, lambda b, j, _nd=nd: (0,) * _nd)

    fwd = pl.pallas_call(
        kernel,
        out_shape=jax.ShapeDtypeStruct((B, N, D), x.dtype),
        grid=(B, n_tiles),
        in_specs=[
            # main tile of x
            pl.BlockSpec((1, tile_n, D), lambda b, j: (b, j, 0)),
            # left halo: last 8 rows of the previous tile (clamped at j == 0,
            # masked in-kernel)
            pl.BlockSpec((1, PAD, D),
                         lambda b, j: (b, jnp.maximum(j * nblk - 1, 0), 0)),
            # right halo: first 8 rows of the next tile (clamped on the last
            # tile, masked in-kernel)
            pl.BlockSpec((1, PAD, D),
                         lambda b, j: (b, jnp.minimum((j + 1) * nblk,
                                                      last_halo_blk), 0)),
            const_spec((1, D)),        # in_norm gamma
            const_spec((1, D)),        # in_norm beta
            const_spec((D, 2 * D)),    # fused pointwise_conv + GLU weight (bf16)
            const_spec((1, D)),        # GLU bias, a-half
            const_spec((1, D)),        # GLU bias, gate-half
            const_spec((KSIZE, D)),    # depthwise weights (tap, channel)
            const_spec((1, D)),        # mid_norm gamma
            const_spec((1, D)),        # mid_norm beta
            const_spec((D, D)),        # pointwise_conv_2 weight (bf16)
        ],
        out_specs=pl.BlockSpec((1, tile_n, D), lambda b, j: (b, j, 0)),
        scratch_shapes=[
            pltpu.VMEM((tile_n + 2 * PAD, D), hp_dtype),   # padded GLU output
            pltpu.VMEM((tile_n, D), jnp.float32),          # depthwise-conv output
        ],
        compiler_params=pltpu.CompilerParams(
            dimension_semantics=("parallel", "parallel"),
            vmem_limit_bytes=budget),
    )
    return fwd(x, x, x, params["g1"], params["b1"], w_fused, b_a, b_g,
               params["wdw"], params["g2"], params["b2"], w2)


# ----------------------------- references ----------------------------------

def reference(x, params):
    """Pure-JAX f32 reference reproducing the PyTorch forward semantics."""
    B, N, D = x.shape
    h = _layer_norm(x, params["g1"][0], params["b1"][0])
    h = h @ params["w1_t"]
    gl = h @ params["wg_t"] + params["bg"][0]
    a, gate = gl[..., :D], gl[..., D:]
    h = a * jax.nn.silu(gate)
    hp = jnp.pad(h, ((0, 0), (PAD, PAD), (0, 0)))
    acc = jnp.zeros_like(h)
    for k in range(KSIZE):
        acc = acc + hp[:, k:k + N, :] * params["wdw"][k]
    h = _layer_norm(acc, params["g2"][0], params["b2"][0])
    h = jax.nn.silu(h)
    return h @ params["w2_t"]


def reference_matched(x, params):
    """Reference using the same fusion / bf16 casts as the kernel (tight check)."""
    B, N, D = x.shape
    w_fused, b_a, b_g, w2 = prepare_weights(params)
    h = _layer_norm(x, params["g1"][0], params["b1"][0])
    gl = jnp.dot(h.astype(jnp.bfloat16), w_fused,
                 preferred_element_type=jnp.float32)
    a = gl[..., :D] + b_a[0]
    g = gl[..., D:] + b_g[0]
    h = a * jax.nn.silu(g)
    hp = jnp.pad(h, ((0, 0), (PAD, PAD), (0, 0)))
    acc = jnp.zeros_like(h)
    for k in range(KSIZE):
        acc = acc + hp[:, k:k + N, :] * params["wdw"][k]
    h = _layer_norm(acc, params["g2"][0], params["b2"][0])
    h = jax.nn.silu(h)
    return jnp.dot(h.astype(jnp.bfloat16), w2, preferred_element_type=jnp.float32)


def make_params(key, dim):
    ks = jax.random.split(key, 8)
    s = 0.05
    # PyTorch weight shapes:
    #   pointwise_conv.weight   : (dim, dim, 1)  -> stored as W.T  (dim, dim)
    #   glu.proj.weight / bias  : (2*dim, dim) / (2*dim,) -> W.T (dim, 2*dim)
    #   depthwise_conv.weight   : (dim, 1, 17)   -> stored as (17, dim)
    #   pointwise_conv_2.weight : (dim, dim, 1)  -> stored as W.T  (dim, dim)
    return {
        "g1": 1.0 + 0.1 * jax.random.normal(ks[0], (1, dim), jnp.float32),
        "b1": 0.1 * jax.random.normal(ks[1], (1, dim), jnp.float32),
        "w1_t": s * jax.random.normal(ks[2], (dim, dim), jnp.float32),
        "wg_t": s * jax.random.normal(ks[3], (dim, 2 * dim), jnp.float32),
        "bg": s * jax.random.normal(ks[4], (1, 2 * dim), jnp.float32),
        "wdw": s * jax.random.normal(ks[5], (KSIZE, dim), jnp.float32),
        "g2": 1.0 + 0.1 * jax.random.normal(ks[6], (1, dim), jnp.float32),
        "b2": 0.1 * jax.random.normal(ks[7], (1, dim), jnp.float32),
        "w2_t": s * jax.random.normal(jax.random.fold_in(key, 99),
                                      (dim, dim), jnp.float32),
    }


if __name__ == "__main__":
    # N = 300 with tile_n = 128 -> 3 sequence tiles with a ragged last tile:
    # exercises interior halos, boundary halos, end-of-sequence masking and the
    # clipped edge-block reads/writes.  The default tile_n covers N in one tile.
    B, N, D = 2, 300, 128
    key = jax.random.PRNGKey(0)
    kx, kp = jax.random.split(key)
    x = jax.random.normal(kx, (B, N, D), jnp.float32)
    params = make_params(kp, D)

    ref_m = reference_matched(x, params)
    ref_f = reference(x, params)

    outs = {
        "tiled": conformer_module(x, params, tile_n=128),
        "default": conformer_module(x, params),
    }
    for name, out in outs.items():
        out = jax.block_until_ready(out)
        assert out.shape == (B, N, D)
        # Tight check against a reference with identical fusion / bf16 casts.
        assert jnp.allclose(out, ref_m, rtol=5e-3, atol=5e-3), \
            f"{name}: mismatch vs matched-precision reference"
        # Looser sanity check against the full-f32 PyTorch-semantics reference.
        assert jnp.allclose(out, ref_f, rtol=5e-2, atol=3e-2), \
            f"{name}: mismatch vs f32 reference"

    # Optional bf16 depthwise-conv MAC path (intended for v6e/v7x), validated
    # at a looser tolerance against the f32 reference.
    out_bf16 = jax.block_until_ready(
        conformer_module(x, params, tile_n=128, conv_in_bf16=True))
    assert out_bf16.shape == (B, N, D)
    assert jnp.allclose(out_bf16, ref_f, rtol=5e-2, atol=3e-2), \
        "conv_in_bf16: mismatch vs f32 reference"

    print("KERNEL_OK")
</pallas_src>

<mosaic_0001>
module attributes {stable_mosaic.version = 11 : i64} {
  func.func @conformer_kernel(%arg0: i32, %arg1: i32, %arg2: memref<1x128x128xf32, #tpu.memory_space<vmem>>, %arg3: memref<1x8x128xf32, #tpu.memory_space<vmem>>, %arg4: memref<1x8x128xf32, #tpu.memory_space<vmem>>, %arg5: memref<1x128xf32, #tpu.memory_space<vmem>>, %arg6: memref<1x128xf32, #tpu.memory_space<vmem>>, %arg7: memref<128x256xbf16, #tpu.memory_space<vmem>>, %arg8: memref<1x128xf32, #tpu.memory_space<vmem>>, %arg9: memref<1x128xf32, #tpu.memory_space<vmem>>, %arg10: memref<17x128xf32, #tpu.memory_space<vmem>>, %arg11: memref<1x128xf32, #tpu.memory_space<vmem>>, %arg12: memref<1x128xf32, #tpu.memory_space<vmem>>, %arg13: memref<128x128xbf16, #tpu.memory_space<vmem>>, %arg14: memref<1x128x128xf32, #tpu.memory_space<vmem>>, %arg15: memref<144x128xf32, #tpu.memory_space<vmem>>, %arg16: memref<128x128xf32, #tpu.memory_space<vmem>>) attributes {dimension_semantics = [#tpu.dimension_semantics<parallel>, #tpu.dimension_semantics<parallel>], iteration_bounds = array<i64: 2, 3>, scalar_prefetch = 0 : i64, scratch_operands = 2 : i64, tpu.core_type = #tpu.core_type<tc>, window_params = [{transform_indices = @transform_0, window_bounds = array<i64: 1, 128, 128>}, {transform_indices = @transform_1, window_bounds = array<i64: 1, 8, 128>}, {transform_indices = @transform_2, window_bounds = array<i64: 1, 8, 128>}, {pipeline_mode = #tpu.pipeline_mode<synchronous>, transform_indices = @transform_3, window_bounds = array<i64: 1, 128>}, {pipeline_mode = #tpu.pipeline_mode<synchronous>, transform_indices = @transform_4, window_bounds = array<i64: 1, 128>}, {pipeline_mode = #tpu.pipeline_mode<synchronous>, transform_indices = @transform_5, window_bounds = array<i64: 128, 256>}, {pipeline_mode = #tpu.pipeline_mode<synchronous>, transform_indices = @transform_6, window_bounds = array<i64: 1, 128>}, {pipeline_mode = #tpu.pipeline_mode<synchronous>, transform_indices = @transform_7, window_bounds = array<i64: 1, 128>}, {pipeline_mode = #tpu.pipeline_mode<synchronous>, transform_indices = @transform_8, window_bounds = array<i64: 17, 128>}, {pipeline_mode = #tpu.pipeline_mode<synchronous>, transform_indices = @transform_9, window_bounds = array<i64: 1, 128>}, {pipeline_mode = #tpu.pipeline_mode<synchronous>, transform_indices = @transform_10, window_bounds = array<i64: 1, 128>}, {pipeline_mode = #tpu.pipeline_mode<synchronous>, transform_indices = @transform_11, window_bounds = array<i64: 128, 128>}, {transform_indices = @transform_12, window_bounds = array<i64: 1, 128, 128>}]} {
    %c0 = arith.constant 0 : index
    %c0_0 = arith.constant 0 : index
    %c0_1 = arith.constant 0 : index
    %0 = vector.load %arg3[%c0, %c0_0, %c0_1] : memref<1x8x128xf32, #tpu.memory_space<vmem>>, vector<1x8x128xf32>
    %1 = vector.shape_cast %0 : vector<1x8x128xf32> to vector<8x128xf32>
    %c0_2 = arith.constant 0 : index
    %c0_3 = arith.constant 0 : index
    %c0_4 = arith.constant 0 : index
    %2 = vector.load %arg2[%c0_2, %c0_3, %c0_4] : memref<1x128x128xf32, #tpu.memory_space<vmem>>, vector<1x128x128xf32>
    %3 = vector.shape_cast %2 : vector<1x128x128xf32> to vector<128x128xf32>
    %c0_5 = arith.constant 0 : index
    %c0_6 = arith.constant 0 : index
    %c0_7 = arith.constant 0 : index
    %4 = vector.load %arg4[%c0_5, %c0_6, %c0_7] : memref<1x8x128xf32, #tpu.memory_space<vmem>>, vector<1x8x128xf32>
    %5 = vector.shape_cast %4 : vector<1x8x128xf32> to vector<8x128xf32>
    %6 = tpu.concatenate %1, %3, %5 in 0 : vector<8x128xf32>, vector<128x128xf32>, vector<8x128xf32> -> vector<144x128xf32>
    %c0_8 = arith.constant 0 : index
    %c0_9 = arith.constant 0 : index
    %7 = vector.load %arg5[%c0_8, %c0_9] : memref<1x128xf32, #tpu.memory_space<vmem>>, vector<1x128xf32>
    %8 = vector.shape_cast %7 : vector<1x128xf32> to vector<128xf32>
    %c0_10 = arith.constant 0 : index
    %c0_11 = arith.constant 0 : index
    %9 = vector.load %arg6[%c0_10, %c0_11] : memref<1x128xf32, #tpu.memory_space<vmem>>, vector<1x128xf32>
    %10 = vector.shape_cast %9 : vector<1x128xf32> to vector<128xf32>
    %cst = arith.constant dense<0.000000e+00> : vector<144xf32>
    %11 = vector.multi_reduction <add>, %6, %cst [1] : vector<144x128xf32> to vector<144xf32>
    %12 = vector.shape_cast %11 : vector<144xf32> to vector<144x1xf32>
    %cst_12 = arith.constant 1.280000e+02 : f32
    %13 = vector.broadcast %cst_12 : f32 to vector<144x1xf32>
    %14 = arith.divf %12, %13 : vector<144x1xf32>
    %15 = vector.broadcast %14 : vector<144x1xf32> to vector<144x128xf32>
    %16 = arith.subf %6, %15 : vector<144x128xf32>
    %17 = arith.mulf %16, %16 : vector<144x128xf32>
    %cst_13 = arith.constant dense<0.000000e+00> : vector<144xf32>
    %18 = vector.multi_reduction <add>, %17, %cst_13 [1] : vector<144x128xf32> to vector<144xf32>
    %19 = vector.shape_cast %18 : vector<144xf32> to vector<144x1xf32>
    %cst_14 = arith.constant 1.280000e+02 : f32
    %20 = vector.broadcast %cst_14 : f32 to vector<144x1xf32>
    %21 = arith.divf %19, %20 : vector<144x1xf32>
    %cst_15 = arith.constant 9.99999974E-6 : f32
    %22 = vector.broadcast %cst_15 : f32 to vector<144x1xf32>
    %23 = arith.addf %21, %22 : vector<144x1xf32>
    %24 = math.rsqrt %23 : vector<144x1xf32>
    %25 = vector.broadcast %24 : vector<144x1xf32> to vector<144x128xf32>
    %26 = arith.mulf %16, %25 : vector<144x128xf32>
    %27 = vector.shape_cast %8 : vector<128xf32> to vector<1x128xf32>
    %28 = vector.broadcast %27 : vector<1x128xf32> to vector<144x128xf32>
    %29 = arith.mulf %26, %28 : vector<144x128xf32>
    %30 = vector.shape_cast %10 : vector<128xf32> to vector<1x128xf32>
    %31 = vector.broadcast %30 : vector<1x128xf32> to vector<144x128xf32>
    %32 = arith.addf %29, %31 : vector<144x128xf32>
    %33 = arith.truncf %32 : vector<144x128xf32> to vector<144x128xbf16>
    %c0_16 = arith.constant 0 : index
    %c0_17 = arith.constant 0 : index
    %34 = vector.load %arg7[%c0_16, %c0_17] : memref<128x256xbf16, #tpu.memory_space<vmem>>, vector<128x256xbf16>
    %cst_18 = arith.constant dense<0.000000e+00> : vector<144x256xf32>
    %35 = tpu.matmul %33, %34, %cst_18 {dimension_numbers = #tpu.dot_dimension_numbers<[1], [0], [0], [1], [0, 0, 1, 1], [], []>} : vector<144x128xbf16>, vector<128x256xbf16>, vector<144x256xf32> -> vector<144x256xf32>
    %36 = vector.extract_strided_slice %35 {offsets = [0, 0], sizes = [144, 128], strides = [1, 1]} : vector<144x256xf32> to vector<144x128xf32>
    %c0_19 = arith.constant 0 : index
    %c0_20 = arith.constant 0 : index
    %37 = vector.load %arg8[%c0_19, %c0_20] : memref<1x128xf32, #tpu.memory_space<vmem>>, vector<1x128xf32>
    %38 = vector.shape_cast %37 : vector<1x128xf32> to vector<128xf32>
    %39 = vector.shape_cast %38 : vector<128xf32> to vector<1x128xf32>
    %40 = vector.broadcast %39 : vector<1x128xf32> to vector<144x128xf32>
    %41 = arith.addf %36, %40 : vector<144x128xf32>
    %42 = vector.extract_strided_slice %35 {offsets = [0, 128], sizes = [144, 128], strides = [1, 1]} : vector<144x256xf32> to vector<144x128xf32>
    %c0_21 = arith.constant 0 : index
    %c0_22 = arith.constant 0 : index
    %43 = vector.load %arg9[%c0_21, %c0_22] : memref<1x128xf32, #tpu.memory_space<vmem>>, vector<1x128xf32>
    %44 = vector.shape_cast %43 : vector<1x128xf32> to vector<128xf32>
    %45 = vector.shape_cast %44 : vector<128xf32> to vector<1x128xf32>
    %46 = vector.broadcast %45 : vector<1x128xf32> to vector<144x128xf32>
    %47 = arith.addf %42, %46 : vector<144x128xf32>
    %48 = arith.negf %47 : vector<144x128xf32>
    %49 = math.exp %48 : vector<144x128xf32>
    %cst_23 = arith.constant 1.000000e+00 : f32
    %50 = vector.broadcast %cst_23 : f32 to vector<144x128xf32>
    %51 = arith.addf %50, %49 : vector<144x128xf32>
    %52 = arith.divf %50, %51 : vector<144x128xf32>
    %53 = arith.mulf %47, %52 : vector<144x128xf32>
    %54 = arith.mulf %41, %53 : vector<144x128xf32>
    %c0_24 = arith.constant 0 : index
    %c0_25 = arith.constant 0 : index
    %55 = vector.load %arg15[%c0_24, %c0_25] : memref<144x128xf32, #tpu.memory_space<vmem>>, vector<144x128xf32>
    tpu.vector_store %arg15[%c0_24, %c0_25], %54 {strides = array<i32>} : memref<144x128xf32, #tpu.memory_space<vmem>>, vector<144x128xf32>,
    %c0_i32 = arith.constant 0 : i32
    %56 = arith.cmpi eq, %arg1, %c0_i32 : i32
    %c1_i32 = arith.constant 1 : i32
    %57 = arith.addi %arg1, %c1_i32 : i32
    %c128_i32 = arith.constant 128 : i32
    %58 = arith.muli %57, %c128_i32 : i32
    %c8_i32 = arith.constant 8 : i32
    %59 = arith.addi %58, %c8_i32 : i32
    %c300_i32 = arith.constant 300 : i32
    %60 = arith.cmpi sgt, %59, %c300_i32 : i32
    %61 = arith.ori %56, %60 : i1
    %62 = arith.extui %61 : i1 to i32
    %c0_i32_26 = arith.constant 0 : i32
    %63 = arith.cmpi ne, %62, %c0_i32_26 : i32
    scf.if %63 {
      %510 = tpu.iota {dimensions = array<i32: 0>} : vector<144x1xi32>
      %c128_i32_92 = arith.constant 128 : i32
      %511 = arith.muli %arg1, %c128_i32_92 : i32
      %c8_i32_93 = arith.constant 8 : i32
      %512 = arith.subi %511, %c8_i32_93 : i32
      %513 = vector.broadcast %512 : i32 to vector<144x1xi32>
      %514 = arith.addi %513, %510 : vector<144x1xi32>
      %c0_i32_94 = arith.constant 0 : i32
      %515 = vector.broadcast %c0_i32_94 : i32 to vector<144x1xi32>
      %516 = arith.cmpi sge, %514, %515 : vector<144x1xi32>
      %c300_i32_95 = arith.constant 300 : i32
      %517 = vector.broadcast %c300_i32_95 : i32 to vector<144x1xi32>
      %518 = arith.cmpi slt, %514, %517 : vector<144x1xi32>
      %519 = arith.andi %516, %518 : vector<144x1xi1>
      %c0_96 = arith.constant 0 : index
      %c0_97 = arith.constant 0 : index
      %520 = vector.load %arg15[%c0_96, %c0_97] : memref<144x128xf32, #tpu.memory_space<vmem>>, vector<144x128xf32>
      %cst_98 = arith.constant 0.000000e+00 : f32
      %521 = vector.shape_cast %519 : vector<144x1xi1> to vector<144x1xi1>
      %522 = vector.broadcast %521 : vector<144x1xi1> to vector<144x128xi1>
      %523 = vector.broadcast %cst_98 : f32 to vector<144x128xf32>
      %524 = arith.select %522, %520, %523 : vector<144x128xi1>, vector<144x128xf32>
      %c0_99 = arith.constant 0 : index
      %c0_100 = arith.constant 0 : index
      %525 = vector.load %arg15[%c0_99, %c0_100] : memref<144x128xf32, #tpu.memory_space<vmem>>, vector<144x128xf32>
      tpu.vector_store %arg15[%c0_99, %c0_100], %524 {strides = array<i32>} : memref<144x128xf32, #tpu.memory_space<vmem>>, vector<144x128xf32>,
    } else {
    }
    %c0_27 = arith.constant 0 : index
    %c0_28 = arith.constant 0 : index
    %64 = vector.load %arg10[%c0_27, %c0_28] : memref<17x128xf32, #tpu.memory_space<vmem>>, vector<17x128xf32>
    %65 = vector.extract_strided_slice %64 {offsets = [0, 0], sizes = [1, 128], strides = [1, 1]} : vector<17x128xf32> to vector<1x128xf32>
    %66 = vector.shape_cast %65 : vector<1x128xf32> to vector<128xf32>
    %67 = vector.extract_strided_slice %64 {offsets = [1, 0], sizes = [1, 128], strides = [1, 1]} : vector<17x128xf32> to vector<1x128xf32>
    %68 = vector.shape_cast %67 : vector<1x128xf32> to vector<128xf32>
    %69 = vector.extract_strided_slice %64 {offsets = [2, 0], sizes = [1, 128], strides = [1, 1]} : vector<17x128xf32> to vector<1x128xf32>
    %70 = vector.shape_cast %69 : vector<1x128xf32> to vector<128xf32>
    %71 = vector.extract_strided_slice %64 {offsets = [3, 0], sizes = [1, 128], strides = [1, 1]} : vector<17x128xf32> to vector<1x128xf32>
    %72 = vector.shape_cast %71 : vector<1x128xf32> to vector<128xf32>
    %73 = vector.extract_strided_slice %64 {offsets = [4, 0], sizes = [1, 128], strides = [1, 1]} : vector<17x128xf32> to vector<1x128xf32>
    %74 = vector.shape_cast %73 : vector<1x128xf32> to vector<128xf32>
    %75 = vector.extract_strided_slice %64 {offsets = [5, 0], sizes = [1, 128], strides = [1, 1]} : vector<17x128xf32> to vector<1x128xf32>
    %76 = vector.shape_cast %75 : vector<1x128xf32> to vector<128xf32>
    %77 = vector.extract_strided_slice %64 {offsets = [6, 0], sizes = [1, 128], strides = [1, 1]} : vector<17x128xf32> to vector<1x128xf32>
    %78 = vector.shape_cast %77 : vector<1x128xf32> to vector<128xf32>
    %79 = vector.extract_strided_slice %64 {offsets = [7, 0], sizes = [1, 128], strides = [1, 1]} : vector<17x128xf32> to vector<1x128xf32>
    %80 = vector.shape_cast %79 : vector<1x128xf32> to vector<128xf32>
    %81 = vector.extract_strided_slice %64 {offsets = [8, 0], sizes = [1, 128], strides = [1, 1]} : vector<17x128xf32> to vector<1x128xf32>
    %82 = vector.shape_cast %81 : vector<1x128xf32> to vector<128xf32>
    %83 = vector.extract_strided_slice %64 {offsets = [9, 0], sizes = [1, 128], strides = [1, 1]} : vector<17x128xf32> to vector<1x128xf32>
    %84 = vector.shape_cast %83 : vector<1x128xf32> to vector<128xf32>
    %85 = vector.extract_strided_slice %64 {offsets = [10, 0], sizes = [1, 128], strides = [1, 1]} : vector<17x128xf32> to vector<1x128xf32>
    %86 = vector.shape_cast %85 : vector<1x128xf32> to vector<128xf32>
    %87 = vector.extract_strided_slice %64 {offsets = [11, 0], sizes = [1, 128], strides = [1, 1]} : vector<17x128xf32> to vector<1x128xf32>
    %88 = vector.shape_cast %87 : vector<1x128xf32> to vector<128xf32>
    %89 = vector.extract_strided_slice %64 {offsets = [12, 0], sizes = [1, 128], strides = [1, 1]} : vector<17x128xf32> to vector<1x128xf32>
    %90 = vector.shape_cast %89 : vector<1x128xf32> to vector<128xf32>
    %91 = vector.extract_strided_slice %64 {offsets = [13, 0], sizes = [1, 128], strides = [1, 1]} : vector<17x128xf32> to vector<1x128xf32>
    %92 = vector.shape_cast %91 : vector<1x128xf32> to vector<128xf32>
    %93 = vector.extract_strided_slice %64 {offsets = [14, 0], sizes = [1, 128], strides = [1, 1]} : vector<17x128xf32> to vector<1x128xf32>
    %94 = vector.shape_cast %93 : vector<1x128xf32> to vector<128xf32>
    %95 = vector.extract_strided_slice %64 {offsets = [15, 0], sizes = [1, 128], strides = [1, 1]} : vector<17x128xf32> to vector<1x128xf32>
    %96 = vector.shape_cast %95 : vector<1x128xf32> to vector<128xf32>
    %97 = vector.extract_strided_slice %64 {offsets = [16, 0], sizes = [1, 128], strides = [1, 1]} : vector<17x128xf32> to vector<1x128xf32>
    %98 = vector.shape_cast %97 : vector<1x128xf32> to vector<128xf32>
    %c16 = arith.constant 16 : index
    %c0_29 = arith.constant 0 : index
    %99 = vector.load %arg15[%c16, %c0_29] : memref<144x128xf32, #tpu.memory_space<vmem>>, vector<32x128xf32>
    %100 = vector.shape_cast %98 : vector<128xf32> to vector<1x128xf32>
    %101 = vector.broadcast %100 : vector<1x128xf32> to vector<32x128xf32>
    %102 = arith.mulf %99, %101 : vector<32x128xf32>
    %c0_30 = arith.constant 0 : index
    %c0_31 = arith.constant 0 : index
    %103 = vector.load %arg15[%c0_30, %c0_31] : memref<144x128xf32, #tpu.memory_space<vmem>>, vector<40x128xf32>
    %104 = vector.extract_strided_slice %103 {offsets = [0, 0], sizes = [32, 128], strides = [1, 1]} : vector<40x128xf32> to vector<32x128xf32>
    %105 = vector.shape_cast %66 : vector<128xf32> to vector<1x128xf32>
    %106 = vector.broadcast %105 : vector<1x128xf32> to vector<32x128xf32>
    %107 = arith.mulf %104, %106 : vector<32x128xf32>
    %108 = arith.addf %102, %107 : vector<32x128xf32>
    %109 = vector.extract_strided_slice %103 {offsets = [8, 0], sizes = [32, 128], strides = [1, 1]} : vector<40x128xf32> to vector<32x128xf32>
    %110 = vector.shape_cast %82 : vector<128xf32> to vector<1x128xf32>
    %111 = vector.broadcast %110 : vector<1x128xf32> to vector<32x128xf32>
    %112 = arith.mulf %109, %111 : vector<32x128xf32>
    %113 = arith.addf %108, %112 : vector<32x128xf32>
    %c1 = arith.constant 1 : index
    %c0_32 = arith.constant 0 : index
    %114 = vector.load %arg15[%c1, %c0_32] : memref<144x128xf32, #tpu.memory_space<vmem>>, vector<40x128xf32>
    %115 = vector.extract_strided_slice %114 {offsets = [0, 0], sizes = [32, 128], strides = [1, 1]} : vector<40x128xf32> to vector<32x128xf32>
    %116 = vector.shape_cast %68 : vector<128xf32> to vector<1x128xf32>
    %117 = vector.broadcast %116 : vector<1x128xf32> to vector<32x128xf32>
    %118 = arith.mulf %115, %117 : vector<32x128xf32>
    %119 = arith.addf %113, %118 : vector<32x128xf32>
    %120 = vector.extract_strided_slice %114 {offsets = [8, 0], sizes = [32, 128], strides = [1, 1]} : vector<40x128xf32> to vector<32x128xf32>
    %121 = vector.shape_cast %84 : vector<128xf32> to vector<1x128xf32>
    %122 = vector.broadcast %121 : vector<1x128xf32> to vector<32x128xf32>
    %123 = arith.mulf %120, %122 : vector<32x128xf32>
    %124 = arith.addf %119, %123 : vector<32x128xf32>
    %c2 = arith.constant 2 : index
    %c0_33 = arith.constant 0 : index
    %125 = vector.load %arg15[%c2, %c0_33] : memref<144x128xf32, #tpu.memory_space<vmem>>, vector<40x128xf32>
    %126 = vector.extract_strided_slice %125 {offsets = [0, 0], sizes = [32, 128], strides = [1, 1]} : vector<40x128xf32> to vector<32x128xf32>
    %127 = vector.shape_cast %70 : vector<128xf32> to vector<1x128xf32>
    %128 = vector.broadcast %127 : vector<1x128xf32> to vector<32x128xf32>
    %129 = arith.mulf %126, %128 : vector<32x128xf32>
    %130 = arith.addf %124, %129 : vector<32x128xf32>
    %131 = vector.extract_strided_slice %125 {offsets = [8, 0], sizes = [32, 128], strides = [1, 1]} : vector<40x128xf32> to vector<32x128xf32>
    %132 = vector.shape_cast %86 : vector<128xf32> to vector<1x128xf32>
    %133 = vector.broadcast %132 : vector<1x128xf32> to vector<32x128xf32>
    %134 = arith.mulf %131, %133 : vector<32x128xf32>
    %135 = arith.addf %130, %134 : vector<32x128xf32>
    %c3 = arith.constant 3 : index
    %c0_34 = arith.constant 0 : index
    %136 = vector.load %arg15[%c3, %c0_34] : memref<144x128xf32, #tpu.memory_space<vmem>>, vector<40x128xf32>
    %137 = vector.extract_strided_slice %136 {offsets = [0, 0], sizes = [32, 128], strides = [1, 1]} : vector<40x128xf32> to vector<32x128xf32>
    %138 = vector.shape_cast %72 : vector<128xf32> to vector<1x128xf32>
    %139 = vector.broadcast %138 : vector<1x128xf32> to vector<32x128xf32>
    %140 = arith.mulf %137, %139 : vector<32x128xf32>
    %141 = arith.addf %135, %140 : vector<32x128xf32>
    %142 = vector.extract_strided_slice %136 {offsets = [8, 0], sizes = [32, 128], strides = [1, 1]} : vector<40x128xf32> to vector<32x128xf32>
    %143 = vector.shape_cast %88 : vector<128xf32> to vector<1x128xf32>
    %144 = vector.broadcast %143 : vector<1x128xf32> to vector<32x128xf32>
    %145 = arith.mulf %142, %144 : vector<32x128xf32>
    %146 = arith.addf %141, %145 : vector<32x128xf32>
    %c4 = arith.constant 4 : index
    %c0_35 = arith.constant 0 : index
    %147 = vector.load %arg15[%c4, %c0_35] : memref<144x128xf32, #tpu.memory_space<vmem>>, vector<40x128xf32>
    %148 = vector.extract_strided_slice %147 {offsets = [0, 0], sizes = [32, 128], strides = [1, 1]} : vector<40x128xf32> to vector<32x128xf32>
    %149 = vector.shape_cast %74 : vector<128xf32> to vector<1x128xf32>
    %150 = vector.broadcast %149 : vector<1x128xf32> to vector<32x128xf32>
    %151 = arith.mulf %148, %150 : vector<32x128xf32>
    %152 = arith.addf %146, %151 : vector<32x128xf32>
    %153 = vector.extract_strided_slice %147 {offsets = [8, 0], sizes = [32, 128], strides = [1, 1]} : vector<40x128xf32> to vector<32x128xf32>
    %154 = vector.shape_cast %90 : vector<128xf32> to vector<1x128xf32>
    %155 = vector.broadcast %154 : vector<1x128xf32> to vector<32x128xf32>
    %156 = arith.mulf %153, %155 : vector<32x128xf32>
    %157 = arith.addf %152, %156 : vector<32x128xf32>
    %c5 = arith.constant 5 : index
    %c0_36 = arith.constant 0 : index
    %158 = vector.load %arg15[%c5, %c0_36] : memref<144x128xf32, #tpu.memory_space<vmem>>, vector<40x128xf32>
    %159 = vector.extract_strided_slice %158 {offsets = [0, 0], sizes = [32, 128], strides = [1, 1]} : vector<40x128xf32> to vector<32x128xf32>
    %160 = vector.shape_cast %76 : vector<128xf32> to vector<1x128xf32>
    %161 = vector.broadcast %160 : vector<1x128xf32> to vector<32x128xf32>
    %162 = arith.mulf %159, %161 : vector<32x128xf32>
    %163 = arith.addf %157, %162 : vector<32x128xf32>
    %164 = vector.extract_strided_slice %158 {offsets = [8, 0], sizes = [32, 128], strides = [1, 1]} : vector<40x128xf32> to vector<32x128xf32>
    %165 = vector.shape_cast %92 : vector<128xf32> to vector<1x128xf32>
    %166 = vector.broadcast %165 : vector<1x128xf32> to vector<32x128xf32>
    %167 = arith.mulf %164, %166 : vector<32x128xf32>
    %168 = arith.addf %163, %167 : vector<32x128xf32>
    %c6 = arith.constant 6 : index
    %c0_37 = arith.constant 0 : index
    %169 = vector.load %arg15[%c6, %c0_37] : memref<144x128xf32, #tpu.memory_space<vmem>>, vector<40x128xf32>
    %170 = vector.extract_strided_slice %169 {offsets = [0, 0], sizes = [32, 128], strides = [1, 1]} : vector<40x128xf32> to vector<32x128xf32>
    %171 = vector.shape_cast %78 : vector<128xf32> to vector<1x128xf32>
    %172 = vector.broadcast %171 : vector<1x128xf32> to vector<32x128xf32>
    %173 = arith.mulf %170, %172 : vector<32x128xf32>
    %174 = arith.addf %168, %173 : vector<32x128xf32>
    %175 = vector.extract_strided_slice %169 {offsets = [8, 0], sizes = [32, 128], strides = [1, 1]} : vector<40x128xf32> to vector<32x128xf32>
    %176 = vector.shape_cast %94 : vector<128xf32> to vector<1x128xf32>
    %177 = vector.broadcast %176 : vector<1x128xf32> to vector<32x128xf32>
    %178 = arith.mulf %175, %177 : vector<32x128xf32>
    %179 = arith.addf %174, %178 : vector<32x128xf32>
    %c7 = arith.constant 7 : index
    %c0_38 = arith.constant 0 : index
    %180 = vector.load %arg15[%c7, %c0_38] : memref<144x128xf32, #tpu.memory_space<vmem>>, vector<40x128xf32>
    %181 = vector.extract_strided_slice %180 {offsets = [0, 0], sizes = [32, 128], strides = [1, 1]} : vector<40x128xf32> to vector<32x128xf32>
    %182 = vector.shape_cast %80 : vector<128xf32> to vector<1x128xf32>
    %183 = vector.broadcast %182 : vector<1x128xf32> to vector<32x128xf32>
    %184 = arith.mulf %181, %183 : vector<32x128xf32>
    %185 = arith.addf %179, %184 : vector<32x128xf32>
    %186 = vector.extract_strided_slice %180 {offsets = [8, 0], sizes = [32, 128], strides = [1, 1]} : vector<40x128xf32> to vector<32x128xf32>
    %187 = vector.shape_cast %96 : vector<128xf32> to vector<1x128xf32>
    %188 = vector.broadcast %187 : vector<1x128xf32> to vector<32x128xf32>
    %189 = arith.mulf %186, %188 : vector<32x128xf32>
    %190 = arith.addf %185, %189 : vector<32x128xf32>
    %c0_39 = arith.constant 0 : index
    %c0_40 = arith.constant 0 : index
    %191 = vector.load %arg16[%c0_39, %c0_40] : memref<128x128xf32, #tpu.memory_space<vmem>>, vector<32x128xf32>
    tpu.vector_store %arg16[%c0_39, %c0_40], %190 {strides = array<i32>} : memref<128x128xf32, #tpu.memory_space<vmem>>, vector<32x128xf32>,
    %c48 = arith.constant 48 : index
    %c0_41 = arith.constant 0 : index
    %192 = vector.load %arg15[%c48, %c0_41] : memref<144x128xf32, #tpu.memory_space<vmem>>, vector<32x128xf32>
    %193 = vector.shape_cast %98 : vector<128xf32> to vector<1x128xf32>
    %194 = vector.broadcast %193 : vector<1x128xf32> to vector<32x128xf32>
    %195 = arith.mulf %192, %194 : vector<32x128xf32>
    %c32 = arith.constant 32 : index
    %c0_42 = arith.constant 0 : index
    %196 = vector.load %arg15[%c32, %c0_42] : memref<144x128xf32, #tpu.memory_space<vmem>>, vector<40x128xf32>
    %197 = vector.extract_strided_slice %196 {offsets = [0, 0], sizes = [32, 128], strides = [1, 1]} : vector<40x128xf32> to vector<32x128xf32>
    %198 = vector.shape_cast %66 : vector<128xf32> to vector<1x128xf32>
    %199 = vector.broadcast %198 : vector<1x128xf32> to vector<32x128xf32>
    %200 = arith.mulf %197, %199 : vector<32x128xf32>
    %201 = arith.addf %195, %200 : vector<32x128xf32>
    %202 = vector.extract_strided_slice %196 {offsets = [8, 0], sizes = [32, 128], strides = [1, 1]} : vector<40x128xf32> to vector<32x128xf32>
    %203 = vector.shape_cast %82 : vector<128xf32> to vector<1x128xf32>
    %204 = vector.broadcast %203 : vector<1x128xf32> to vector<32x128xf32>
    %205 = arith.mulf %202, %204 : vector<32x128xf32>
    %206 = arith.addf %201, %205 : vector<32x128xf32>
    %c33 = arith.constant 33 : index
    %c0_43 = arith.constant 0 : index
    %207 = vector.load %arg15[%c33, %c0_43] : memref<144x128xf32, #tpu.memory_space<vmem>>, vector<40x128xf32>
    %208 = vector.extract_strided_slice %207 {offsets = [0, 0], sizes = [32, 128], strides = [1, 1]} : vector<40x128xf32> to vector<32x128xf32>
    %209 = vector.shape_cast %68 : vector<128xf32> to vector<1x128xf32>
    %210 = vector.broadcast %209 : vector<1x128xf32> to vector<32x128xf32>
    %211 = arith.mulf %208, %210 : vector<32x128xf32>
    %212 = arith.addf %206, %211 : vector<32x128xf32>
    %213 = vector.extract_strided_slice %207 {offsets = [8, 0], sizes = [32, 128], strides = [1, 1]} : vector<40x128xf32> to vector<32x128xf32>
    %214 = vector.shape_cast %84 : vector<128xf32> to vector<1x128xf32>
    %215 = vector.broadcast %214 : vector<1x128xf32> to vector<32x128xf32>
    %216 = arith.mulf %213, %215 : vector<32x128xf32>
    %217 = arith.addf %212, %216 : vector<32x128xf32>
    %c34 = arith.constant 34 : index
    %c0_44 = arith.constant 0 : index
    %218 = vector.load %arg15[%c34, %c0_44] : memref<144x128xf32, #tpu.memory_space<vmem>>, vector<40x128xf32>
    %219 = vector.extract_strided_slice %218 {offsets = [0, 0], sizes = [32, 128], strides = [1, 1]} : vector<40x128xf32> to vector<32x128xf32>
    %220 = vector.shape_cast %70 : vector<128xf32> to vector<1x128xf32>
    %221 = vector.broadcast %220 : vector<1x128xf32> to vector<32x128xf32>
    %222 = arith.mulf %219, %221 : vector<32x128xf32>
    %223 = arith.addf %217, %222 : vector<32x128xf32>
    %224 = vector.extract_strided_slice %218 {offsets = [8, 0], sizes = [32, 128], strides = [1, 1]} : vector<40x128xf32> to vector<32x128xf32>
    %225 = vector.shape_cast %86 : vector<128xf32> to vector<1x128xf32>
    %226 = vector.broadcast %225 : vector<1x128xf32> to vector<32x128xf32>
    %227 = arith.mulf %224, %226 : vector<32x128xf32>
    %228 = arith.addf %223, %227 : vector<32x128xf32>
    %c35 = arith.constant 35 : index
    %c0_45 = arith.constant 0 : index
    %229 = vector.load %arg15[%c35, %c0_45] : memref<144x128xf32, #tpu.memory_space<vmem>>, vector<40x128xf32>
    %230 = vector.extract_strided_slice %229 {offsets = [0, 0], sizes = [32, 128], strides = [1, 1]} : vector<40x128xf32> to vector<32x128xf32>
    %231 = vector.shape_cast %72 : vector<128xf32> to vector<1x128xf32>
    %232 = vector.broadcast %231 : vector<1x128xf32> to vector<32x128xf32>
    %233 = arith.mulf %230, %232 : vector<32x128xf32>
    %234 = arith.addf %228, %233 : vector<32x128xf32>
    %235 = vector.extract_strided_slice %229 {offsets = [8, 0], sizes = [32, 128], strides = [1, 1]} : vector<40x128xf32> to vector<32x128xf32>
    %236 = vector.shape_cast %88 : vector<128xf32> to vector<1x128xf32>
    %237 = vector.broadcast %236 : vector<1x128xf32> to vector<32x128xf32>
    %238 = arith.mulf %235, %237 : vector<32x128xf32>
    %239 = arith.addf %234, %238 : vector<32x128xf32>
    %c36 = arith.constant 36 : index
    %c0_46 = arith.constant 0 : index
    %240 = vector.load %arg15[%c36, %c0_46] : memref<144x128xf32, #tpu.memory_space<vmem>>, vector<40x128xf32>
    %241 = vector.extract_strided_slice %240 {offsets = [0, 0], sizes = [32, 128], strides = [1, 1]} : vector<40x128xf32> to vector<32x128xf32>
    %242 = vector.shape_cast %74 : vector<128xf32> to vector<1x128xf32>
    %243 = vector.broadcast %242 : vector<1x128xf32> to vector<32x128xf32>
    %244 = arith.mulf %241, %243 : vector<32x128xf32>
    %245 = arith.addf %239, %244 : vector<32x128xf32>
    %246 = vector.extract_strided_slice %240 {offsets = [8, 0], sizes = [32, 128], strides = [1, 1]} : vector<40x128xf32> to vector<32x128xf32>
    %247 = vector.shape_cast %90 : vector<128xf32> to vector<1x128xf32>
    %248 = vector.broadcast %247 : vector<1x128xf32> to vector<32x128xf32>
    %249 = arith.mulf %246, %248 : vector<32x128xf32>
    %250 = arith.addf %245, %249 : vector<32x128xf32>
    %c37 = arith.constant 37 : index
    %c0_47 = arith.constant 0 : index
    %251 = vector.load %arg15[%c37, %c0_47] : memref<144x128xf32, #tpu.memory_space<vmem>>, vector<40x128xf32>
    %252 = vector.extract_strided_slice %251 {offsets = [0, 0], sizes = [32, 128], strides = [1, 1]} : vector<40x128xf32> to vector<32x128xf32>
    %253 = vector.shape_cast %76 : vector<128xf32> to vector<1x128xf32>
    %254 = vector.broadcast %253 : vector<1x128xf32> to vector<32x128xf32>
    %255 = arith.mulf %252, %254 : vector<32x128xf32>
    %256 = arith.addf %250, %255 : vector<32x128xf32>
    %257 = vector.extract_strided_slice %251 {offsets = [8, 0], sizes = [32, 128], strides = [1, 1]} : vector<40x128xf32> to vector<32x128xf32>
    %258 = vector.shape_cast %92 : vector<128xf32> to vector<1x128xf32>
    %259 = vector.broadcast %258 : vector<1x128xf32> to vector<32x128xf32>
    %260 = arith.mulf %257, %259 : vector<32x128xf32>
    %261 = arith.addf %256, %260 : vector<32x128xf32>
    %c38 = arith.constant 38 : index
    %c0_48 = arith.constant 0 : index
    %262 = vector.load %arg15[%c38, %c0_48] : memref<144x128xf32, #tpu.memory_space<vmem>>, vector<40x128xf32>
    %263 = vector.extract_strided_slice %262 {offsets = [0, 0], sizes = [32, 128], strides = [1, 1]} : vector<40x128xf32> to vector<32x128xf32>
    %264 = vector.shape_cast %78 : vector<128xf32> to vector<1x128xf32>
    %265 = vector.broadcast %264 : vector<1x128xf32> to vector<32x128xf32>
    %266 = arith.mulf %263, %265 : vector<32x128xf32>
    %267 = arith.addf %261, %266 : vector<32x128xf32>
    %268 = vector.extract_strided_slice %262 {offsets = [8, 0], sizes = [32, 128], strides = [1, 1]} : vector<40x128xf32> to vector<32x128xf32>
    %269 = vector.shape_cast %94 : vector<128xf32> to vector<1x128xf32>
    %270 = vector.broadcast %269 : vector<1x128xf32> to vector<32x128xf32>
    %271 = arith.mulf %268, %270 : vector<32x128xf32>
    %272 = arith.addf %267, %271 : vector<32x128xf32>
    %c39 = arith.constant 39 : index
    %c0_49 = arith.constant 0 : index
    %273 = vector.load %arg15[%c39, %c0_49] : memref<144x128xf32, #tpu.memory_space<vmem>>, vector<40x128xf32>
    %274 = vector.extract_strided_slice %273 {offsets = [0, 0], sizes = [32, 128], strides = [1, 1]} : vector<40x128xf32> to vector<32x128xf32>
    %275 = vector.shape_cast %80 : vector<128xf32> to vector<1x128xf32>
    %276 = vector.broadcast %275 : vector<1x128xf32> to vector<32x128xf32>
    %277 = arith.mulf %274, %276 : vector<32x128xf32>
    %278 = arith.addf %272, %277 : vector<32x128xf32>
    %279 = vector.extract_strided_slice %273 {offsets = [8, 0], sizes = [32, 128], strides = [1, 1]} : vector<40x128xf32> to vector<32x128xf32>
    %280 = vector.shape_cast %96 : vector<128xf32> to vector<1x128xf32>
    %281 = vector.broadcast %280 : vector<1x128xf32> to vector<32x128xf32>
    %282 = arith.mulf %279, %281 : vector<32x128xf32>
    %283 = arith.addf %278, %282 : vector<32x128xf32>
    %c32_50 = arith.constant 32 : index
    %c0_51 = arith.constant 0 : index
    %284 = vector.load %arg16[%c32_50, %c0_51] : memref<128x128xf32, #tpu.memory_space<vmem>>, vector<32x128xf32>
    tpu.vector_store %arg16[%c32_50, %c0_51], %283 {strides = array<i32>} : memref<128x128xf32, #tpu.memory_space<vmem>>, vector<32x128xf32>,
    %c80 = arith.constant 80 : index
    %c0_52 = arith.constant 0 : index
    %285 = vector.load %arg15[%c80, %c0_52] : memref<144x128xf32, #tpu.memory_space<vmem>>, vector<32x128xf32>
    %286 = vector.shape_cast %98 : vector<128xf32> to vector<1x128xf32>
    %287 = vector.broadcast %286 : vector<1x128xf32> to vector<32x128xf32>
    %288 = arith.mulf %285, %287 : vector<32x128xf32>
    %c64 = arith.constant 64 : index
    %c0_53 = arith.constant 0 : index
    %289 = vector.load %arg15[%c64, %c0_53] : memref<144x128xf32, #tpu.memory_space<vmem>>, vector<40x128xf32>
    %290 = vector.extract_strided_slice %289 {offsets = [0, 0], sizes = [32, 128], strides = [1, 1]} : vector<40x128xf32> to vector<32x128xf32>
    %291 = vector.shape_cast %66 : vector<128xf32> to vector<1x128xf32>
    %292 = vector.broadcast %291 : vector<1x128xf32> to vector<32x128xf32>
    %293 = arith.mulf %290, %292 : vector<32x128xf32>
    %294 = arith.addf %288, %293 : vector<32x128xf32>
    %295 = vector.extract_strided_slice %289 {offsets = [8, 0], sizes = [32, 128], strides = [1, 1]} : vector<40x128xf32> to vector<32x128xf32>
    %296 = vector.shape_cast %82 : vector<128xf32> to vector<1x128xf32>
    %297 = vector.broadcast %296 : vector<1x128xf32> to vector<32x128xf32>
    %298 = arith.mulf %295, %297 : vector<32x128xf32>
    %299 = arith.addf %294, %298 : vector<32x128xf32>
    %c65 = arith.constant 65 : index
    %c0_54 = arith.constant 0 : index
    %300 = vector.load %arg15[%c65, %c0_54] : memref<144x128xf32, #tpu.memory_space<vmem>>, vector<40x128xf32>
    %301 = vector.extract_strided_slice %300 {offsets = [0, 0], sizes = [32, 128], strides = [1, 1]} : vector<40x128xf32> to vector<32x128xf32>
    %302 = vector.shape_cast %68 : vector<128xf32> to vector<1x128xf32>
    %303 = vector.broadcast %302 : vector<1x128xf32> to vector<32x128xf32>
    %304 = arith.mulf %301, %303 : vector<32x128xf32>
    %305 = arith.addf %299, %304 : vector<32x128xf32>
    %306 = vector.extract_strided_slice %300 {offsets = [8, 0], sizes = [32, 128], strides = [1, 1]} : vector<40x128xf32> to vector<32x128xf32>
    %307 = vector.shape_cast %84 : vector<128xf32> to vector<1x128xf32>
    %308 = vector.broadcast %307 : vector<1x128xf32> to vector<32x128xf32>
    %309 = arith.mulf %306, %308 : vector<32x128xf32>
    %310 = arith.addf %305, %309 : vector<32x128xf32>
    %c66 = arith.constant 66 : index
    %c0_55 = arith.constant 0 : index
    %311 = vector.load %arg15[%c66, %c0_55] : memref<144x128xf32, #tpu.memory_space<vmem>>, vector<40x128xf32>
    %312 = vector.extract_strided_slice %311 {offsets = [0, 0], sizes = [32, 128], strides = [1, 1]} : vector<40x128xf32> to vector<32x128xf32>
    %313 = vector.shape_cast %70 : vector<128xf32> to vector<1x128xf32>
    %314 = vector.broadcast %313 : vector<1x128xf32> to vector<32x128xf32>
    %315 = arith.mulf %312, %314 : vector<32x128xf32>
    %316 = arith.addf %310, %315 : vector<32x128xf32>
    %317 = vector.extract_strided_slice %311 {offsets = [8, 0], sizes = [32, 128], strides = [1, 1]} : vector<40x128xf32> to vector<32x128xf32>
    %318 = vector.shape_cast %86 : vector<128xf32> to vector<1x128xf32>
    %319 = vector.broadcast %318 : vector<1x128xf32> to vector<32x128xf32>
    %320 = arith.mulf %317, %319 : vector<32x128xf32>
    %321 = arith.addf %316, %320 : vector<32x128xf32>
    %c67 = arith.constant 67 : index
    %c0_56 = arith.constant 0 : index
    %322 = vector.load %arg15[%c67, %c0_56] : memref<144x128xf32, #tpu.memory_space<vmem>>, vector<40x128xf32>
    %323 = vector.extract_strided_slice %322 {offsets = [0, 0], sizes = [32, 128], strides = [1, 1]} : vector<40x128xf32> to vector<32x128xf32>
    %324 = vector.shape_cast %72 : vector<128xf32> to vector<1x128xf32>
    %325 = vector.broadcast %324 : vector<1x128xf32> to vector<32x128xf32>
    %326 = arith.mulf %323, %325 : vector<32x128xf32>
    %327 = arith.addf %321, %326 : vector<32x128xf32>
    %328 = vector.extract_strided_slice %322 {offsets = [8, 0], sizes = [32, 128], strides = [1, 1]} : vector<40x128xf32> to vector<32x128xf32>
    %329 = vector.shape_cast %88 : vector<128xf32> to vector<1x128xf32>
    %330 = vector.broadcast %329 : vector<1x128xf32> to vector<32x128xf32>
    %331 = arith.mulf %328, %330 : vector<32x128xf32>
    %332 = arith.addf %327, %331 : vector<32x128xf32>
    %c68 = arith.constant 68 : index
    %c0_57 = arith.constant 0 : index
    %333 = vector.load %arg15[%c68, %c0_57] : memref<144x128xf32, #tpu.memory_space<vmem>>, vector<40x128xf32>
    %334 = vector.extract_strided_slice %333 {offsets = [0, 0], sizes = [32, 128], strides = [1, 1]} : vector<40x128xf32> to vector<32x128xf32>
    %335 = vector.shape_cast %74 : vector<128xf32> to vector<1x128xf32>
    %336 = vector.broadcast %335 : vector<1x128xf32> to vector<32x128xf32>
    %337 = arith.mulf %334, %336 : vector<32x128xf32>
    %338 = arith.addf %332, %337 : vector<32x128xf32>
    %339 = vector.extract_strided_slice %333 {offsets = [8, 0], sizes = [32, 128], strides = [1, 1]} : vector<40x128xf32> to vector<32x128xf32>
    %340 = vector.shape_cast %90 : vector<128xf32> to vector<1x128xf32>
    %341 = vector.broadcast %340 : vector<1x128xf32> to vector<32x128xf32>
    %342 = arith.mulf %339, %341 : vector<32x128xf32>
    %343 = arith.addf %338, %342 : vector<32x128xf32>
    %c69 = arith.constant 69 : index
    %c0_58 = arith.constant 0 : index
    %344 = vector.load %arg15[%c69, %c0_58] : memref<144x128xf32, #tpu.memory_space<vmem>>, vector<40x128xf32>
    %345 = vector.extract_strided_slice %344 {offsets = [0, 0], sizes = [32, 128], strides = [1, 1]} : vector<40x128xf32> to vector<32x128xf32>
    %346 = vector.shape_cast %76 : vector<128xf32> to vector<1x128xf32>
    %347 = vector.broadcast %346 : vector<1x128xf32> to vector<32x128xf32>
    %348 = arith.mulf %345, %347 : vector<32x128xf32>
    %349 = arith.addf %343, %348 : vector<32x128xf32>
    %350 = vector.extract_strided_slice %344 {offsets = [8, 0], sizes = [32, 128], strides = [1, 1]} : vector<40x128xf32> to vector<32x128xf32>
    %351 = vector.shape_cast %92 : vector<128xf32> to vector<1x128xf32>
    %352 = vector.broadcast %351 : vector<1x128xf32> to vector<32x128xf32>
    %353 = arith.mulf %350, %352 : vector<32x128xf32>
    %354 = arith.addf %349, %353 : vector<32x128xf32>
    %c70 = arith.constant 70 : index
    %c0_59 = arith.constant 0 : index
    %355 = vector.load %arg15[%c70, %c0_59] : memref<144x128xf32, #tpu.memory_space<vmem>>, vector<40x128xf32>
    %356 = vector.extract_strided_slice %355 {offsets = [0, 0], sizes = [32, 128], strides = [1, 1]} : vector<40x128xf32> to vector<32x128xf32>
    %357 = vector.shape_cast %78 : vector<128xf32> to vector<1x128xf32>
    %358 = vector.broadcast %357 : vector<1x128xf32> to vector<32x128xf32>
    %359 = arith.mulf %356, %358 : vector<32x128xf32>
    %360 = arith.addf %354, %359 : vector<32x128xf32>
    %361 = vector.extract_strided_slice %355 {offsets = [8, 0], sizes = [32, 128], strides = [1, 1]} : vector<40x128xf32> to vector<32x128xf32>
    %362 = vector.shape_cast %94 : vector<128xf32> to vector<1x128xf32>
    %363 = vector.broadcast %362 : vector<1x128xf32> to vector<32x128xf32>
    %364 = arith.mulf %361, %363 : vector<32x128xf32>
    %365 = arith.addf %360, %364 : vector<32x128xf32>
    %c71 = arith.constant 71 : index
    %c0_60 = arith.constant 0 : index
    %366 = vector.load %arg15[%c71, %c0_60] : memref<144x128xf32, #tpu.memory_space<vmem>>, vector<40x128xf32>
    %367 = vector.extract_strided_slice %366 {offsets = [0, 0], sizes = [32, 128], strides = [1, 1]} : vector<40x128xf32> to vector<32x128xf32>
    %368 = vector.shape_cast %80 : vector<128xf32> to vector<1x128xf32>
    %369 = vector.broadcast %368 : vector<1x128xf32> to vector<32x128xf32>
    %370 = arith.mulf %367, %369 : vector<32x128xf32>
    %371 = arith.addf %365, %370 : vector<32x128xf32>
    %372 = vector.extract_strided_slice %366 {offsets = [8, 0], sizes = [32, 128], strides = [1, 1]} : vector<40x128xf32> to vector<32x128xf32>
    %373 = vector.shape_cast %96 : vector<128xf32> to vector<1x128xf32>
    %374 = vector.broadcast %373 : vector<1x128xf32> to vector<32x128xf32>
    %375 = arith.mulf %372, %374 : vector<32x128xf32>
    %376 = arith.addf %371, %375 : vector<32x128xf32>
    %c64_61 = arith.constant 64 : index
    %c0_62 = arith.constant 0 : index
    %377 = vector.load %arg16[%c64_61, %c0_62] : memref<128x128xf32, #tpu.memory_space<vmem>>, vector<32x128xf32>
    tpu.vector_store %arg16[%c64_61, %c0_62], %376 {strides = array<i32>} : memref<128x128xf32, #tpu.memory_space<vmem>>, vector<32x128xf32>,
    %c112 = arith.constant 112 : index
    %c0_63 = arith.constant 0 : index
    %378 = vector.load %arg15[%c112, %c0_63] : memref<144x128xf32, #tpu.memory_space<vmem>>, vector<32x128xf32>
    %379 = vector.shape_cast %98 : vector<128xf32> to vector<1x128xf32>
    %380 = vector.broadcast %379 : vector<1x128xf32> to vector<32x128xf32>
    %381 = arith.mulf %378, %380 : vector<32x128xf32>
    %c96 = arith.constant 96 : index
    %c0_64 = arith.constant 0 : index
    %382 = vector.load %arg15[%c96, %c0_64] : memref<144x128xf32, #tpu.memory_space<vmem>>, vector<40x128xf32>
    %383 = vector.extract_strided_slice %382 {offsets = [0, 0], sizes = [32, 128], strides = [1, 1]} : vector<40x128xf32> to vector<32x128xf32>
    %384 = vector.shape_cast %66 : vector<128xf32> to vector<1x128xf32>
    %385 = vector.broadcast %384 : vector<1x128xf32> to vector<32x128xf32>
    %386 = arith.mulf %383, %385 : vector<32x128xf32>
    %387 = arith.addf %381, %386 : vector<32x128xf32>
    %388 = vector.extract_strided_slice %382 {offsets = [8, 0], sizes = [32, 128], strides = [1, 1]} : vector<40x128xf32> to vector<32x128xf32>
    %389 = vector.shape_cast %82 : vector<128xf32> to vector<1x128xf32>
    %390 = vector.broadcast %389 : vector<1x128xf32> to vector<32x128xf32>
    %391 = arith.mulf %388, %390 : vector<32x128xf32>
    %392 = arith.addf %387, %391 : vector<32x128xf32>
    %c97 = arith.constant 97 : index
    %c0_65 = arith.constant 0 : index
    %393 = vector.load %arg15[%c97, %c0_65] : memref<144x128xf32, #tpu.memory_space<vmem>>, vector<40x128xf32>
    %394 = vector.extract_strided_slice %393 {offsets = [0, 0], sizes = [32, 128], strides = [1, 1]} : vector<40x128xf32> to vector<32x128xf32>
    %395 = vector.shape_cast %68 : vector<128xf32> to vector<1x128xf32>
    %396 = vector.broadcast %395 : vector<1x128xf32> to vector<32x128xf32>
    %397 = arith.mulf %394, %396 : vector<32x128xf32>
    %398 = arith.addf %392, %397 : vector<32x128xf32>
    %399 = vector.extract_strided_slice %393 {offsets = [8, 0], sizes = [32, 128], strides = [1, 1]} : vector<40x128xf32> to vector<32x128xf32>
    %400 = vector.shape_cast %84 : vector<128xf32> to vector<1x128xf32>
    %401 = vector.broadcast %400 : vector<1x128xf32> to vector<32x128xf32>
    %402 = arith.mulf %399, %401 : vector<32x128xf32>
    %403 = arith.addf %398, %402 : vector<32x128xf32>
    %c98 = arith.constant 98 : index
    %c0_66 = arith.constant 0 : index
    %404 = vector.load %arg15[%c98, %c0_66] : memref<144x128xf32, #tpu.memory_space<vmem>>, vector<40x128xf32>
    %405 = vector.extract_strided_slice %404 {offsets = [0, 0], sizes = [32, 128], strides = [1, 1]} : vector<40x128xf32> to vector<32x128xf32>
    %406 = vector.shape_cast %70 : vector<128xf32> to vector<1x128xf32>
    %407 = vector.broadcast %406 : vector<1x128xf32> to vector<32x128xf32>
    %408 = arith.mulf %405, %407 : vector<32x128xf32>
    %409 = arith.addf %403, %408 : vector<32x128xf32>
    %410 = vector.extract_strided_slice %404 {offsets = [8, 0], sizes = [32, 128], strides = [1, 1]} : vector<40x128xf32> to vector<32x128xf32>
    %411 = vector.shape_cast %86 : vector<128xf32> to vector<1x128xf32>
    %412 = vector.broadcast %411 : vector<1x128xf32> to vector<32x128xf32>
    %413 = arith.mulf %410, %412 : vector<32x128xf32>
    %414 = arith.addf %409, %413 : vector<32x128xf32>
    %c99 = arith.constant 99 : index
    %c0_67 = arith.constant 0 : index
    %415 = vector.load %arg15[%c99, %c0_67] : memref<144x128xf32, #tpu.memory_space<vmem>>, vector<40x128xf32>
    %416 = vector.extract_strided_slice %415 {offsets = [0, 0], sizes = [32, 128], strides = [1, 1]} : vector<40x128xf32> to vector<32x128xf32>
    %417 = vector.shape_cast %72 : vector<128xf32> to vector<1x128xf32>
    %418 = vector.broadcast %417 : vector<1x128xf32> to vector<32x128xf32>
    %419 = arith.mulf %416, %418 : vector<32x128xf32>
    %420 = arith.addf %414, %419 : vector<32x128xf32>
    %421 = vector.extract_strided_slice %415 {offsets = [8, 0], sizes = [32, 128], strides = [1, 1]} : vector<40x128xf32> to vector<32x128xf32>
    %422 = vector.shape_cast %88 : vector<128xf32> to vector<1x128xf32>
    %423 = vector.broadcast %422 : vector<1x128xf32> to vector<32x128xf32>
    %424 = arith.mulf %421, %423 : vector<32x128xf32>
    %425 = arith.addf %420, %424 : vector<32x128xf32>
    %c100 = arith.constant 100 : index
    %c0_68 = arith.constant 0 : index
    %426 = vector.load %arg15[%c100, %c0_68] : memref<144x128xf32, #tpu.memory_space<vmem>>, vector<40x128xf32>
    %427 = vector.extract_strided_slice %426 {offsets = [0, 0], sizes = [32, 128], strides = [1, 1]} : vector<40x128xf32> to vector<32x128xf32>
    %428 = vector.shape_cast %74 : vector<128xf32> to vector<1x128xf32>
    %429 = vector.broadcast %428 : vector<1x128xf32> to vector<32x128xf32>
    %430 = arith.mulf %427, %429 : vector<32x128xf32>
    %431 = arith.addf %425, %430 : vector<32x128xf32>
    %432 = vector.extract_strided_slice %426 {offsets = [8, 0], sizes = [32, 128], strides = [1, 1]} : vector<40x128xf32> to vector<32x128xf32>
    %433 = vector.shape_cast %90 : vector<128xf32> to vector<1x128xf32>
    %434 = vector.broadcast %433 : vector<1x128xf32> to vector<32x128xf32>
    %435 = arith.mulf %432, %434 : vector<32x128xf32>
    %436 = arith.addf %431, %435 : vector<32x128xf32>
    %c101 = arith.constant 101 : index
    %c0_69 = arith.constant 0 : index
    %437 = vector.load %arg15[%c101, %c0_69] : memref<144x128xf32, #tpu.memory_space<vmem>>, vector<40x128xf32>
    %438 = vector.extract_strided_slice %437 {offsets = [0, 0], sizes = [32, 128], strides = [1, 1]} : vector<40x128xf32> to vector<32x128xf32>
    %439 = vector.shape_cast %76 : vector<128xf32> to vector<1x128xf32>
    %440 = vector.broadcast %439 : vector<1x128xf32> to vector<32x128xf32>
    %441 = arith.mulf %438, %440 : vector<32x128xf32>
    %442 = arith.addf %436, %441 : vector<32x128xf32>
    %443 = vector.extract_strided_slice %437 {offsets = [8, 0], sizes = [32, 128], strides = [1, 1]} : vector<40x128xf32> to vector<32x128xf32>
    %444 = vector.shape_cast %92 : vector<128xf32> to vector<1x128xf32>
    %445 = vector.broadcast %444 : vector<1x128xf32> to vector<32x128xf32>
    %446 = arith.mulf %443, %445 : vector<32x128xf32>
    %447 = arith.addf %442, %446 : vector<32x128xf32>
    %c102 = arith.constant 102 : index
    %c0_70 = arith.constant 0 : index
    %448 = vector.load %arg15[%c102, %c0_70] : memref<144x128xf32, #tpu.memory_space<vmem>>, vector<40x128xf32>
    %449 = vector.extract_strided_slice %448 {offsets = [0, 0], sizes = [32, 128], strides = [1, 1]} : vector<40x128xf32> to vector<32x128xf32>
    %450 = vector.shape_cast %78 : vector<128xf32> to vector<1x128xf32>
    %451 = vector.broadcast %450 : vector<1x128xf32> to vector<32x128xf32>
    %452 = arith.mulf %449, %451 : vector<32x128xf32>
    %453 = arith.addf %447, %452 : vector<32x128xf32>
    %454 = vector.extract_strided_slice %448 {offsets = [8, 0], sizes = [32, 128], strides = [1, 1]} : vector<40x128xf32> to vector<32x128xf32>
    %455 = vector.shape_cast %94 : vector<128xf32> to vector<1x128xf32>
    %456 = vector.broadcast %455 : vector<1x128xf32> to vector<32x128xf32>
    %457 = arith.mulf %454, %456 : vector<32x128xf32>
    %458 = arith.addf %453, %457 : vector<32x128xf32>
    %c103 = arith.constant 103 : index
    %c0_71 = arith.constant 0 : index
    %459 = vector.load %arg15[%c103, %c0_71] : memref<144x128xf32, #tpu.memory_space<vmem>>, vector<40x128xf32>
    %460 = vector.extract_strided_slice %459 {offsets = [0, 0], sizes = [32, 128], strides = [1, 1]} : vector<40x128xf32> to vector<32x128xf32>
    %461 = vector.shape_cast %80 : vector<128xf32> to vector<1x128xf32>
    %462 = vector.broadcast %461 : vector<1x128xf32> to vector<32x128xf32>
    %463 = arith.mulf %460, %462 : vector<32x128xf32>
    %464 = arith.addf %458, %463 : vector<32x128xf32>
    %465 = vector.extract_strided_slice %459 {offsets = [8, 0], sizes = [32, 128], strides = [1, 1]} : vector<40x128xf32> to vector<32x128xf32>
    %466 = vector.shape_cast %96 : vector<128xf32> to vector<1x128xf32>
    %467 = vector.broadcast %466 : vector<1x128xf32> to vector<32x128xf32>
    %468 = arith.mulf %465, %467 : vector<32x128xf32>
    %469 = arith.addf %464, %468 : vector<32x128xf32>
    %c96_72 = arith.constant 96 : index
    %c0_73 = arith.constant 0 : index
    %470 = vector.load %arg16[%c96_72, %c0_73] : memref<128x128xf32, #tpu.memory_space<vmem>>, vector<32x128xf32>
    tpu.vector_store %arg16[%c96_72, %c0_73], %469 {strides = array<i32>} : memref<128x128xf32, #tpu.memory_space<vmem>>, vector<32x128xf32>,
    %c0_74 = arith.constant 0 : index
    %c0_75 = arith.constant 0 : index
    %471 = vector.load %arg16[%c0_74, %c0_75] : memref<128x128xf32, #tpu.memory_space<vmem>>, vector<128x128xf32>
    %c0_76 = arith.constant 0 : index
    %c0_77 = arith.constant 0 : index
    %472 = vector.load %arg11[%c0_76, %c0_77] : memref<1x128xf32, #tpu.memory_space<vmem>>, vector<1x128xf32>
    %473 = vector.shape_cast %472 : vector<1x128xf32> to vector<128xf32>
    %c0_78 = arith.constant 0 : index
    %c0_79 = arith.constant 0 : index
    %474 = vector.load %arg12[%c0_78, %c0_79] : memref<1x128xf32, #tpu.memory_space<vmem>>, vector<1x128xf32>
    %475 = vector.shape_cast %474 : vector<1x128xf32> to vector<128xf32>
    %cst_80 = arith.constant dense<0.000000e+00> : vector<128xf32>
    %476 = vector.multi_reduction <add>, %471, %cst_80 [1] : vector<128x128xf32> to vector<128xf32>
    %477 = vector.shape_cast %476 : vector<128xf32> to vector<128x1xf32>
    %cst_81 = arith.constant 1.280000e+02 : f32
    %478 = vector.broadcast %cst_81 : f32 to vector<128x1xf32>
    %479 = arith.divf %477, %478 : vector<128x1xf32>
    %480 = vector.broadcast %479 : vector<128x1xf32> to vector<128x128xf32>
    %481 = arith.subf %471, %480 : vector<128x128xf32>
    %482 = arith.mulf %481, %481 : vector<128x128xf32>
    %cst_82 = arith.constant dense<0.000000e+00> : vector<128xf32>
    %483 = vector.multi_reduction <add>, %482, %cst_82 [1] : vector<128x128xf32> to vector<128xf32>
    %484 = vector.shape_cast %483 : vector<128xf32> to vector<128x1xf32>
    %cst_83 = arith.constant 1.280000e+02 : f32
    %485 = vector.broadcast %cst_83 : f32 to vector<128x1xf32>
    %486 = arith.divf %484, %485 : vector<128x1xf32>
    %cst_84 = arith.constant 9.99999974E-6 : f32
    %487 = vector.broadcast %cst_84 : f32 to vector<128x1xf32>
    %488 = arith.addf %486, %487 : vector<128x1xf32>
    %489 = math.rsqrt %488 : vector<128x1xf32>
    %490 = vector.broadcast %489 : vector<128x1xf32> to vector<128x128xf32>
    %491 = arith.mulf %481, %490 : vector<128x128xf32>
    %492 = vector.shape_cast %473 : vector<128xf32> to vector<1x128xf32>
    %493 = vector.broadcast %492 : vector<1x128xf32> to vector<128x128xf32>
    %494 = arith.mulf %491, %493 : vector<128x128xf32>
    %495 = vector.shape_cast %475 : vector<128xf32> to vector<1x128xf32>
    %496 = vector.broadcast %495 : vector<1x128xf32> to vector<128x128xf32>
    %497 = arith.addf %494, %496 : vector<128x128xf32>
    %498 = arith.negf %497 : vector<128x128xf32>
    %499 = math.exp %498 : vector<128x128xf32>
    %cst_85 = arith.constant 1.000000e+00 : f32
    %500 = vector.broadcast %cst_85 : f32 to vector<128x128xf32>
    %501 = arith.addf %500, %499 : vector<128x128xf32>
    %502 = arith.divf %500, %501 : vector<128x128xf32>
    %503 = arith.mulf %497, %502 : vector<128x128xf32>
    %504 = arith.truncf %503 : vector<128x128xf32> to vector<128x128xbf16>
    %c0_86 = arith.constant 0 : index
    %c0_87 = arith.constant 0 : index
    %505 = vector.load %arg13[%c0_86, %c0_87] : memref<128x128xbf16, #tpu.memory_space<vmem>>, vector<128x128xbf16>
    %cst_88 = arith.constant dense<0.000000e+00> : vector<128x128xf32>
    %506 = tpu.matmul %504, %505, %cst_88 {dimension_numbers = #tpu.dot_dimension_numbers<[1], [0], [0], [1], [0, 0, 1, 1], [], []>} : vector<128x128xbf16>, vector<128x128xbf16>, vector<128x128xf32> -> vector<128x128xf32>
    %c0_89 = arith.constant 0 : index
    %c0_90 = arith.constant 0 : index
    %c0_91 = arith.constant 0 : index
    %507 = vector.load %arg14[%c0_89, %c0_90, %c0_91] : memref<1x128x128xf32, #tpu.memory_space<vmem>>, vector<1x128x128xf32>
    %508 = vector.shape_cast %507 : vector<1x128x128xf32> to vector<128x128xf32>
    %509 = vector.shape_cast %506 : vector<128x128xf32> to vector<1x128x128xf32>
    tpu.vector_store %arg14[%c0_89, %c0_90, %c0_91], %509 {strides = array<i32>} : memref<1x128x128xf32, #tpu.memory_space<vmem>>, vector<1x128x128xf32>,
    return
  }
  func.func @transform_0(%arg0: i32, %arg1: i32) -> (i32, i32, i32) {
    %c0_i32 = arith.constant 0 : i32
    %c0_i32_0 = arith.constant 0 : i32
    return %arg0, %arg1, %c0_i32 : i32, i32, i32
  }
  func.func @transform_1(%arg0: i32, %arg1: i32) -> (i32, i32, i32) {
    %c16_i32 = arith.constant 16 : i32
    %0 = arith.muli %arg1, %c16_i32 : i32
    %c1_i32 = arith.constant 1 : i32
    %1 = arith.subi %0, %c1_i32 : i32
    %c0_i32 = arith.constant 0 : i32
    %2 = arith.maxsi %1, %c0_i32 : i32
    %c0_i32_0 = arith.constant 0 : i32
    %c0_i32_1 = arith.constant 0 : i32
    return %arg0, %2, %c0_i32_0 : i32, i32, i32
  }
  func.func @transform_2(%arg0: i32, %arg1: i32) -> (i32, i32, i32) {
    %c1_i32 = arith.constant 1 : i32
    %0 = arith.addi %arg1, %c1_i32 : i32
    %c16_i32 = arith.constant 16 : i32
    %1 = arith.muli %0, %c16_i32 : i32
    %c37_i32 = arith.constant 37 : i32
    %2 = arith.minsi %1, %c37_i32 : i32
    %c0_i32 = arith.constant 0 : i32
    %c0_i32_0 = arith.constant 0 : i32
    return %arg0, %2, %c0_i32 : i32, i32, i32
  }
  func.func @transform_3(%arg0: i32, %arg1: i32) -> (i32, i32) {
    %c0_i32 = arith.constant 0 : i32
    %c0_i32_0 = arith.constant 0 : i32
    %c0_i32_1 = arith.constant 0 : i32
    return %c0_i32, %c0_i32_0 : i32, i32
  }
  func.func @transform_4(%arg0: i32, %arg1: i32) -> (i32, i32) {
    %c0_i32 = arith.constant 0 : i32
    %c0_i32_0 = arith.constant 0 : i32
    %c0_i32_1 = arith.constant 0 : i32
    return %c0_i32, %c0_i32_0 : i32, i32
  }
  func.func @transform_5(%arg0: i32, %arg1: i32) -> (i32, i32) {
    %c0_i32 = arith.constant 0 : i32
    %c0_i32_0 = arith.constant 0 : i32
    %c0_i32_1 = arith.constant 0 : i32
    return %c0_i32, %c0_i32_0 : i32, i32
  }
  func.func @transform_6(%arg0: i32, %arg1: i32) -> (i32, i32) {
    %c0_i32 = arith.constant 0 : i32
    %c0_i32_0 = arith.constant 0 : i32
    %c0_i32_1 = arith.constant 0 : i32
    return %c0_i32, %c0_i32_0 : i32, i32
  }
  func.func @transform_7(%arg0: i32, %arg1: i32) -> (i32, i32) {
    %c0_i32 = arith.constant 0 : i32
    %c0_i32_0 = arith.constant 0 : i32
    %c0_i32_1 = arith.constant 0 : i32
    return %c0_i32, %c0_i32_0 : i32, i32
  }
  func.func @transform_8(%arg0: i32, %arg1: i32) -> (i32, i32) {
    %c0_i32 = arith.constant 0 : i32
    %c0_i32_0 = arith.constant 0 : i32
    %c0_i32_1 = arith.constant 0 : i32
    return %c0_i32, %c0_i32_0 : i32, i32
  }
  func.func @transform_9(%arg0: i32, %arg1: i32) -> (i32, i32) {
    %c0_i32 = arith.constant 0 : i32
    %c0_i32_0 = arith.constant 0 : i32
    %c0_i32_1 = arith.constant 0 : i32
    return %c0_i32, %c0_i32_0 : i32, i32
  }
  func.func @transform_10(%arg0: i32, %arg1: i32) -> (i32, i32) {
    %c0_i32 = arith.constant 0 : i32
    %c0_i32_0 = arith.constant 0 : i32
    %c0_i32_1 = arith.constant 0 : i32
    return %c0_i32, %c0_i32_0 : i32, i32
  }
  func.func @transform_11(%arg0: i32, %arg1: i32) -> (i32, i32) {
    %c0_i32 = arith.constant 0 : i32
    %c0_i32_0 = arith.constant 0 : i32
    %c0_i32_1 = arith.constant 0 : i32
    return %c0_i32, %c0_i32_0 : i32, i32
  }
  func.func @transform_12(%arg0: i32, %arg1: i32) -> (i32, i32, i32) {
    %c0_i32 = arith.constant 0 : i32
    %c0_i32_0 = arith.constant 0 : i32
    return %arg0, %arg1, %c0_i32 : i32, i32, i32
  }
}

</mosaic_0001>

<llo_original>
// kernel: tpu_custom_call.1
$region0: #{tpu_custom_call.1}
  #allocation0 [shape = 'u32[]', space=smem, size = 0x4, offset = 0x4, fixed_abs, tag = 'smem constant byte address 0x4 - core index']
  #allocation1 [shape = 'u32[144,128]{1,0:T(1,128)}', space=vmem, size = 0x12000, scoped, tag = 'internal scratch']
  #allocation2 [shape = 'f32[144,128]{1,0:T(8,128)}', space=vmem, size = 0x12000, scoped, tag = 'scratch operand']
  #allocation3 [shape = 'f32[128,128]{1,0:T(8,128)}', space=vmem, size = 0x10000, scoped, tag = 'scratch operand']
  %s0 = inlined_call_operand.vmem [shape: f32[2,300,128], index: 0, kind: input, shape index: {}]
  %s1 = inlined_call_operand.vmem [shape: f32[2,300,128], index: 1, kind: input, shape index: {}]
  %s2 = inlined_call_operand.vmem [shape: f32[2,300,128], index: 2, kind: input, shape index: {}]
  %s3 = inlined_call_operand.vmem [shape: f32[1,128], index: 3, kind: input, shape index: {}]
  %s4 = inlined_call_operand.vmem [shape: f32[1,128], index: 4, kind: input, shape index: {}]
  %s5 = inlined_call_operand.vmem [shape: bf16[128,256], index: 5, kind: input, shape index: {}]
  %s6 = inlined_call_operand.vmem [shape: f32[1,128], index: 6, kind: input, shape index: {}]
  %s7 = inlined_call_operand.vmem [shape: f32[1,128], index: 7, kind: input, shape index: {}]
  %s8 = inlined_call_operand.vmem [shape: f32[17,128], index: 8, kind: input, shape index: {}]
  %s9 = inlined_call_operand.vmem [shape: f32[1,128], index: 9, kind: input, shape index: {}]
  %s10 = inlined_call_operand.vmem [shape: f32[1,128], index: 10, kind: input, shape index: {}]
  %s11 = inlined_call_operand.vmem [shape: bf16[128,128], index: 11, kind: input, shape index: {}]
  %s12 = inlined_call_operand.vmem [shape: f32[2,300,128], index: 12, kind: output, shape index: {}]
  %s13 = sld [smem:[#allocation0]]
  $region133: #{tpu_custom_call.1} parent=0
    _
  %s15 = ssub.s32 1, %s13
  %s16 = scalar_select 0, %s15, %s13
  $region1: #{tpu_custom_call.1} parent=0
    #allocation4 [shape = 'u8[131072]{0}', space=vmem, size = 0x20000, scoped, tag = 'output window, operand 0']
    loop: start=0, step=1, limit=8
    $region2: #{tpu_custom_call.1} parent=1 // loop_pre_header
      _
    $region3: #{tpu_custom_call.1} parent=1 // loop_header
      %s18 = sphi 0, %s22
      %p19 = scmp.ge.s32.totalorder %s18, 8
      %s25 = sphi 0, %s37
      %s26 = sphi 0, %s33
      %s27 = sphi 0, %s25
      %s28 = sphi 0, %s26
      %s29 = sphi 0, %s27
      %s30 = sphi 0, %s28
      %s42 = sphi 0, %s44
      %s45 = sphi 0, %s42
      %s46 = sphi 0, %s45
      %s62 = sphi 0, %s46
      %s78 = sphi 0, %s80
      %s81 = sphi 0, %s78
      %s82 = sphi 0, %s81
      %s98 = sphi 0, %s82
      %s114 = sphi 0, %s116
      %s117 = sphi 0, %s114
      %s118 = sphi 0, %s117
      %s134 = sphi 0, %s118
      %s138 = sphi 0, %s138
      %s140 = sphi 0, %s138
      %s141 = sphi 0, %s140
      %s155 = sphi 0, %s141
      %s159 = sphi 0, %s159
      %s161 = sphi 0, %s159
      %s162 = sphi 0, %s161
      %s176 = sphi 0, %s162
      %s180 = sphi 0, %s180
      %s182 = sphi 0, %s180
      %s183 = sphi 0, %s182
      %s197 = sphi 0, %s183
      %s201 = sphi 0, %s201
      %s203 = sphi 0, %s201
      %s204 = sphi 0, %s203
      %s218 = sphi 0, %s204
      %s222 = sphi 0, %s222
      %s224 = sphi 0, %s222
      %s225 = sphi 0, %s224
      %s239 = sphi 0, %s225
      %s243 = sphi 0, %s243
      %s245 = sphi 0, %s243
      %s246 = sphi 0, %s245
      %s260 = sphi 0, %s246
      %s264 = sphi 0, %s264
      %s266 = sphi 0, %s264
      %s267 = sphi 0, %s266
      %s281 = sphi 0, %s267
      %s285 = sphi 0, %s285
      %s287 = sphi 0, %s285
      %s288 = sphi 0, %s287
      %s302 = sphi 0, %s288
      %s306 = sphi 0, %s306
      %s308 = sphi 0, %s306
      %s309 = sphi 0, %s308
      %s323 = sphi 0, %s309
      %s331 = sphi 0, %s333
      %s334 = sphi 0, %s331
      %s335 = sphi 0, %s334
      %s351 = sphi 0, %s335
    $region4: #{tpu_custom_call.1} parent=1 // loop_header_branch
      %21 = sbr.rel (%p19) target = $region8
    $region5: #{tpu_custom_call.1} parent=1 // loop_body
      %s23 = ssub.s32 %s18, 1
      %s24 = ssub.s32 %s18, 2
      %s31 = sadd.s32 1, %s26
      %p32 = scmp.ge.s32.totalorder %s31, 3
      %s33 = scalar_select %p32, 0, %s31
      %s34 = sadd.s32 1, %s25
      %s35 = scalar_select %p32, %s34, %s25
      %p36 = scmp.ge.s32.totalorder %s35, 2
      %s37 = scalar_select %p36, 0, %s35
      %s38 = ssub.s32 %s25, %s37
      %s39 = ssub.s32 %s26, %s33
      %s40 = sor.u32 %s38, %s39
      %p41 = scmp.eq.s32.totalorder %s40, 0
      %s43 = sadd.s32 %s42, 1
      %s44 = scalar_select %p41, %s42, %s43
      %p47 = pneg %p41
      %p48 = scmp.eq.s32.totalorder %s18, 5
      %p49 = por %p47, %p48
      %p50 = scmp.ne.s32.totalorder %s42, %s45
      %p51 = scmp.eq.s32.totalorder %s18, 0
      %p52 = por %p50, %p51
      %p53 = scmp.ne.s32.totalorder %s42, %s45
      %p54 = scmp.eq.s32.totalorder %s23, 5
      %p55 = por %p53, %p54
      %p56 = scmp.ne.s32.totalorder %s45, %s46
      %p57 = scmp.eq.s32.totalorder %s23, 0
      %p58 = por %p56, %p57
      %p59 = scmp.ne.s32.totalorder %s45, %s46
      %p60 = scmp.eq.s32.totalorder %s24, 5
      %p61 = por %p59, %p60
      %p63 = scmp.ne.s32.totalorder %s46, %s62
      %p64 = scmp.eq.s32.totalorder %s24, 0
      %p65 = por %p63, %p64
      %s66 = smul.u32 %s26, 16
      %s67 = ssub.s32 %s66, 1
      %p68 = scmp.gt.s32.totalorder %s67, 0
      %s69 = scalar_select %p68, %s67, 0
      %s70 = smul.u32 %s33, 16
      %s71 = ssub.s32 %s70, 1
      %p72 = scmp.gt.s32.totalorder %s71, 0
      %s73 = scalar_select %p72, %s71, 0
      %s74 = ssub.s32 %s25, %s37
      %s75 = ssub.s32 %s69, %s73
      %s76 = sor.u32 %s74, %s75
      %p77 = scmp.eq.s32.totalorder %s76, 0
      %s79 = sadd.s32 %s78, 1
      %s80 = scalar_select %p77, %s78, %s79
      %p83 = pneg %p77
      %p84 = scmp.eq.s32.totalorder %s18, 5
      %p85 = por %p83, %p84
      %p86 = scmp.ne.s32.totalorder %s78, %s81
      %p87 = scmp.eq.s32.totalorder %s18, 0
      %p88 = por %p86, %p87
      %p89 = scmp.ne.s32.totalorder %s78, %s81
      %p90 = scmp.eq.s32.totalorder %s23, 5
      %p91 = por %p89, %p90
      %p92 = scmp.ne.s32.totalorder %s81, %s82
      %p93 = scmp.eq.s32.totalorder %s23, 0
      %p94 = por %p92, %p93
      %p95 = scmp.ne.s32.totalorder %s81, %s82
      %p96 = scmp.eq.s32.totalorder %s24, 5
      %p97 = por %p95, %p96
      %p99 = scmp.ne.s32.totalorder %s82, %s98
      %p100 = scmp.eq.s32.totalorder %s24, 0
      %p101 = por %p99, %p100
      %s102 = sadd.s32 %s26, 1
      %s103 = smul.u32 %s102, 16
      %p104 = scmp.lt.s32.totalorder %s103, 37
      %s105 = scalar_select %p104, %s103, 37
      %s106 = sadd.s32 %s33, 1
      %s107 = smul.u32 %s106, 16
      %p108 = scmp.lt.s32.totalorder %s107, 37
      %s109 = scalar_select %p108, %s107, 37
      %s110 = ssub.s32 %s25, %s37
      %s111 = ssub.s32 %s105, %s109
      %s112 = sor.u32 %s110, %s111
      %p113 = scmp.eq.s32.totalorder %s112, 0
      %s115 = sadd.s32 %s114, 1
      %s116 = scalar_select %p113, %s114, %s115
      %p119 = pneg %p113
      %p120 = scmp.eq.s32.totalorder %s18, 5
      %p121 = por %p119, %p120
      %p122 = scmp.ne.s32.totalorder %s114, %s117
      %p123 = scmp.eq.s32.totalorder %s18, 0
      %p124 = por %p122, %p123
      %p125 = scmp.ne.s32.totalorder %s114, %s117
      %p126 = scmp.eq.s32.totalorder %s23, 5
      %p127 = por %p125, %p126
      %p128 = scmp.ne.s32.totalorder %s117, %s118
      %p129 = scmp.eq.s32.totalorder %s23, 0
      %p130 = por %p128, %p129
      %p131 = scmp.ne.s32.totalorder %s117, %s118
      %p132 = scmp.eq.s32.totalorder %s24, 5
      %p133 = por %p131, %p132
      %p135 = scmp.ne.s32.totalorder %s118, %s134
      %p136 = scmp.eq.s32.totalorder %s24, 0
      %p137 = por %p135, %p136
      %s139 = sadd.s32 %s138, 1
      %p142 = scmp.eq.s32.totalorder %s18, 5
      %p143 = scmp.ne.s32.totalorder %s138, %s140
      %p144 = scmp.eq.s32.totalorder %s18, 0
      %p145 = por %p143, %p144
      %p146 = scmp.ne.s32.totalorder %s138, %s140
      %p147 = scmp.eq.s32.totalorder %s23, 5
      %p148 = por %p146, %p147
      %p149 = scmp.ne.s32.totalorder %s140, %s141
      %p150 = scmp.eq.s32.totalorder %s23, 0
      %p151 = por %p149, %p150
      %p152 = scmp.ne.s32.totalorder %s140, %s141
      %p153 = scmp.eq.s32.totalorder %s24, 5
      %p154 = por %p152, %p153
      %p156 = scmp.ne.s32.totalorder %s141, %s155
      %p157 = scmp.eq.s32.totalorder %s24, 0
      %p158 = por %p156, %p157
      %s160 = sadd.s32 %s159, 1
      %p163 = scmp.eq.s32.totalorder %s18, 5
      %p164 = scmp.ne.s32.totalorder %s159, %s161
      %p165 = scmp.eq.s32.totalorder %s18, 0
      %p166 = por %p164, %p165
      %p167 = scmp.ne.s32.totalorder %s159, %s161
      %p168 = scmp.eq.s32.totalorder %s23, 5
      %p169 = por %p167, %p168
      %p170 = scmp.ne.s32.totalorder %s161, %s162
      %p171 = scmp.eq.s32.totalorder %s23, 0
      %p172 = por %p170, %p171
      %p173 = scmp.ne.s32.totalorder %s161, %s162
      %p174 = scmp.eq.s32.totalorder %s24, 5
      %p175 = por %p173, %p174
      %p177 = scmp.ne.s32.totalorder %s162, %s176
      %p178 = scmp.eq.s32.totalorder %s24, 0
      %p179 = por %p177, %p178
      %s181 = sadd.s32 %s180, 1
      %p184 = scmp.eq.s32.totalorder %s18, 5
      %p185 = scmp.ne.s32.totalorder %s180, %s182
      %p186 = scmp.eq.s32.totalorder %s18, 0
      %p187 = por %p185, %p186
      %p188 = scmp.ne.s32.totalorder %s180, %s182
      %p189 = scmp.eq.s32.totalorder %s23, 5
      %p190 = por %p188, %p189
      %p191 = scmp.ne.s32.totalorder %s182, %s183
      %p192 = scmp.eq.s32.totalorder %s23, 0
      %p193 = por %p191, %p192
      %p194 = scmp.ne.s32.totalorder %s182, %s183
      %p195 = scmp.eq.s32.totalorder %s24, 5
      %p196 = por %p194, %p195
      %p198 = scmp.ne.s32.totalorder %s183, %s197
      %p199 = scmp.eq.s32.totalorder %s24, 0
      %p200 = por %p198, %p199
      %s202 = sadd.s32 %s201, 1
      %p205 = scmp.eq.s32.totalorder %s18, 5
      %p206 = scmp.ne.s32.totalorder %s201, %s203
      %p207 = scmp.eq.s32.totalorder %s18, 0
      %p208 = por %p206, %p207
      %p209 = scmp.ne.s32.totalorder %s201, %s203
      %p210 = scmp.eq.s32.totalorder %s23, 5
      %p211 = por %p209, %p210
      %p212 = scmp.ne.s32.totalorder %s203, %s204
      %p213 = scmp.eq.s32.totalorder %s23, 0
      %p214 = por %p212, %p213
      %p215 = scmp.ne.s32.totalorder %s203, %s204
      %p216 = scmp.eq.s32.totalorder %s24, 5
      %p217 = por %p215, %p216
      %p219 = scmp.ne.s32.totalorder %s204, %s218
      %p220 = scmp.eq.s32.totalorder %s24, 0
      %p221 = por %p219, %p220
      %s223 = sadd.s32 %s222, 1
      %p226 = scmp.eq.s32.totalorder %s18, 5
      %p227 = scmp.ne.s32.totalorder %s222, %s224
      %p228 = scmp.eq.s32.totalorder %s18, 0
      %p229 = por %p227, %p228
      %p230 = scmp.ne.s32.totalorder %s222, %s224
      %p231 = scmp.eq.s32.totalorder %s23, 5
      %p232 = por %p230, %p231
      %p233 = scmp.ne.s32.totalorder %s224, %s225
      %p234 = scmp.eq.s32.totalorder %s23, 0
      %p235 = por %p233, %p234
      %p236 = scmp.ne.s32.totalorder %s224, %s225
      %p237 = scmp.eq.s32.totalorder %s24, 5
      %p238 = por %p236, %p237
      %p240 = scmp.ne.s32.totalorder %s225, %s239
      %p241 = scmp.eq.s32.totalorder %s24, 0
      %p242 = por %p240, %p241
      %s244 = sadd.s32 %s243, 1
      %p247 = scmp.eq.s32.totalorder %s18, 5
      %p248 = scmp.ne.s32.totalorder %s243, %s245
      %p249 = scmp.eq.s32.totalorder %s18, 0
      %p250 = por %p248, %p249
      %p251 = scmp.ne.s32.totalorder %s243, %s245
      %p252 = scmp.eq.s32.totalorder %s23, 5
      %p253 = por %p251, %p252
      %p254 = scmp.ne.s32.totalorder %s245, %s246
      %p255 = scmp.eq.s32.totalorder %s23, 0
      %p256 = por %p254, %p255
      %p257 = scmp.ne.s32.totalorder %s245, %s246
      %p258 = scmp.eq.s32.totalorder %s24, 5
      %p259 = por %p257, %p258
      %p261 = scmp.ne.s32.totalorder %s246, %s260
      %p262 = scmp.eq.s32.totalorder %s24, 0
      %p263 = por %p261, %p262
      %s265 = sadd.s32 %s264, 1
      %p268 = scmp.eq.s32.totalorder %s18, 5
      %p269 = scmp.ne.s32.totalorder %s264, %s266
      %p270 = scmp.eq.s32.totalorder %s18, 0
      %p271 = por %p269, %p270
      %p272 = scmp.ne.s32.totalorder %s264, %s266
      %p273 = scmp.eq.s32.totalorder %s23, 5
      %p274 = por %p272, %p273
      %p275 = scmp.ne.s32.totalorder %s266, %s267
      %p276 = scmp.eq.s32.totalorder %s23, 0
      %p277 = por %p275, %p276
      %p278 = scmp.ne.s32.totalorder %s266, %s267
      %p279 = scmp.eq.s32.totalorder %s24, 5
      %p280 = por %p278, %p279
      %p282 = scmp.ne.s32.totalorder %s267, %s281
      %p283 = scmp.eq.s32.totalorder %s24, 0
      %p284 = por %p282, %p283
      %s286 = sadd.s32 %s285, 1
      %p289 = scmp.eq.s32.totalorder %s18, 5
      %p290 = scmp.ne.s32.totalorder %s285, %s287
      %p291 = scmp.eq.s32.totalorder %s18, 0
      %p292 = por %p290, %p291
      %p293 = scmp.ne.s32.totalorder %s285, %s287
      %p294 = scmp.eq.s32.totalorder %s23, 5
      %p295 = por %p293, %p294
      %p296 = scmp.ne.s32.totalorder %s287, %s288
      %p297 = scmp.eq.s32.totalorder %s23, 0
      %p298 = por %p296, %p297
      %p299 = scmp.ne.s32.totalorder %s287, %s288
      %p300 = scmp.eq.s32.totalorder %s24, 5
      %p301 = por %p299, %p300
      %p303 = scmp.ne.s32.totalorder %s288, %s302
      %p304 = scmp.eq.s32.totalorder %s24, 0
      %p305 = por %p303, %p304
      %s307 = sadd.s32 %s306, 1
      %p310 = scmp.eq.s32.totalorder %s18, 5
      %p311 = scmp.ne.s32.totalorder %s306, %s308
      %p312 = scmp.eq.s32.totalorder %s18, 0
      %p313 = por %p311, %p312
      %p314 = scmp.ne.s32.totalorder %s306, %s308
      %p315 = scmp.eq.s32.totalorder %s23, 5
      %p316 = por %p314, %p315
      %p317 = scmp.ne.s32.totalorder %s308, %s309
      %p318 = scmp.eq.s32.totalorder %s23, 0
      %p319 = por %p317, %p318
      %p320 = scmp.ne.s32.totalorder %s308, %s309
      %p321 = scmp.eq.s32.totalorder %s24, 5
      %p322 = por %p320, %p321
      %p324 = scmp.ne.s32.totalorder %s309, %s323
      %p325 = scmp.eq.s32.totalorder %s24, 0
      %p326 = por %p324, %p325
      %s327 = ssub.s32 %s25, %s37
      %s328 = ssub.s32 %s26, %s33
      %s329 = sor.u32 %s327, %s328
      %p330 = scmp.eq.s32.totalorder %s329, 0
      %s332 = sadd.s32 %s331, 1
      %s333 = scalar_select %p330, %s331, %s332
      %p336 = pneg %p330
      %p337 = scmp.eq.s32.totalorder %s18, 5
      %p338 = por %p336, %p337
      %p339 = scmp.ne.s32.totalorder %s331, %s334
      %p340 = scmp.eq.s32.totalorder %s18, 0
      %p341 = por %p339, %p340
      %p342 = scmp.ne.s32.totalorder %s331, %s334
      %p343 = scmp.eq.s32.totalorder %s23, 5
      %p344 = por %p342, %p343
      %p345 = scmp.ne.s32.totalorder %s334, %s335
      %p346 = scmp.eq.s32.totalorder %s23, 0
      %p347 = por %p345, %p346
      %p348 = scmp.ne.s32.totalorder %s334, %s335
      %p349 = scmp.eq.s32.totalorder %s24, 5
      %p350 = por %p348, %p349
      %p352 = scmp.ne.s32.totalorder %s335, %s351
      %p353 = scmp.eq.s32.totalorder %s24, 0
      %p354 = por %p352, %p353
      %p355 = scmp.le.s32.totalorder 1, %s18
      %p356 = scmp.lt.s32.totalorder %s18, 7
      %p357 = pnand %p355, %p356
      %p358 = pneg %p357
      // Predicated region
      $region9: #{tpu_custom_call.1} parent=5 // pred_check
        _
      $region10: #{tpu_custom_call.1} parent=5 // pred_check_branch
        %360 = sbr.rel (%p357) target = $region12
      $region11: #{tpu_custom_call.1} parent=5 // pred_region
        %s361 = ssub.s32 %s18, 1
        // Predicated region
        $region13: #{tpu_custom_call.1} parent=11 // pred_check
          %p362 = pneg %p151
        $region14: #{tpu_custom_call.1} parent=11 // pred_check_branch
          %364 = sbr.rel (%p362) target = $region16
        $region15: #{tpu_custom_call.1} parent=11 // pred_region
          _
        $region16: #{tpu_custom_call.1} parent=11 // pred_fallthru
          _
        // Predicated region
        $region17: #{tpu_custom_call.1} parent=11 // pred_check
          %p365 = pneg %p172
        $region18: #{tpu_custom_call.1} parent=11 // pred_check_branch
          %367 = sbr.rel (%p365) target = $region20
        $region19: #{tpu_custom_call.1} parent=11 // pred_region
          _
        $region20: #{tpu_custom_call.1} parent=11 // pred_fallthru
          _
        // Predicated region
        $region21: #{tpu_custom_call.1} parent=11 // pred_check
          %p368 = pneg %p193
        $region22: #{tpu_custom_call.1} parent=11 // pred_check_branch
          %370 = sbr.rel (%p368) target = $region24
        $region23: #{tpu_custom_call.1} parent=11 // pred_region
          _
        $region24: #{tpu_custom_call.1} parent=11 // pred_fallthru
          _
        // Predicated region
        $region25: #{tpu_custom_call.1} parent=11 // pred_check
          %p371 = pneg %p214
        $region26: #{tpu_custom_call.1} parent=11 // pred_check_branch
          %373 = sbr.rel (%p371) target = $region28
        $region27: #{tpu_custom_call.1} parent=11 // pred_region
          _
        $region28: #{tpu_custom_call.1} parent=11 // pred_fallthru
          _
        // Predicated region
        $region29: #{tpu_custom_call.1} parent=11 // pred_check
          %p374 = pneg %p235
        $region30: #{tpu_custom_call.1} parent=11 // pred_check_branch
          %376 = sbr.rel (%p374) target = $region32
        $region31: #{tpu_custom_call.1} parent=11 // pred_region
          _
        $region32: #{tpu_custom_call.1} parent=11 // pred_fallthru
          _
        // Predicated region
        $region33: #{tpu_custom_call.1} parent=11 // pred_check
          %p377 = pneg %p256
        $region34: #{tpu_custom_call.1} parent=11 // pred_check_branch
          %379 = sbr.rel (%p377) target = $region36
        $region35: #{tpu_custom_call.1} parent=11 // pred_region
          _
        $region36: #{tpu_custom_call.1} parent=11 // pred_fallthru
          _
        // Predicated region
        $region37: #{tpu_custom_call.1} parent=11 // pred_check
          %p380 = pneg %p277
        $region38: #{tpu_custom_call.1} parent=11 // pred_check_branch
          %382 = sbr.rel (%p380) target = $region40
        $region39: #{tpu_custom_call.1} parent=11 // pred_region
          _
        $region40: #{tpu_custom_call.1} parent=11 // pred_fallthru
          _
        // Predicated region
        $region41: #{tpu_custom_call.1} parent=11 // pred_check
          %p383 = pneg %p298
        $region42: #{tpu_custom_call.1} parent=11 // pred_check_branch
          %385 = sbr.rel (%p383) target = $region44
        $region43: #{tpu_custom_call.1} parent=11 // pred_region
          _
        $region44: #{tpu_custom_call.1} parent=11 // pred_fallthru
          _
        // Predicated region
        $region45: #{tpu_custom_call.1} parent=11 // pred_check
          %p386 = pneg %p319
        $region46: #{tpu_custom_call.1} parent=11 // pred_check_branch
          %388 = sbr.rel (%p386) target = $region48
        $region47: #{tpu_custom_call.1} parent=11 // pred_region
          _
        $region48: #{tpu_custom_call.1} parent=11 // pred_fallthru
          _
      $region12: #{tpu_custom_call.1} parent=5 // pred_fallthru
        _
      %p389 = scmp.lt.s32.totalorder %s18, 6
      // Predicated region
      $region49: #{tpu_custom_call.1} parent=5 // pred_check
        %p390 = pneg %p389
      $region50: #{tpu_custom_call.1} parent=5 // pred_check_branch
        %392 = sbr.rel (%p390) target = $region52
      $region51: #{tpu_custom_call.1} parent=5 // pred_region
        // Predicated region
        $region53: #{tpu_custom_call.1} parent=51 // pred_check
          %p393 = pneg %p52
        $region54: #{tpu_custom_call.1} parent=51 // pred_check_branch
          %395 = sbr.rel (%p393) target = $region56
        $region55: #{tpu_custom_call.1} parent=51 // pred_region
          %s396 = smul.u32 16, %s26
          %s397 = ssub.s32 38, %s396
          %p398 = scmp.lt.s32.totalorder %s397, 16
          %s399 = scalar_select %p398, %s397, 16
          %s400 = smul.u32 128, %s399
          %p401 = scmp.lt.s32.totalorder %s25, 1
          %s402 = scalar_select %p401, %s25, 1
          %p403 = scmp.lt.s32.totalorder %s396, 37
          %s404 = scalar_select %p403, %s396, 37
          %s405 = smul.addr %s402, 38
          %s406 = sadd.s32 %s404, %s405
          %s407 = smul.addr %s406, 8
          %s408 = scalar_lea.vmem %s0, %s407
          %s409 = smul.u32 16, %s26
          %s410 = ssub.s32 38, %s409
          %p411 = scmp.lt.s32.totalorder %s410, 16
          %s412 = scalar_select %p411, %s410, 16
          %s413 = smul.u32 128, %s412
        $region56: #{tpu_custom_call.1} parent=51 // pred_fallthru
          _
        // Predicated region
        $region57: #{tpu_custom_call.1} parent=51 // pred_check
          %p414 = pneg %p88
        $region58: #{tpu_custom_call.1} parent=51 // pred_check_branch
          %416 = sbr.rel (%p414) target = $region60
        $region59: #{tpu_custom_call.1} parent=51 // pred_region
          %s417 = smul.u32 %s26, 16
          %s418 = ssub.s32 %s417, 1
          %p419 = scmp.gt.s32.totalorder %s418, 0
          %s420 = scalar_select %p419, %s418, 0
          %p421 = scmp.lt.s32.totalorder %s25, 1
          %s422 = scalar_select %p421, %s25, 1
          %p423 = scmp.lt.s32.totalorder %s420, 37
          %s424 = scalar_select %p423, %s420, 37
          %s425 = smul.addr %s422, 38
          %s426 = sadd.s32 %s424, %s425
          %s427 = smul.addr %s426, 8
          %s428 = scalar_lea.vmem %s1, %s427
          %s429 = smul.u32 %s26, 16
          %s430 = ssub.s32 %s429, 1
          %p431 = scmp.gt.s32.totalorder %s430, 0
          %s432 = scalar_select %p431, %s430, 0
        $region60: #{tpu_custom_call.1} parent=51 // pred_fallthru
          _
        // Predicated region
        $region61: #{tpu_custom_call.1} parent=51 // pred_check
          %p433 = pneg %p124
        $region62: #{tpu_custom_call.1} parent=51 // pred_check_branch
          %435 = sbr.rel (%p433) target = $region64
        $region63: #{tpu_custom_call.1} parent=51 // pred_region
          %s436 = sadd.s32 %s26, 1
          %s437 = smul.u32 %s436, 16
          %p438 = scmp.lt.s32.totalorder %s437, 37
          %s439 = scalar_select %p438, %s437, 37
          %p440 = scmp.lt.s32.totalorder %s25, 1
          %s441 = scalar_select %p440, %s25, 1
          %p442 = scmp.lt.s32.totalorder %s439, 37
          %s443 = scalar_select %p442, %s439, 37
          %s444 = smul.addr %s441, 38
          %s445 = sadd.s32 %s443, %s444
          %s446 = smul.addr %s445, 8
          %s447 = scalar_lea.vmem %s2, %s446
          %s448 = sadd.s32 %s26, 1
          %s449 = smul.u32 %s448, 16
          %p450 = scmp.lt.s32.totalorder %s449, 37
          %s451 = scalar_select %p450, %s449, 37
        $region64: #{tpu_custom_call.1} parent=51 // pred_fallthru
          _
      $region52: #{tpu_custom_call.1} parent=5 // pred_fallthru
        _
      %p452 = scmp.le.s32.totalorder 1, %s18
      %p453 = scmp.lt.s32.totalorder %s18, 7
      %p454 = pnand %p452, %p453
      %p455 = pneg %p454
      // Predicated region
      $region65: #{tpu_custom_call.1} parent=5 // pred_check
        _
      $region66: #{tpu_custom_call.1} parent=5 // pred_check_branch
        %457 = sbr.rel (%p454) target = $region68
      $region67: #{tpu_custom_call.1} parent=5 // pred_region
        %s458 = ssub.s32 %s18, 1
        %s459 = smul.u32 16, %s28
        %s460 = ssub.s32 38, %s459
        %p461 = scmp.lt.s32.totalorder %s460, 16
        %s462 = scalar_select %p461, %s460, 16
        %s463 = smul.u32 128, %s462
        %p464 = scmp.lt.s32.totalorder %s27, 1
        %s465 = scalar_select %p464, %s27, 1
        %p466 = scmp.lt.s32.totalorder %s459, 37
        %s467 = scalar_select %p466, %s459, 37
        %s468 = smul.addr %s465, 38
        %s469 = sadd.s32 %s467, %s468
        %s470 = smul.addr %s469, 8
        %s471 = scalar_lea.vmem %s0, %s470
        %p472 = pneg %p58
        %p473 = pneg %p55
        %s474 = smul.u32 %s28, 16
        %s475 = ssub.s32 %s474, 1
        %p476 = scmp.gt.s32.totalorder %s475, 0
        %s477 = scalar_select %p476, %s475, 0
        %p478 = scmp.lt.s32.totalorder %s27, 1
        %s479 = scalar_select %p478, %s27, 1
        %p480 = scmp.lt.s32.totalorder %s477, 37
        %s481 = scalar_select %p480, %s477, 37
        %s482 = smul.addr %s479, 38
        %s483 = sadd.s32 %s481, %s482
        %s484 = smul.addr %s483, 8
        %s485 = scalar_lea.vmem %s1, %s484
        %p486 = pneg %p94
        %p487 = pneg %p91
        %s488 = sadd.s32 %s28, 1
        %s489 = smul.u32 %s488, 16
        %p490 = scmp.lt.s32.totalorder %s489, 37
        %s491 = scalar_select %p490, %s489, 37
        %p492 = scmp.lt.s32.totalorder %s27, 1
        %s493 = scalar_select %p492, %s27, 1
        %p494 = scmp.lt.s32.totalorder %s491, 37
        %s495 = scalar_select %p494, %s491, 37
        %s496 = smul.addr %s493, 38
        %s497 = sadd.s32 %s495, %s496
        %s498 = smul.addr %s497, 8
        %s499 = scalar_lea.vmem %s2, %s498
        %p500 = pneg %p130
        %p501 = pneg %p127
        %p502 = pneg %p151
        %p503 = pneg %p148
        %p504 = pneg %p172
        %p505 = pneg %p169
        %p506 = pneg %p193
        %p507 = pneg %p190
        %p508 = pneg %p214
        %p509 = pneg %p211
        %p510 = pneg %p235
        %p511 = pneg %p232
        %p512 = pneg %p256
        %p513 = pneg %p253
        %p514 = pneg %p277
        %p515 = pneg %p274
        %p516 = pneg %p298
        %p517 = pneg %p295
        %p518 = pneg %p319
        %p519 = pneg %p316
        %p520 = pneg %p347
        %p521 = pneg %p344
        %s522 = sand.u32 %s334, 1
        %s523 = sand.u32 %s334, 1
        %s524 = smul.addr %s523, 128
        %s525 = scalar_lea.vmem [#allocation4], %s524
        %s526 = smul.u32 16, %s28
        %s527 = ssub.s32 38, %s526
        %p528 = scmp.lt.s32.totalorder %s527, 16
        %s529 = scalar_select %p528, %s527, 16
        %s530 = smul.u32 128, %s529
        %p531 = scmp.lt.s32.totalorder %s27, 1
        %s532 = scalar_select %p531, %s27, 1
        %p533 = scmp.lt.s32.totalorder %s526, 37
        %s534 = scalar_select %p533, %s526, 37
        %s535 = smul.addr %s532, 38
        %s536 = sadd.s32 %s534, %s535
        %s537 = smul.addr %s536, 8
        %s538 = scalar_lea.vmem %s0, %s537
        %s539 = smul.u32 16, %s28
        %s540 = ssub.s32 38, %s539
        %p541 = scmp.lt.s32.totalorder %s540, 16
        %s542 = scalar_select %p541, %s540, 16
        %s543 = smul.u32 128, %s542
        %s544 = smul.u32 %s28, 16
        %s545 = ssub.s32 %s544, 1
        %p546 = scmp.gt.s32.totalorder %s545, 0
        %s547 = scalar_select %p546, %s545, 0
        %p548 = scmp.lt.s32.totalorder %s27, 1
        %s549 = scalar_select %p548, %s27, 1
        %p550 = scmp.lt.s32.totalorder %s547, 37
        %s551 = scalar_select %p550, %s547, 37
        %s552 = smul.addr %s549, 38
        %s553 = sadd.s32 %s551, %s552
        %s554 = smul.addr %s553, 8
        %s555 = scalar_lea.vmem %s1, %s554
        %s556 = smul.u32 %s28, 16
        %s557 = ssub.s32 %s556, 1
        %p558 = scmp.gt.s32.totalorder %s557, 0
        %s559 = scalar_select %p558, %s557, 0
        %s560 = sadd.s32 %s28, 1
        %s561 = smul.u32 %s560, 16
        %p562 = scmp.lt.s32.totalorder %s561, 37
        %s563 = scalar_select %p562, %s561, 37
        %p564 = scmp.lt.s32.totalorder %s27, 1
        %s565 = scalar_select %p564, %s27, 1
        %p566 = scmp.lt.s32.totalorder %s563, 37
        %s567 = scalar_select %p566, %s563, 37
        %s568 = smul.addr %s565, 38
        %s569 = sadd.s32 %s567, %s568
        %s570 = smul.addr %s569, 8
        %s571 = scalar_lea.vmem %s2, %s570
        %s572 = sadd.s32 %s28, 1
        %s573 = smul.u32 %s572, 16
        %p574 = scmp.lt.s32.totalorder %s573, 37
        %s575 = scalar_select %p574, %s573, 37
        %s576 = smul.u32 16, %s28
        %s577 = ssub.s32 38, %s576
        %p578 = scmp.lt.s32.totalorder %s577, 16
        %s579 = scalar_select %p578, %s577, 16
        %s580 = smul.u32 128, %s579
        %v582 = vld [vmem:[%s555] sm:$0xff]
        %v583 = vld [vmem:[%s538] sm:$0xff]
        %v584 = vld [vmem:[%s538 + $0x8] sm:$0xff]
        %v585 = vld [vmem:[%s538 + $0x10] sm:$0xff]
        %v586 = vld [vmem:[%s538 + $0x18] sm:$0xff]
        %v587 = vld [vmem:[%s538 + $0x20] sm:$0xff]
        %v588 = vld [vmem:[%s538 + $0x28] sm:$0xff]
        %v589 = vld [vmem:[%s538 + $0x30] sm:$0xff]
        %v590 = vld [vmem:[%s538 + $0x38] sm:$0xff]
        %v591 = vld [vmem:[%s538 + $0x40] sm:$0xff]
        %v592 = vld [vmem:[%s538 + $0x48] sm:$0xff]
        %v593 = vld [vmem:[%s538 + $0x50] sm:$0xff]
        %v594 = vld [vmem:[%s538 + $0x58] sm:$0xff]
        %v595 = vld [vmem:[%s538 + $0x60] sm:$0xff]
        %v596 = vld [vmem:[%s538 + $0x68] sm:$0xff]
        %v597 = vld [vmem:[%s538 + $0x70] sm:$0xff]
        %v598 = vld [vmem:[%s538 + $0x78] sm:$0xff]
        %v599 = vld [vmem:[%s571] sm:$0xff]
        %v600 = vld [vmem:[%s3] sm:$0x1]
        %v601 = vld [vmem:[%s4] sm:$0x1]
        %602 = vadd.xlane.f32.xlu0 %v582
        %v603 = vpop.xlane.xlu0 %602
        %604 = vadd.xlane.f32.xlu0 %v583
        %v605 = vpop.xlane.xlu0 %604
        %606 = vadd.xlane.f32.xlu0 %v584
        %v607 = vpop.xlane.xlu0 %606
        %608 = vadd.xlane.f32.xlu0 %v585
        %v609 = vpop.xlane.xlu0 %608
        %610 = vadd.xlane.f32.xlu0 %v586
        %v611 = vpop.xlane.xlu0 %610
        %612 = vadd.xlane.f32.xlu0 %v587
        %v613 = vpop.xlane.xlu0 %612
        %614 = vadd.xlane.f32.xlu0 %v588
        %v615 = vpop.xlane.xlu0 %614
        %616 = vadd.xlane.f32.xlu0 %v589
        %v617 = vpop.xlane.xlu0 %616
        %618 = vadd.xlane.f32.xlu0 %v590
        %v619 = vpop.xlane.xlu0 %618
        %620 = vadd.xlane.f32.xlu0 %v591
        %v621 = vpop.xlane.xlu0 %620
        %622 = vadd.xlane.f32.xlu0 %v592
        %v623 = vpop.xlane.xlu0 %622
        %624 = vadd.xlane.f32.xlu0 %v593
        %v625 = vpop.xlane.xlu0 %624
        %626 = vadd.xlane.f32.xlu0 %v594
        %v627 = vpop.xlane.xlu0 %626
        %628 = vadd.xlane.f32.xlu0 %v595
        %v629 = vpop.xlane.xlu0 %628
        %630 = vadd.xlane.f32.xlu0 %v596
        %v631 = vpop.xlane.xlu0 %630
        %632 = vadd.xlane.f32.xlu0 %v597
        %v633 = vpop.xlane.xlu0 %632
        %634 = vadd.xlane.f32.xlu0 %v598
        %v635 = vpop.xlane.xlu0 %634
        %636 = vadd.xlane.f32.xlu0 %v599
        %v637 = vpop.xlane.xlu0 %636
        %v638 = vrcp.pop 128.0
        %v639 = vmul.f32 %v603, %v638
        %v640 = vmul.f32 %v605, %v638
        %v641 = vmul.f32 %v607, %v638
        %v642 = vmul.f32 %v609, %v638
        %v643 = vmul.f32 %v611, %v638
        %v644 = vmul.f32 %v613, %v638
        %v645 = vmul.f32 %v615, %v638
        %v646 = vmul.f32 %v617, %v638
        %v647 = vmul.f32 %v619, %v638
        %v648 = vmul.f32 %v621, %v638
        %v649 = vmul.f32 %v623, %v638
        %v650 = vmul.f32 %v625, %v638
        %v651 = vmul.f32 %v627, %v638
        %v652 = vmul.f32 %v629, %v638
        %v653 = vmul.f32 %v631, %v638
        %v654 = vmul.f32 %v633, %v638
        %v655 = vmul.f32 %v635, %v638
        %v656 = vmul.f32 %v637, %v638
        %v657 = vsub.f32 %v582, %v639
        %v658 = vsub.f32 %v583, %v640
        %v659 = vsub.f32 %v584, %v641
        %v660 = vsub.f32 %v585, %v642
        %v661 = vsub.f32 %v586, %v643
        %v662 = vsub.f32 %v587, %v644
        %v663 = vsub.f32 %v588, %v645
        %v664 = vsub.f32 %v589, %v646
        %v665 = vsub.f32 %v590, %v647
        %v666 = vsub.f32 %v591, %v648
        %v667 = vsub.f32 %v592, %v649
        %v668 = vsub.f32 %v593, %v650
        %v669 = vsub.f32 %v594, %v651
        %v670 = vsub.f32 %v595, %v652
        %v671 = vsub.f32 %v596, %v653
        %v672 = vsub.f32 %v597, %v654
        %v673 = vsub.f32 %v598, %v655
        %v674 = vsub.f32 %v599, %v656
        %v675 = vmul.f32 %v657, %v657
        %v676 = vmul.f32 %v658, %v658
        %v677 = vmul.f32 %v659, %v659
        %v678 = vmul.f32 %v660, %v660
        %v679 = vmul.f32 %v661, %v661
        %v680 = vmul.f32 %v662, %v662
        %v681 = vmul.f32 %v663, %v663
        %v682 = vmul.f32 %v664, %v664
        %v683 = vmul.f32 %v665, %v665
        %v684 = vmul.f32 %v666, %v666
        %v685 = vmul.f32 %v667, %v667
        %v686 = vmul.f32 %v668, %v668
        %v687 = vmul.f32 %v669, %v669
        %v688 = vmul.f32 %v670, %v670
        %v689 = vmul.f32 %v671, %v671
        %v690 = vmul.f32 %v672, %v672
        %v691 = vmul.f32 %v673, %v673
        %v692 = vmul.f32 %v674, %v674
        %693 = vadd.xlane.f32.xlu0 %v675
        %v694 = vpop.xlane.xlu0 %693
        %695 = vadd.xlane.f32.xlu0 %v676
        %v696 = vpop.xlane.xlu0 %695
        %697 = vadd.xlane.f32.xlu0 %v677
        %v698 = vpop.xlane.xlu0 %697
        %699 = vadd.xlane.f32.xlu0 %v678
        %v700 = vpop.xlane.xlu0 %699
        %701 = vadd.xlane.f32.xlu0 %v679
        %v702 = vpop.xlane.xlu0 %701
        %703 = vadd.xlane.f32.xlu0 %v680
        %v704 = vpop.xlane.xlu0 %703
        %705 = vadd.xlane.f32.xlu0 %v681
        %v706 = vpop.xlane.xlu0 %705
        %707 = vadd.xlane.f32.xlu0 %v682
        %v708 = vpop.xlane.xlu0 %707
        %709 = vadd.xlane.f32.xlu0 %v683
        %v710 = vpop.xlane.xlu0 %709
        %711 = vadd.xlane.f32.xlu0 %v684
        %v712 = vpop.xlane.xlu0 %711
        %713 = vadd.xlane.f32.xlu0 %v685
        %v714 = vpop.xlane.xlu0 %713
        %715 = vadd.xlane.f32.xlu0 %v686
        %v716 = vpop.xlane.xlu0 %715
        %717 = vadd.xlane.f32.xlu0 %v687
        %v718 = vpop.xlane.xlu0 %717
        %719 = vadd.xlane.f32.xlu0 %v688
        %v720 = vpop.xlane.xlu0 %719
        %721 = vadd.xlane.f32.xlu0 %v689
        %v722 = vpop.xlane.xlu0 %721
        %723 = vadd.xlane.f32.xlu0 %v690
        %v724 = vpop.xlane.xlu0 %723
        %725 = vadd.xlane.f32.xlu0 %v691
        %v726 = vpop.xlane.xlu0 %725
        %727 = vadd.xlane.f32.xlu0 %v692
        %v728 = vpop.xlane.xlu0 %727
        %v729 = vmul.f32 %v694, %v638
        %v730 = vmul.f32 %v696, %v638
        %v731 = vmul.f32 %v698, %v638
        %v732 = vmul.f32 %v700, %v638
        %v733 = vmul.f32 %v702, %v638
        %v734 = vmul.f32 %v704, %v638
        %v735 = vmul.f32 %v706, %v638
        %v736 = vmul.f32 %v708, %v638
        %v737 = vmul.f32 %v710, %v638
        %v738 = vmul.f32 %v712, %v638
        %v739 = vmul.f32 %v714, %v638
        %v740 = vmul.f32 %v716, %v638
        %v741 = vmul.f32 %v718, %v638
        %v742 = vmul.f32 %v720, %v638
        %v743 = vmul.f32 %v722, %v638
        %v744 = vmul.f32 %v724, %v638
        %v745 = vmul.f32 %v726, %v638
        %v746 = vmul.f32 %v728, %v638
        %v747 = vadd.f32 %v729, 1e-05
        %v748 = vadd.f32 %v730, 1e-05
        %v749 = vadd.f32 %v731, 1e-05
        %v750 = vadd.f32 %v732, 1e-05
        %v751 = vadd.f32 %v733, 1e-05
        %v752 = vadd.f32 %v734, 1e-05
        %v753 = vadd.f32 %v735, 1e-05
        %v754 = vadd.f32 %v736, 1e-05
        %v755 = vadd.f32 %v737, 1e-05
        %v756 = vadd.f32 %v738, 1e-05
        %v757 = vadd.f32 %v739, 1e-05
        %v758 = vadd.f32 %v740, 1e-05
        %v759 = vadd.f32 %v741, 1e-05
        %v760 = vadd.f32 %v742, 1e-05
        %v761 = vadd.f32 %v743, 1e-05
        %v762 = vadd.f32 %v744, 1e-05
        %v763 = vadd.f32 %v745, 1e-05
        %v764 = vadd.f32 %v746, 1e-05
        %v765 = vrsqrt.pop %v747
        %v766 = vrsqrt.pop %v748
        %v767 = vrsqrt.pop %v749
        %v768 = vrsqrt.pop %v750
        %v769 = vrsqrt.pop %v751
        %v770 = vrsqrt.pop %v752
        %v771 = vrsqrt.pop %v753
        %v772 = vrsqrt.pop %v754
        %v773 = vrsqrt.pop %v755
        %v774 = vrsqrt.pop %v756
        %v775 = vrsqrt.pop %v757
        %v776 = vrsqrt.pop %v758
        %v777 = vrsqrt.pop %v759
        %v778 = vrsqrt.pop %v760
        %v779 = vrsqrt.pop %v761
        %v780 = vrsqrt.pop %v762
        %v781 = vrsqrt.pop %v763
        %v782 = vrsqrt.pop %v764
        %v783 = vmul.f32 %v657, %v765
        %v784 = vmul.f32 %v658, %v766
        %v785 = vmul.f32 %v659, %v767
        %v786 = vmul.f32 %v660, %v768
        %v787 = vmul.f32 %v661, %v769
        %v788 = vmul.f32 %v662, %v770
        %v789 = vmul.f32 %v663, %v771
        %v790 = vmul.f32 %v664, %v772
        %v791 = vmul.f32 %v665, %v773
        %v792 = vmul.f32 %v666, %v774
        %v793 = vmul.f32 %v667, %v775
        %v794 = vmul.f32 %v668, %v776
        %v795 = vmul.f32 %v669, %v777
        %v796 = vmul.f32 %v670, %v778
        %v797 = vmul.f32 %v671, %v779
        %v798 = vmul.f32 %v672, %v780
        %v799 = vmul.f32 %v673, %v781
        %v800 = vmul.f32 %v674, %v782
        %v802 = vlaneseq
        %v803 = vshrl.u32 %v802, 7
        %v804 = vsub.s32 0, %v803
        %v805 = vrot.slane %v600, %v804
        %v807 = vmul.f32 %v783, %v805
        %v808 = vmul.f32 %v784, %v805
        %v809 = vmul.f32 %v785, %v805
        %v810 = vmul.f32 %v786, %v805
        %v811 = vmul.f32 %v787, %v805
        %v812 = vmul.f32 %v788, %v805
        %v813 = vmul.f32 %v789, %v805
        %v814 = vmul.f32 %v790, %v805
        %v815 = vmul.f32 %v791, %v805
        %v816 = vmul.f32 %v792, %v805
        %v817 = vmul.f32 %v793, %v805
        %v818 = vmul.f32 %v794, %v805
        %v819 = vmul.f32 %v795, %v805
        %v820 = vmul.f32 %v796, %v805
        %v821 = vmul.f32 %v797, %v805
        %v822 = vmul.f32 %v798, %v805
        %v823 = vmul.f32 %v799, %v805
        %v824 = vmul.f32 %v800, %v805
        %v826 = vlaneseq
        %v827 = vshrl.u32 %v826, 7
        %v828 = vsub.s32 0, %v827
        %v829 = vrot.slane %v601, %v828
        %v831 = vadd.f32 %v807, %v829
        %v832 = vadd.f32 %v808, %v829
        %v833 = vadd.f32 %v809, %v829
        %v834 = vadd.f32 %v810, %v829
        %v835 = vadd.f32 %v811, %v829
        %v836 = vadd.f32 %v812, %v829
        %v837 = vadd.f32 %v813, %v829
        %v838 = vadd.f32 %v814, %v829
        %v839 = vadd.f32 %v815, %v829
        %v840 = vadd.f32 %v816, %v829
        %v841 = vadd.f32 %v817, %v829
        %v842 = vadd.f32 %v818, %v829
        %v843 = vadd.f32 %v819, %v829
        %v844 = vadd.f32 %v820, %v829
        %v845 = vadd.f32 %v821, %v829
        %v846 = vadd.f32 %v822, %v829
        %v847 = vadd.f32 %v823, %v829
        %v848 = vadd.f32 %v824, %v829
        %v849 = vpack.c.bf16 %v832, %v831
        %v850 = vpack.c.bf16 %v834, %v833
        %v851 = vpack.c.bf16 %v836, %v835
        %v852 = vpack.c.bf16 %v838, %v837
        %v853 = vpack.c.bf16 %v840, %v839
        %v854 = vpack.c.bf16 %v842, %v841
        %v855 = vpack.c.bf16 %v844, %v843
        %v856 = vpack.c.bf16 %v846, %v845
        %v857 = vpack.c.bf16 %v848, %v847
        %v858 = vld [vmem:[%s5] sm:$0xff]
        %v859 = vld [vmem:[%s5 + $0x8] sm:$0xff]
        %v860 = vld [vmem:[%s5 + $0x10] sm:$0xff]
        %v861 = vld [vmem:[%s5 + $0x18] sm:$0xff]
        %v862 = vld [vmem:[%s5 + $0x20] sm:$0xff]
        %v863 = vld [vmem:[%s5 + $0x28] sm:$0xff]
        %v864 = vld [vmem:[%s5 + $0x30] sm:$0xff]
        %v865 = vld [vmem:[%s5 + $0x38] sm:$0xff]
        %v866 = vld [vmem:[%s5 + $0x40] sm:$0xff]
        %v867 = vld [vmem:[%s5 + $0x48] sm:$0xff]
        %v868 = vld [vmem:[%s5 + $0x50] sm:$0xff]
        %v869 = vld [vmem:[%s5 + $0x58] sm:$0xff]
        %v870 = vld [vmem:[%s5 + $0x60] sm:$0xff]
        %v871 = vld [vmem:[%s5 + $0x68] sm:$0xff]
        %v872 = vld [vmem:[%s5 + $0x70] sm:$0xff]
        %v873 = vld [vmem:[%s5 + $0x78] sm:$0xff]
        %v890 = vunpack.c.l.b16 %v858
        %v891 = vunpack.c.h.b16 %v858
        %v892 = vunpack.c.l.b16 %v859
        %v893 = vunpack.c.h.b16 %v859
        %v894 = vunpack.c.l.b16 %v860
        %v895 = vunpack.c.h.b16 %v860
        %v896 = vunpack.c.l.b16 %v861
        %v897 = vunpack.c.h.b16 %v861
        %v898 = vunpack.c.l.b16 %v862
        %v899 = vunpack.c.h.b16 %v862
        %v900 = vunpack.c.l.b16 %v863
        %v901 = vunpack.c.h.b16 %v863
        %v902 = vunpack.c.l.b16 %v864
        %v903 = vunpack.c.h.b16 %v864
        %v904 = vunpack.c.l.b16 %v865
        %v905 = vunpack.c.h.b16 %v865
        %v906 = vunpack.c.l.b16 %v866
        %v907 = vunpack.c.h.b16 %v866
        %v908 = vunpack.c.l.b16 %v867
        %v909 = vunpack.c.h.b16 %v867
        %v910 = vunpack.c.l.b16 %v868
        %v911 = vunpack.c.h.b16 %v868
        %v912 = vunpack.c.l.b16 %v869
        %v913 = vunpack.c.h.b16 %v869
        %v914 = vunpack.c.l.b16 %v870
        %v915 = vunpack.c.h.b16 %v870
        %v916 = vunpack.c.l.b16 %v871
        %v917 = vunpack.c.h.b16 %v871
        %v918 = vunpack.c.l.b16 %v872
        %v919 = vunpack.c.h.b16 %v872
        %v920 = vunpack.c.l.b16 %v873
        %v921 = vunpack.c.h.b16 %v873
        %v922 = vpack.c.b16 %v892, %v890
        %v923 = vpack.c.b16 %v893, %v891
        %v924 = vpack.c.b16 %v896, %v894
        %v925 = vpack.c.b16 %v897, %v895
        %v926 = vpack.c.b16 %v900, %v898
        %v927 = vpack.c.b16 %v901, %v899
        %v928 = vpack.c.b16 %v904, %v902
        %v929 = vpack.c.b16 %v905, %v903
        %v930 = vpack.c.b16 %v908, %v906
        %v931 = vpack.c.b16 %v909, %v907
        %v932 = vpack.c.b16 %v912, %v910
        %v933 = vpack.c.b16 %v913, %v911
        %v934 = vpack.c.b16 %v916, %v914
        %v935 = vpack.c.b16 %v917, %v915
        %v936 = vpack.c.b16 %v920, %v918
        %v937 = vpack.c.b16 %v921, %v919
        %954 = vmatprep.subr.bf16.mxu0 %v923
        %955 = vmatpush1.bf16.msra.mxu0 %v922
        %956 = vmatprep.subr.bf16.mxu0 %v925
        %957 = vmatpush1.bf16.msra.mxu0 %v924
        %958 = vmatprep.subr.bf16.mxu0 %v927
        %959 = vmatpush1.bf16.msra.mxu0 %v926
        %960 = vmatprep.subr.bf16.mxu0 %v929
        %961 = vmatpush1.bf16.msra.mxu0 %v928
        %962 = vmatprep.subr.bf16.mxu0 %v931
        %963 = vmatpush1.bf16.msra.mxu0 %v930
        %964 = vmatprep.subr.bf16.mxu0 %v933
        %965 = vmatpush1.bf16.msra.mxu0 %v932
        %966 = vmatprep.subr.bf16.mxu0 %v935
        %967 = vmatpush1.bf16.msra.mxu0 %v934
        %968 = vmatprep.subr.bf16.mxu0 %v937
        %969 = vmatpush1.bf16.msra.mxu0 %v936
        %970 = vmatprep.subr.bf16.mxu0 0
        %971 = vmatpush1.bf16.msra.mxu0 0
        %972 = vmatprep.subr.bf16.mxu0 0
        %973 = vmatpush1.bf16.msra.mxu0 0
        %974 = vmatprep.subr.bf16.mxu0 0
        %975 = vmatpush1.bf16.msra.mxu0 0
        %976 = vmatprep.subr.bf16.mxu0 0
        %977 = vmatpush1.bf16.msra.mxu0 0
        %978 = vmatprep.subr.bf16.mxu0 0
        %979 = vmatpush1.bf16.msra.mxu0 0
        %980 = vmatprep.subr.bf16.mxu0 0
        %981 = vmatpush1.bf16.msra.mxu0 0
        %982 = vmatprep.subr.bf16.mxu0 0
        %983 = vmatpush1.bf16.msra.mxu0 0
        %984 = vmatprep.subr.bf16.mxu0 0
        %985 = vmatpush1.bf16.msra.mxu0 0
        %986 = vmatprep.mubr.bf16.mxu0 0
        %987 = vmatmul.mubr.bf16.gmra.mrb[0].mxu0 %v849
        %v988 = vpop.f32.mrb[0].mxu0
        %v989 = vadd.f32 0.0, %v988
        %v990 = vpop.f32.mrb[0].mxu0
        %v991 = vadd.f32 0.0, %v990
        %v992 = vpop.f32.mrb[0].mxu0
        %v993 = vadd.f32 0.0, %v992
        %v994 = vpop.f32.mrb[0].mxu0
        %v995 = vadd.f32 0.0, %v994
        %996 = vmatprep.mubr.bf16.mxu0 0
        %997 = vmatmul.mubr.bf16.gmra.mrb[0].mxu0 %v850
        %v998 = vpop.f32.mrb[0].mxu0
        %v999 = vadd.f32 0.0, %v998
        %v1000 = vpop.f32.mrb[0].mxu0
        %v1001 = vadd.f32 0.0, %v1000
        %v1002 = vpop.f32.mrb[0].mxu0
        %v1003 = vadd.f32 0.0, %v1002
        %v1004 = vpop.f32.mrb[0].mxu0
        %v1005 = vadd.f32 0.0, %v1004
        %1006 = vmatprep.mubr.bf16.mxu0 0
        %1007 = vmatmul.mubr.bf16.gmra.mrb[0].mxu0 %v851
        %v1008 = vpop.f32.mrb[0].mxu0
        %v1009 = vadd.f32 0.0, %v1008
        %v1010 = vpop.f32.mrb[0].mxu0
        %v1011 = vadd.f32 0.0, %v1010
        %v1012 = vpop.f32.mrb[0].mxu0
        %v1013 = vadd.f32 0.0, %v1012
        %v1014 = vpop.f32.mrb[0].mxu0
        %v1015 = vadd.f32 0.0, %v1014
        %1016 = vmatprep.mubr.bf16.mxu0 0
        %1017 = vmatmul.mubr.bf16.gmra.mrb[0].mxu0 %v852
        %v1018 = vpop.f32.mrb[0].mxu0
        %v1019 = vadd.f32 0.0, %v1018
        %v1020 = vpop.f32.mrb[0].mxu0
        %v1021 = vadd.f32 0.0, %v1020
        %v1022 = vpop.f32.mrb[0].mxu0
        %v1023 = vadd.f32 0.0, %v1022
        %v1024 = vpop.f32.mrb[0].mxu0
        %v1025 = vadd.f32 0.0, %v1024
        %1026 = vmatprep.mubr.bf16.mxu0 0
        %1027 = vmatmul.mubr.bf16.gmra.mrb[0].mxu0 %v853
        %v1028 = vpop.f32.mrb[0].mxu0
        %v1029 = vadd.f32 0.0, %v1028
        %v1030 = vpop.f32.mrb[0].mxu0
        %v1031 = vadd.f32 0.0, %v1030
        %v1032 = vpop.f32.mrb[0].mxu0
        %v1033 = vadd.f32 0.0, %v1032
        %v1034 = vpop.f32.mrb[0].mxu0
        %v1035 = vadd.f32 0.0, %v1034
        %1036 = vmatprep.mubr.bf16.mxu0 0
        %1037 = vmatmul.mubr.bf16.gmra.mrb[0].mxu0 %v854
        %v1038 = vpop.f32.mrb[0].mxu0
        %v1039 = vadd.f32 0.0, %v1038
        %v1040 = vpop.f32.mrb[0].mxu0
        %v1041 = vadd.f32 0.0, %v1040
        %v1042 = vpop.f32.mrb[0].mxu0
        %v1043 = vadd.f32 0.0, %v1042
        %v1044 = vpop.f32.mrb[0].mxu0
        %v1045 = vadd.f32 0.0, %v1044
        %1046 = vmatprep.mubr.bf16.mxu0 0
        %1047 = vmatmul.mubr.bf16.gmra.mrb[0].mxu0 %v855
        %v1048 = vpop.f32.mrb[0].mxu0
        %v1049 = vadd.f32 0.0, %v1048
        %v1050 = vpop.f32.mrb[0].mxu0
        %v1051 = vadd.f32 0.0, %v1050
        %v1052 = vpop.f32.mrb[0].mxu0
        %v1053 = vadd.f32 0.0, %v1052
        %v1054 = vpop.f32.mrb[0].mxu0
        %v1055 = vadd.f32 0.0, %v1054
        %1056 = vmatprep.mubr.bf16.mxu0 0
        %1057 = vmatmul.mubr.bf16.gmra.mrb[0].mxu0 %v856
        %v1058 = vpop.f32.mrb[0].mxu0
        %v1059 = vadd.f32 0.0, %v1058
        %v1060 = vpop.f32.mrb[0].mxu0
        %v1061 = vadd.f32 0.0, %v1060
        %v1062 = vpop.f32.mrb[0].mxu0
        %v1063 = vadd.f32 0.0, %v1062
        %v1064 = vpop.f32.mrb[0].mxu0
        %v1065 = vadd.f32 0.0, %v1064
        %1066 = vmatprep.mubr.bf16.mxu0 0
        %1067 = vmatmul.mubr.bf16.gmra.mrb[0].mxu0 %v857
        %v1068 = vpop.f32.mrb[0].mxu0
        %v1069 = vadd.f32 0.0, %v1068
        %v1070 = vpop.f32.mrb[0].mxu0
        %v1071 = vadd.f32 0.0, %v1070
        %v1072 = vpop.f32.mrb[0].mxu0
        %v1073 = vadd.f32 0.0, %v1072
        %v1074 = vpop.f32.mrb[0].mxu0
        %v1075 = vadd.f32 0.0, %v1074
        %1076 = vdwg.mxu0
        %v1077 = vld [vmem:[%s6] sm:$0x1]
        %v1079 = vlaneseq
        %v1080 = vshrl.u32 %v1079, 7
        %v1081 = vsub.s32 0, %v1080
        %v1082 = vrot.slane %v1077, %v1081
        %v1084 = vadd.f32 %v989, %v1082
        %v1085 = vadd.f32 %v993, %v1082
        %v1086 = vadd.f32 %v999, %v1082
        %v1087 = vadd.f32 %v1003, %v1082
        %v1088 = vadd.f32 %v1009, %v1082
        %v1089 = vadd.f32 %v1013, %v1082
        %v1090 = vadd.f32 %v1019, %v1082
        %v1091 = vadd.f32 %v1023, %v1082
        %v1092 = vadd.f32 %v1029, %v1082
        %v1093 = vadd.f32 %v1033, %v1082
        %v1094 = vadd.f32 %v1039, %v1082
        %v1095 = vadd.f32 %v1043, %v1082
        %v1096 = vadd.f32 %v1049, %v1082
        %v1097 = vadd.f32 %v1053, %v1082
        %v1098 = vadd.f32 %v1059, %v1082
        %v1099 = vadd.f32 %v1063, %v1082
        %v1100 = vadd.f32 %v1069, %v1082
        %v1101 = vadd.f32 %v1073, %v1082
        %v1102 = vld [vmem:[%s7] sm:$0x1]
        %v1104 = vlaneseq
        %v1105 = vshrl.u32 %v1104, 7
        %v1106 = vsub.s32 0, %v1105
        %v1107 = vrot.slane %v1102, %v1106
        %v1109 = vadd.f32 %v991, %v1107
        %v1110 = vadd.f32 %v995, %v1107
        %v1111 = vadd.f32 %v1001, %v1107
        %v1112 = vadd.f32 %v1005, %v1107
        %v1113 = vadd.f32 %v1011, %v1107
        %v1114 = vadd.f32 %v1015, %v1107
        %v1115 = vadd.f32 %v1021, %v1107
        %v1116 = vadd.f32 %v1025, %v1107
        %v1117 = vadd.f32 %v1031, %v1107
        %v1118 = vadd.f32 %v1035, %v1107
        %v1119 = vadd.f32 %v1041, %v1107
        %v1120 = vadd.f32 %v1045, %v1107
        %v1121 = vadd.f32 %v1051, %v1107
        %v1122 = vadd.f32 %v1055, %v1107
        %v1123 = vadd.f32 %v1061, %v1107
        %v1124 = vadd.f32 %v1065, %v1107
        %v1125 = vadd.f32 %v1071, %v1107
        %v1126 = vadd.f32 %v1075, %v1107
        %v1127 = vxor.u32 %v1109, 2147483648
        %v1128 = vxor.u32 %v1110, 2147483648
        %v1129 = vxor.u32 %v1111, 2147483648
        %v1130 = vxor.u32 %v1112, 2147483648
        %v1131 = vxor.u32 %v1113, 2147483648
        %v1132 = vxor.u32 %v1114, 2147483648
        %v1133 = vxor.u32 %v1115, 2147483648
        %v1134 = vxor.u32 %v1116, 2147483648
        %v1135 = vxor.u32 %v1117, 2147483648
        %v1136 = vxor.u32 %v1118, 2147483648
        %v1137 = vxor.u32 %v1119, 2147483648
        %v1138 = vxor.u32 %v1120, 2147483648
        %v1139 = vxor.u32 %v1121, 2147483648
        %v1140 = vxor.u32 %v1122, 2147483648
        %v1141 = vxor.u32 %v1123, 2147483648
        %v1142 = vxor.u32 %v1124, 2147483648
        %v1143 = vxor.u32 %v1125, 2147483648
        %v1144 = vxor.u32 %v1126, 2147483648
        %v1145 = vmul.f32 %v1127, 1.442695
        %v1146 = vpow.pop %v1145
        %v1147 = vmul.f32 %v1128, 1.442695
        %v1148 = vpow.pop %v1147
        %v1149 = vmul.f32 %v1129, 1.442695
        %v1150 = vpow.pop %v1149
        %v1151 = vmul.f32 %v1130, 1.442695
        %v1152 = vpow.pop %v1151
        %v1153 = vmul.f32 %v1131, 1.442695
        %v1154 = vpow.pop %v1153
        %v1155 = vmul.f32 %v1132, 1.442695
        %v1156 = vpow.pop %v1155
        %v1157 = vmul.f32 %v1133, 1.442695
        %v1158 = vpow.pop %v1157
        %v1159 = vmul.f32 %v1134, 1.442695
        %v1160 = vpow.pop %v1159
        %v1161 = vmul.f32 %v1135, 1.442695
        %v1162 = vpow.pop %v1161
        %v1163 = vmul.f32 %v1136, 1.442695
        %v1164 = vpow.pop %v1163
        %v1165 = vmul.f32 %v1137, 1.442695
        %v1166 = vpow.pop %v1165
        %v1167 = vmul.f32 %v1138, 1.442695
        %v1168 = vpow.pop %v1167
        %v1169 = vmul.f32 %v1139, 1.442695
        %v1170 = vpow.pop %v1169
        %v1171 = vmul.f32 %v1140, 1.442695
        %v1172 = vpow.pop %v1171
        %v1173 = vmul.f32 %v1141, 1.442695
        %v1174 = vpow.pop %v1173
        %v1175 = vmul.f32 %v1142, 1.442695
        %v1176 = vpow.pop %v1175
        %v1177 = vmul.f32 %v1143, 1.442695
        %v1178 = vpow.pop %v1177
        %v1179 = vmul.f32 %v1144, 1.442695
        %v1180 = vpow.pop %v1179
        %v1181 = vadd.f32 %v1146, 1.0
        %v1182 = vadd.f32 %v1148, 1.0
        %v1183 = vadd.f32 %v1150, 1.0
        %v1184 = vadd.f32 %v1152, 1.0
        %v1185 = vadd.f32 %v1154, 1.0
        %v1186 = vadd.f32 %v1156, 1.0
        %v1187 = vadd.f32 %v1158, 1.0
        %v1188 = vadd.f32 %v1160, 1.0
        %v1189 = vadd.f32 %v1162, 1.0
        %v1190 = vadd.f32 %v1164, 1.0
        %v1191 = vadd.f32 %v1166, 1.0
        %v1192 = vadd.f32 %v1168, 1.0
        %v1193 = vadd.f32 %v1170, 1.0
        %v1194 = vadd.f32 %v1172, 1.0
        %v1195 = vadd.f32 %v1174, 1.0
        %v1196 = vadd.f32 %v1176, 1.0
        %v1197 = vadd.f32 %v1178, 1.0
        %v1198 = vadd.f32 %v1180, 1.0
        %v1199 = vrcp.pop %v1181
        %v1200 = vmul.f32 1.0, %v1199
        %v1201 = vrcp.pop %v1182
        %v1202 = vmul.f32 1.0, %v1201
        %v1203 = vrcp.pop %v1183
        %v1204 = vmul.f32 1.0, %v1203
        %v1205 = vrcp.pop %v1184
        %v1206 = vmul.f32 1.0, %v1205
        %v1207 = vrcp.pop %v1185
        %v1208 = vmul.f32 1.0, %v1207
        %v1209 = vrcp.pop %v1186
        %v1210 = vmul.f32 1.0, %v1209
        %v1211 = vrcp.pop %v1187
        %v1212 = vmul.f32 1.0, %v1211
        %v1213 = vrcp.pop %v1188
        %v1214 = vmul.f32 1.0, %v1213
        %v1215 = vrcp.pop %v1189
        %v1216 = vmul.f32 1.0, %v1215
        %v1217 = vrcp.pop %v1190
        %v1218 = vmul.f32 1.0, %v1217
        %v1219 = vrcp.pop %v1191
        %v1220 = vmul.f32 1.0, %v1219
        %v1221 = vrcp.pop %v1192
        %v1222 = vmul.f32 1.0, %v1221
        %v1223 = vrcp.pop %v1193
        %v1224 = vmul.f32 1.0, %v1223
        %v1225 = vrcp.pop %v1194
        %v1226 = vmul.f32 1.0, %v1225
        %v1227 = vrcp.pop %v1195
        %v1228 = vmul.f32 1.0, %v1227
        %v1229 = vrcp.pop %v1196
        %v1230 = vmul.f32 1.0, %v1229
        %v1231 = vrcp.pop %v1197
        %v1232 = vmul.f32 1.0, %v1231
        %v1233 = vrcp.pop %v1198
        %v1234 = vmul.f32 1.0, %v1233
        %v1235 = vmul.f32 %v1109, %v1200
        %v1236 = vmul.f32 %v1110, %v1202
        %v1237 = vmul.f32 %v1111, %v1204
        %v1238 = vmul.f32 %v1112, %v1206
        %v1239 = vmul.f32 %v1113, %v1208
        %v1240 = vmul.f32 %v1114, %v1210
        %v1241 = vmul.f32 %v1115, %v1212
        %v1242 = vmul.f32 %v1116, %v1214
        %v1243 = vmul.f32 %v1117, %v1216
        %v1244 = vmul.f32 %v1118, %v1218
        %v1245 = vmul.f32 %v1119, %v1220
        %v1246 = vmul.f32 %v1120, %v1222
        %v1247 = vmul.f32 %v1121, %v1224
        %v1248 = vmul.f32 %v1122, %v1226
        %v1249 = vmul.f32 %v1123, %v1228
        %v1250 = vmul.f32 %v1124, %v1230
        %v1251 = vmul.f32 %v1125, %v1232
        %v1252 = vmul.f32 %v1126, %v1234
        %v1253 = vmul.f32 %v1084, %v1235
        %v1254 = vmul.f32 %v1085, %v1236
        %v1255 = vmul.f32 %v1086, %v1237
        %v1256 = vmul.f32 %v1087, %v1238
        %v1257 = vmul.f32 %v1088, %v1239
        %v1258 = vmul.f32 %v1089, %v1240
        %v1259 = vmul.f32 %v1090, %v1241
        %v1260 = vmul.f32 %v1091, %v1242
        %v1261 = vmul.f32 %v1092, %v1243
        %v1262 = vmul.f32 %v1093, %v1244
        %v1263 = vmul.f32 %v1094, %v1245
        %v1264 = vmul.f32 %v1095, %v1246
        %v1265 = vmul.f32 %v1096, %v1247
        %v1266 = vmul.f32 %v1097, %v1248
        %v1267 = vmul.f32 %v1098, %v1249
        %v1268 = vmul.f32 %v1099, %v1250
        %v1269 = vmul.f32 %v1100, %v1251
        %v1270 = vmul.f32 %v1101, %v1252
        %1271 = vst [vmem:[#allocation2] sm:$0xff] %v1253
        %1272 = vst [vmem:[#allocation2 + $0x8] sm:$0xff] %v1254
        %1273 = vst [vmem:[#allocation2 + $0x10] sm:$0xff] %v1255
        %1274 = vst [vmem:[#allocation2 + $0x18] sm:$0xff] %v1256
        %1275 = vst [vmem:[#allocation2 + $0x20] sm:$0xff] %v1257
        %1276 = vst [vmem:[#allocation2 + $0x28] sm:$0xff] %v1258
        %1277 = vst [vmem:[#allocation2 + $0x30] sm:$0xff] %v1259
        %1278 = vst [vmem:[#allocation2 + $0x38] sm:$0xff] %v1260
        %1279 = vst [vmem:[#allocation2 + $0x40] sm:$0xff] %v1261
        %1280 = vst [vmem:[#allocation2 + $0x48] sm:$0xff] %v1262
        %1281 = vst [vmem:[#allocation2 + $0x50] sm:$0xff] %v1263
        %1282 = vst [vmem:[#allocation2 + $0x58] sm:$0xff] %v1264
        %1283 = vst [vmem:[#allocation2 + $0x60] sm:$0xff] %v1265
        %1284 = vst [vmem:[#allocation2 + $0x68] sm:$0xff] %v1266
        %1285 = vst [vmem:[#allocation2 + $0x70] sm:$0xff] %v1267
        %1286 = vst [vmem:[#allocation2 + $0x78] sm:$0xff] %v1268
        %1287 = vst [vmem:[#allocation2 + $0x80] sm:$0xff] %v1269
        %1288 = vst [vmem:[#allocation2 + $0x88] sm:$0xff] %v1270
        %p1289 = scmp.eq.s32.totalorder %s28, 0
        %s1290 = sadd.s32 %s28, 1
        %s1291 = smul.u32 %s1290, 128
        %s1292 = sadd.s32 %s1291, 8
        %p1293 = scmp.gt.s32.totalorder %s1292, 300
        %p1294 = por %p1289, %p1293
        // Predicated region
        $region69: #{tpu_custom_call.1} parent=67 // pred_check
          %p1295 = pneg %p1294
        $region70: #{tpu_custom_call.1} parent=67 // pred_check_branch
          %1297 = sbr.rel (%p1295) target = $region72
        $region71: #{tpu_custom_call.1} parent=67 // pred_region
          %v1298 = vlaneseq
          %v1299 = vshrl.u32 %v1298, 7
          %v1300 = vadd.s32 %v1299, 8
          %v1301 = vadd.s32 %v1299, 16
          %v1302 = vadd.s32 %v1299, 24
          %v1303 = vadd.s32 %v1299, 32
          %v1304 = vadd.s32 %v1299, 40
          %v1305 = vadd.s32 %v1299, 48
          %v1306 = vadd.s32 %v1299, 56
          %v1307 = vadd.s32 %v1299, 64
          %v1308 = vadd.s32 %v1299, 72
          %v1309 = vadd.s32 %v1299, 80
          %v1310 = vadd.s32 %v1299, 88
          %v1311 = vadd.s32 %v1299, 96
          %v1312 = vadd.s32 %v1299, 104
          %v1313 = vadd.s32 %v1299, 112
          %v1314 = vadd.s32 %v1299, 120
          %v1315 = vadd.s32 %v1299, 128
          %v1316 = vadd.s32 %v1299, 136
          %s1317 = smul.u32 %s28, 128
          %s1318 = ssub.s32 %s1317, 8
          %v1319 = vstv %s1318
          %v1320 = vadd.s32 %v1319, %v1299
          %v1321 = vadd.s32 %v1319, %v1300
          %v1322 = vadd.s32 %v1319, %v1301
          %v1323 = vadd.s32 %v1319, %v1302
          %v1324 = vadd.s32 %v1319, %v1303
          %v1325 = vadd.s32 %v1319, %v1304
          %v1326 = vadd.s32 %v1319, %v1305
          %v1327 = vadd.s32 %v1319, %v1306
          %v1328 = vadd.s32 %v1319, %v1307
          %v1329 = vadd.s32 %v1319, %v1308
          %v1330 = vadd.s32 %v1319, %v1309
          %v1331 = vadd.s32 %v1319, %v1310
          %v1332 = vadd.s32 %v1319, %v1311
          %v1333 = vadd.s32 %v1319, %v1312
          %v1334 = vadd.s32 %v1319, %v1313
          %v1335 = vadd.s32 %v1319, %v1314
          %v1336 = vadd.s32 %v1319, %v1315
          %v1337 = vadd.s32 %v1319, %v1316
          %vm1338 = vcmp.ge.s32.totalorder %v1320, 0
          %vm1339 = vcmp.ge.s32.totalorder %v1321, 0
          %vm1340 = vcmp.ge.s32.totalorder %v1322, 0
          %vm1341 = vcmp.ge.s32.totalorder %v1323, 0
          %vm1342 = vcmp.ge.s32.totalorder %v1324, 0
          %vm1343 = vcmp.ge.s32.totalorder %v1325, 0
          %vm1344 = vcmp.ge.s32.totalorder %v1326, 0
          %vm1345 = vcmp.ge.s32.totalorder %v1327, 0
          %vm1346 = vcmp.ge.s32.totalorder %v1328, 0
          %vm1347 = vcmp.ge.s32.totalorder %v1329, 0
          %vm1348 = vcmp.ge.s32.totalorder %v1330, 0
          %vm1349 = vcmp.ge.s32.totalorder %v1331, 0
          %vm1350 = vcmp.ge.s32.totalorder %v1332, 0
          %vm1351 = vcmp.ge.s32.totalorder %v1333, 0
          %vm1352 = vcmp.ge.s32.totalorder %v1334, 0
          %vm1353 = vcmp.ge.s32.totalorder %v1335, 0
          %vm1354 = vcmp.ge.s32.totalorder %v1336, 0
          %vm1355 = vcmp.ge.s32.totalorder %v1337, 0
          %vm1356 = vcmp.lt.s32.totalorder %v1320, 300
          %vm1357 = vcmp.lt.s32.totalorder %v1321, 300
          %vm1358 = vcmp.lt.s32.totalorder %v1322, 300
          %vm1359 = vcmp.lt.s32.totalorder %v1323, 300
          %vm1360 = vcmp.lt.s32.totalorder %v1324, 300
          %vm1361 = vcmp.lt.s32.totalorder %v1325, 300
          %vm1362 = vcmp.lt.s32.totalorder %v1326, 300
          %vm1363 = vcmp.lt.s32.totalorder %v1327, 300
          %vm1364 = vcmp.lt.s32.totalorder %v1328, 300
          %vm1365 = vcmp.lt.s32.totalorder %v1329, 300
          %vm1366 = vcmp.lt.s32.totalorder %v1330, 300
          %vm1367 = vcmp.lt.s32.totalorder %v1331, 300
          %vm1368 = vcmp.lt.s32.totalorder %v1332, 300
          %vm1369 = vcmp.lt.s32.totalorder %v1333, 300
          %vm1370 = vcmp.lt.s32.totalorder %v1334, 300
          %vm1371 = vcmp.lt.s32.totalorder %v1335, 300
          %vm1372 = vcmp.lt.s32.totalorder %v1336, 300
          %vm1373 = vcmp.lt.s32.totalorder %v1337, 300
          %vm1374 = vmand %vm1338, %vm1356
          %vm1375 = vmand %vm1339, %vm1357
          %vm1376 = vmand %vm1340, %vm1358
          %vm1377 = vmand %vm1341, %vm1359
          %vm1378 = vmand %vm1342, %vm1360
          %vm1379 = vmand %vm1343, %vm1361
          %vm1380 = vmand %vm1344, %vm1362
          %vm1381 = vmand %vm1345, %vm1363
          %vm1382 = vmand %vm1346, %vm1364
          %vm1383 = vmand %vm1347, %vm1365
          %vm1384 = vmand %vm1348, %vm1366
          %vm1385 = vmand %vm1349, %vm1367
          %vm1386 = vmand %vm1350, %vm1368
          %vm1387 = vmand %vm1351, %vm1369
          %vm1388 = vmand %vm1352, %vm1370
          %vm1389 = vmand %vm1353, %vm1371
          %vm1390 = vmand %vm1354, %vm1372
          %vm1391 = vmand %vm1355, %vm1373
          %v1392 = vld [vmem:[#allocation2] sm:$0xff]
          %v1393 = vld [vmem:[#allocation2 + $0x8] sm:$0xff]
          %v1394 = vld [vmem:[#allocation2 + $0x10] sm:$0xff]
          %v1395 = vld [vmem:[#allocation2 + $0x18] sm:$0xff]
          %v1396 = vld [vmem:[#allocation2 + $0x20] sm:$0xff]
          %v1397 = vld [vmem:[#allocation2 + $0x28] sm:$0xff]
          %v1398 = vld [vmem:[#allocation2 + $0x30] sm:$0xff]
          %v1399 = vld [vmem:[#allocation2 + $0x38] sm:$0xff]
          %v1400 = vld [vmem:[#allocation2 + $0x40] sm:$0xff]
          %v1401 = vld [vmem:[#allocation2 + $0x48] sm:$0xff]
          %v1402 = vld [vmem:[#allocation2 + $0x50] sm:$0xff]
          %v1403 = vld [vmem:[#allocation2 + $0x58] sm:$0xff]
          %v1404 = vld [vmem:[#allocation2 + $0x60] sm:$0xff]
          %v1405 = vld [vmem:[#allocation2 + $0x68] sm:$0xff]
          %v1406 = vld [vmem:[#allocation2 + $0x70] sm:$0xff]
          %v1407 = vld [vmem:[#allocation2 + $0x78] sm:$0xff]
          %v1408 = vld [vmem:[#allocation2 + $0x80] sm:$0xff]
          %v1409 = vld [vmem:[#allocation2 + $0x88] sm:$0xff]
          %v1410 = vsel %vm1374, 1, 0
          %v1411 = vsel %vm1375, 1, 0
          %v1412 = vsel %vm1376, 1, 0
          %v1413 = vsel %vm1377, 1, 0
          %v1414 = vsel %vm1378, 1, 0
          %v1415 = vsel %vm1379, 1, 0
          %v1416 = vsel %vm1380, 1, 0
          %v1417 = vsel %vm1381, 1, 0
          %v1418 = vsel %vm1382, 1, 0
          %v1419 = vsel %vm1383, 1, 0
          %v1420 = vsel %vm1384, 1, 0
          %v1421 = vsel %vm1385, 1, 0
          %v1422 = vsel %vm1386, 1, 0
          %v1423 = vsel %vm1387, 1, 0
          %v1424 = vsel %vm1388, 1, 0
          %v1425 = vsel %vm1389, 1, 0
          %v1426 = vsel %vm1390, 1, 0
          %v1427 = vsel %vm1391, 1, 0
          %vm1428 = vcmp.eq.s32.totalorder %v1410, 1
          %vm1429 = vcmp.eq.s32.totalorder %v1411, 1
          %vm1430 = vcmp.eq.s32.totalorder %v1412, 1
          %vm1431 = vcmp.eq.s32.totalorder %v1413, 1
          %vm1432 = vcmp.eq.s32.totalorder %v1414, 1
          %vm1433 = vcmp.eq.s32.totalorder %v1415, 1
          %vm1434 = vcmp.eq.s32.totalorder %v1416, 1
          %vm1435 = vcmp.eq.s32.totalorder %v1417, 1
          %vm1436 = vcmp.eq.s32.totalorder %v1418, 1
          %vm1437 = vcmp.eq.s32.totalorder %v1419, 1
          %vm1438 = vcmp.eq.s32.totalorder %v1420, 1
          %vm1439 = vcmp.eq.s32.totalorder %v1421, 1
          %vm1440 = vcmp.eq.s32.totalorder %v1422, 1
          %vm1441 = vcmp.eq.s32.totalorder %v1423, 1
          %vm1442 = vcmp.eq.s32.totalorder %v1424, 1
          %vm1443 = vcmp.eq.s32.totalorder %v1425, 1
          %vm1444 = vcmp.eq.s32.totalorder %v1426, 1
          %vm1445 = vcmp.eq.s32.totalorder %v1427, 1
          %v1446 = vsel %vm1428, %v1392, 0.0
          %v1447 = vsel %vm1429, %v1393, 0.0
          %v1448 = vsel %vm1430, %v1394, 0.0
          %v1449 = vsel %vm1431, %v1395, 0.0
          %v1450 = vsel %vm1432, %v1396, 0.0
          %v1451 = vsel %vm1433, %v1397, 0.0
          %v1452 = vsel %vm1434, %v1398, 0.0
          %v1453 = vsel %vm1435, %v1399, 0.0
          %v1454 = vsel %vm1436, %v1400, 0.0
          %v1455 = vsel %vm1437, %v1401, 0.0
          %v1456 = vsel %vm1438, %v1402, 0.0
          %v1457 = vsel %vm1439, %v1403, 0.0
          %v1458 = vsel %vm1440, %v1404, 0.0
          %v1459 = vsel %vm1441, %v1405, 0.0
          %v1460 = vsel %vm1442, %v1406, 0.0
          %v1461 = vsel %vm1443, %v1407, 0.0
          %v1462 = vsel %vm1444, %v1408, 0.0
          %v1463 = vsel %vm1445, %v1409, 0.0
          %1464 = vst [vmem:[#allocation2] sm:$0xff] %v1446
          %1465 = vst [vmem:[#allocation2 + $0x8] sm:$0xff] %v1447
          %1466 = vst [vmem:[#allocation2 + $0x10] sm:$0xff] %v1448
          %1467 = vst [vmem:[#allocation2 + $0x18] sm:$0xff] %v1449
          %1468 = vst [vmem:[#allocation2 + $0x20] sm:$0xff] %v1450
          %1469 = vst [vmem:[#allocation2 + $0x28] sm:$0xff] %v1451
          %1470 = vst [vmem:[#allocation2 + $0x30] sm:$0xff] %v1452
          %1471 = vst [vmem:[#allocation2 + $0x38] sm:$0xff] %v1453
          %1472 = vst [vmem:[#allocation2 + $0x40] sm:$0xff] %v1454
          %1473 = vst [vmem:[#allocation2 + $0x48] sm:$0xff] %v1455
          %1474 = vst [vmem:[#allocation2 + $0x50] sm:$0xff] %v1456
          %1475 = vst [vmem:[#allocation2 + $0x58] sm:$0xff] %v1457
          %1476 = vst [vmem:[#allocation2 + $0x60] sm:$0xff] %v1458
          %1477 = vst [vmem:[#allocation2 + $0x68] sm:$0xff] %v1459
          %1478 = vst [vmem:[#allocation2 + $0x70] sm:$0xff] %v1460
          %1479 = vst [vmem:[#allocation2 + $0x78] sm:$0xff] %v1461
          %1480 = vst [vmem:[#allocation2 + $0x80] sm:$0xff] %v1462
          %1481 = vst [vmem:[#allocation2 + $0x88] sm:$0xff] %v1463
        $region72: #{tpu_custom_call.1} parent=67 // pred_fallthru
          _
        %v1482 = vld [vmem:[%s8] sm:$0xff]
        %v1483 = vld [vmem:[%s8 + $0x8] sm:$0xff]
        %v1484 = vld [vmem:[%s8 + $0x10] sm:$0x1]
        %v1485 = vld [vmem:[#allocation2 + $0x10] sm:$0xff]
        %v1486 = vld [vmem:[#allocation2 + $0x18] sm:$0xff]
        %v1487 = vld [vmem:[#allocation2 + $0x20] sm:$0xff]
        %v1488 = vld [vmem:[#allocation2 + $0x28] sm:$0xff]
        %v1489 = vlaneseq
        %v1490 = vshrl.u32 %v1489, 7
        %v1491 = vsub.s32 0, %v1490
        %v1492 = vrot.slane %v1484, %v1491
        %v1493 = vmul.f32 %v1485, %v1492
        %v1494 = vmul.f32 %v1486, %v1492
        %v1495 = vmul.f32 %v1487, %v1492
        %v1496 = vmul.f32 %v1488, %v1492
        %v1497 = vld [vmem:[#allocation2] sm:$0xff]
        %v1498 = vld [vmem:[#allocation2 + $0x8] sm:$0xff]
        %v1499 = vlaneseq
        %v1500 = vshrl.u32 %v1499, 7
        %v1501 = vsub.s32 0, %v1500
        %v1502 = vrot.slane %v1482, %v1501
        %v1503 = vmul.f32 %v1497, %v1502
        %v1504 = vmul.f32 %v1498, %v1502
        %v1505 = vmul.f32 %v1485, %v1502
        %v1506 = vmul.f32 %v1486, %v1502
        %v1507 = vadd.f32 %v1493, %v1503
        %v1508 = vadd.f32 %v1494, %v1504
        %v1509 = vadd.f32 %v1495, %v1505
        %v1510 = vadd.f32 %v1496, %v1506
        %v1511 = vlaneseq
        %v1512 = vshrl.u32 %v1511, 7
        %v1513 = vsub.s32 0, %v1512
        %v1514 = vrot.slane %v1483, %v1513
        %v1515 = vmul.f32 %v1498, %v1514
        %v1516 = vmul.f32 %v1485, %v1514
        %v1517 = vmul.f32 %v1486, %v1514
        %v1518 = vmul.f32 %v1487, %v1514
        %v1519 = vadd.f32 %v1507, %v1515
        %v1520 = vadd.f32 %v1508, %v1516
        %v1521 = vadd.f32 %v1509, %v1517
        %v1522 = vadd.f32 %v1510, %v1518
        %v1523 = vld [vmem:[#allocation2 + $0x1] sm:$0xff]
        %v1524 = vld [vmem:[#allocation2 + $0x9] sm:$0xff]
        %v1525 = vld [vmem:[#allocation2 + $0x11] sm:$0xff]
        %v1526 = vld [vmem:[#allocation2 + $0x19] sm:$0xff]
        %v1527 = vld [vmem:[#allocation2 + $0x21] sm:$0xff]
        %v1528 = vlaneseq
        %v1529 = vshrl.u32 %v1528, 7
        %v1530 = vsub.s32 1, %v1529
        %v1531 = vrot.slane %v1482, %v1530
        %v1532 = vmul.f32 %v1523, %v1531
        %v1533 = vmul.f32 %v1524, %v1531
        %v1534 = vmul.f32 %v1525, %v1531
        %v1535 = vmul.f32 %v1526, %v1531
        %v1536 = vadd.f32 %v1519, %v1532
        %v1537 = vadd.f32 %v1520, %v1533
        %v1538 = vadd.f32 %v1521, %v1534
        %v1539 = vadd.f32 %v1522, %v1535
        %v1540 = vlaneseq
        %v1541 = vshrl.u32 %v1540, 7
        %v1542 = vsub.s32 1, %v1541
        %v1543 = vrot.slane %v1483, %v1542
        %v1544 = vmul.f32 %v1524, %v1543
        %v1545 = vmul.f32 %v1525, %v1543
        %v1546 = vmul.f32 %v1526, %v1543
        %v1547 = vmul.f32 %v1527, %v1543
        %v1548 = vadd.f32 %v1536, %v1544
        %v1549 = vadd.f32 %v1537, %v1545
        %v1550 = vadd.f32 %v1538, %v1546
        %v1551 = vadd.f32 %v1539, %v1547
        %v1552 = vld [vmem:[#allocation2 + $0x2] sm:$0xff]
        %v1553 = vld [vmem:[#allocation2 + $0xa] sm:$0xff]
        %v1554 = vld [vmem:[#allocation2 + $0x12] sm:$0xff]
        %v1555 = vld [vmem:[#allocation2 + $0x1a] sm:$0xff]
        %v1556 = vld [vmem:[#allocation2 + $0x22] sm:$0xff]
        %v1557 = vlaneseq
        %v1558 = vshrl.u32 %v1557, 7
        %v1559 = vsub.s32 2, %v1558
        %v1560 = vrot.slane %v1482, %v1559
        %v1561 = vmul.f32 %v1552, %v1560
        %v1562 = vmul.f32 %v1553, %v1560
        %v1563 = vmul.f32 %v1554, %v1560
        %v1564 = vmul.f32 %v1555, %v1560
        %v1565 = vadd.f32 %v1548, %v1561
        %v1566 = vadd.f32 %v1549, %v1562
        %v1567 = vadd.f32 %v1550, %v1563
        %v1568 = vadd.f32 %v1551, %v1564
        %v1569 = vlaneseq
        %v1570 = vshrl.u32 %v1569, 7
        %v1571 = vsub.s32 2, %v1570
        %v1572 = vrot.slane %v1483, %v1571
        %v1573 = vmul.f32 %v1553, %v1572
        %v1574 = vmul.f32 %v1554, %v1572
        %v1575 = vmul.f32 %v1555, %v1572
        %v1576 = vmul.f32 %v1556, %v1572
        %v1577 = vadd.f32 %v1565, %v1573
        %v1578 = vadd.f32 %v1566, %v1574
        %v1579 = vadd.f32 %v1567, %v1575
        %v1580 = vadd.f32 %v1568, %v1576
        %v1581 = vld [vmem:[#allocation2 + $0x3] sm:$0xff]
        %v1582 = vld [vmem:[#allocation2 + $0xb] sm:$0xff]
        %v1583 = vld [vmem:[#allocation2 + $0x13] sm:$0xff]
        %v1584 = vld [vmem:[#allocation2 + $0x1b] sm:$0xff]
        %v1585 = vld [vmem:[#allocation2 + $0x23] sm:$0xff]
        %v1586 = vlaneseq
        %v1587 = vshrl.u32 %v1586, 7
        %v1588 = vsub.s32 3, %v1587
        %v1589 = vrot.slane %v1482, %v1588
        %v1590 = vmul.f32 %v1581, %v1589
        %v1591 = vmul.f32 %v1582, %v1589
        %v1592 = vmul.f32 %v1583, %v1589
        %v1593 = vmul.f32 %v1584, %v1589
        %v1594 = vadd.f32 %v1577, %v1590
        %v1595 = vadd.f32 %v1578, %v1591
        %v1596 = vadd.f32 %v1579, %v1592
        %v1597 = vadd.f32 %v1580, %v1593
        %v1598 = vlaneseq
        %v1599 = vshrl.u32 %v1598, 7
        %v1600 = vsub.s32 3, %v1599
        %v1601 = vrot.slane %v1483, %v1600
        %v1602 = vmul.f32 %v1582, %v1601
        %v1603 = vmul.f32 %v1583, %v1601
        %v1604 = vmul.f32 %v1584, %v1601
        %v1605 = vmul.f32 %v1585, %v1601
        %v1606 = vadd.f32 %v1594, %v1602
        %v1607 = vadd.f32 %v1595, %v1603
        %v1608 = vadd.f32 %v1596, %v1604
        %v1609 = vadd.f32 %v1597, %v1605
        %v1610 = vld [vmem:[#allocation2 + $0x4] sm:$0xff]
        %v1611 = vld [vmem:[#allocation2 + $0xc] sm:$0xff]
        %v1612 = vld [vmem:[#allocation2 + $0x14] sm:$0xff]
        %v1613 = vld [vmem:[#allocation2 + $0x1c] sm:$0xff]
        %v1614 = vld [vmem:[#allocation2 + $0x24] sm:$0xff]
        %v1615 = vlaneseq
        %v1616 = vshrl.u32 %v1615, 7
        %v1617 = vsub.s32 4, %v1616
        %v1618 = vrot.slane %v1482, %v1617
        %v1619 = vmul.f32 %v1610, %v1618
        %v1620 = vmul.f32 %v1611, %v1618
        %v1621 = vmul.f32 %v1612, %v1618
        %v1622 = vmul.f32 %v1613, %v1618
        %v1623 = vadd.f32 %v1606, %v1619
        %v1624 = vadd.f32 %v1607, %v1620
        %v1625 = vadd.f32 %v1608, %v1621
        %v1626 = vadd.f32 %v1609, %v1622
        %v1627 = vlaneseq
        %v1628 = vshrl.u32 %v1627, 7
        %v1629 = vsub.s32 4, %v1628
        %v1630 = vrot.slane %v1483, %v1629
        %v1631 = vmul.f32 %v1611, %v1630
        %v1632 = vmul.f32 %v1612, %v1630
        %v1633 = vmul.f32 %v1613, %v1630
        %v1634 = vmul.f32 %v1614, %v1630
        %v1635 = vadd.f32 %v1623, %v1631
        %v1636 = vadd.f32 %v1624, %v1632
        %v1637 = vadd.f32 %v1625, %v1633
        %v1638 = vadd.f32 %v1626, %v1634
        %v1639 = vld [vmem:[#allocation2 + $0x5] sm:$0xff]
        %v1640 = vld [vmem:[#allocation2 + $0xd] sm:$0xff]
        %v1641 = vld [vmem:[#allocation2 + $0x15] sm:$0xff]
        %v1642 = vld [vmem:[#allocation2 + $0x1d] sm:$0xff]
        %v1643 = vld [vmem:[#allocation2 + $0x25] sm:$0xff]
        %v1644 = vlaneseq
        %v1645 = vshrl.u32 %v1644, 7
        %v1646 = vsub.s32 5, %v1645
        %v1647 = vrot.slane %v1482, %v1646
        %v1648 = vmul.f32 %v1639, %v1647
        %v1649 = vmul.f32 %v1640, %v1647
        %v1650 = vmul.f32 %v1641, %v1647
        %v1651 = vmul.f32 %v1642, %v1647
        %v1652 = vadd.f32 %v1635, %v1648
        %v1653 = vadd.f32 %v1636, %v1649
        %v1654 = vadd.f32 %v1637, %v1650
        %v1655 = vadd.f32 %v1638, %v1651
        %v1656 = vlaneseq
        %v1657 = vshrl.u32 %v1656, 7
        %v1658 = vsub.s32 5, %v1657
        %v1659 = vrot.slane %v1483, %v1658
        %v1660 = vmul.f32 %v1640, %v1659
        %v1661 = vmul.f32 %v1641, %v1659
        %v1662 = vmul.f32 %v1642, %v1659
        %v1663 = vmul.f32 %v1643, %v1659
        %v1664 = vadd.f32 %v1652, %v1660
        %v1665 = vadd.f32 %v1653, %v1661
        %v1666 = vadd.f32 %v1654, %v1662
        %v1667 = vadd.f32 %v1655, %v1663
        %v1668 = vld [vmem:[#allocation2 + $0x6] sm:$0xff]
        %v1669 = vld [vmem:[#allocation2 + $0xe] sm:$0xff]
        %v1670 = vld [vmem:[#allocation2 + $0x16] sm:$0xff]
        %v1671 = vld [vmem:[#allocation2 + $0x1e] sm:$0xff]
        %v1672 = vld [vmem:[#allocation2 + $0x26] sm:$0xff]
        %v1673 = vlaneseq
        %v1674 = vshrl.u32 %v1673, 7
        %v1675 = vsub.s32 6, %v1674
        %v1676 = vrot.slane %v1482, %v1675
        %v1677 = vmul.f32 %v1668, %v1676
        %v1678 = vmul.f32 %v1669, %v1676
        %v1679 = vmul.f32 %v1670, %v1676
        %v1680 = vmul.f32 %v1671, %v1676
        %v1681 = vadd.f32 %v1664, %v1677
        %v1682 = vadd.f32 %v1665, %v1678
        %v1683 = vadd.f32 %v1666, %v1679
        %v1684 = vadd.f32 %v1667, %v1680
        %v1685 = vlaneseq
        %v1686 = vshrl.u32 %v1685, 7
        %v1687 = vsub.s32 6, %v1686
        %v1688 = vrot.slane %v1483, %v1687
        %v1689 = vmul.f32 %v1669, %v1688
        %v1690 = vmul.f32 %v1670, %v1688
        %v1691 = vmul.f32 %v1671, %v1688
        %v1692 = vmul.f32 %v1672, %v1688
        %v1693 = vadd.f32 %v1681, %v1689
        %v1694 = vadd.f32 %v1682, %v1690
        %v1695 = vadd.f32 %v1683, %v1691
        %v1696 = vadd.f32 %v1684, %v1692
        %v1697 = vld [vmem:[#allocation2 + $0x7] sm:$0xff]
        %v1698 = vld [vmem:[#allocation2 + $0xf] sm:$0xff]
        %v1699 = vld [vmem:[#allocation2 + $0x17] sm:$0xff]
        %v1700 = vld [vmem:[#allocation2 + $0x1f] sm:$0xff]
        %v1701 = vld [vmem:[#allocation2 + $0x27] sm:$0xff]
        %v1702 = vlaneseq
        %v1703 = vshrl.u32 %v1702, 7
        %v1704 = vsub.s32 7, %v1703
        %v1705 = vrot.slane %v1482, %v1704
        %v1706 = vmul.f32 %v1697, %v1705
        %v1707 = vmul.f32 %v1698, %v1705
        %v1708 = vmul.f32 %v1699, %v1705
        %v1709 = vmul.f32 %v1700, %v1705
        %v1710 = vadd.f32 %v1693, %v1706
        %v1711 = vadd.f32 %v1694, %v1707
        %v1712 = vadd.f32 %v1695, %v1708
        %v1713 = vadd.f32 %v1696, %v1709
        %v1714 = vlaneseq
        %v1715 = vshrl.u32 %v1714, 7
        %v1716 = vsub.s32 7, %v1715
        %v1717 = vrot.slane %v1483, %v1716
        %v1718 = vmul.f32 %v1698, %v1717
        %v1719 = vmul.f32 %v1699, %v1717
        %v1720 = vmul.f32 %v1700, %v1717
        %v1721 = vmul.f32 %v1701, %v1717
        %v1722 = vadd.f32 %v1710, %v1718
        %v1723 = vadd.f32 %v1711, %v1719
        %v1724 = vadd.f32 %v1712, %v1720
        %v1725 = vadd.f32 %v1713, %v1721
        %1726 = vst [vmem:[#allocation3] sm:$0xff] %v1722
        %1727 = vst [vmem:[#allocation3 + $0x8] sm:$0xff] %v1723
        %1728 = vst [vmem:[#allocation3 + $0x10] sm:$0xff] %v1724
        %1729 = vst [vmem:[#allocation3 + $0x18] sm:$0xff] %v1725
        %v1730 = vld [vmem:[#allocation2 + $0x30] sm:$0xff]
        %v1731 = vld [vmem:[#allocation2 + $0x38] sm:$0xff]
        %v1732 = vld [vmem:[#allocation2 + $0x40] sm:$0xff]
        %v1733 = vld [vmem:[#allocation2 + $0x48] sm:$0xff]
        %v1734 = vmul.f32 %v1730, %v1492
        %v1735 = vmul.f32 %v1731, %v1492
        %v1736 = vmul.f32 %v1732, %v1492
        %v1737 = vmul.f32 %v1733, %v1492
        %v1738 = vld [vmem:[#allocation2 + $0x20] sm:$0xff]
        %v1739 = vld [vmem:[#allocation2 + $0x28] sm:$0xff]
        %v1740 = vmul.f32 %v1738, %v1502
        %v1741 = vmul.f32 %v1739, %v1502
        %v1742 = vmul.f32 %v1730, %v1502
        %v1743 = vmul.f32 %v1731, %v1502
        %v1744 = vadd.f32 %v1734, %v1740
        %v1745 = vadd.f32 %v1735, %v1741
        %v1746 = vadd.f32 %v1736, %v1742
        %v1747 = vadd.f32 %v1737, %v1743
        %v1748 = vmul.f32 %v1739, %v1514
        %v1749 = vmul.f32 %v1730, %v1514
        %v1750 = vmul.f32 %v1731, %v1514
        %v1751 = vmul.f32 %v1732, %v1514
        %v1752 = vadd.f32 %v1744, %v1748
        %v1753 = vadd.f32 %v1745, %v1749
        %v1754 = vadd.f32 %v1746, %v1750
        %v1755 = vadd.f32 %v1747, %v1751
        %v1756 = vld [vmem:[#allocation2 + $0x21] sm:$0xff]
        %v1757 = vld [vmem:[#allocation2 + $0x29] sm:$0xff]
        %v1758 = vld [vmem:[#allocation2 + $0x31] sm:$0xff]
        %v1759 = vld [vmem:[#allocation2 + $0x39] sm:$0xff]
        %v1760 = vld [vmem:[#allocation2 + $0x41] sm:$0xff]
        %v1761 = vmul.f32 %v1756, %v1531
        %v1762 = vmul.f32 %v1757, %v1531
        %v1763 = vmul.f32 %v1758, %v1531
        %v1764 = vmul.f32 %v1759, %v1531
        %v1765 = vadd.f32 %v1752, %v1761
        %v1766 = vadd.f32 %v1753, %v1762
        %v1767 = vadd.f32 %v1754, %v1763
        %v1768 = vadd.f32 %v1755, %v1764
        %v1769 = vmul.f32 %v1757, %v1543
        %v1770 = vmul.f32 %v1758, %v1543
        %v1771 = vmul.f32 %v1759, %v1543
        %v1772 = vmul.f32 %v1760, %v1543
        %v1773 = vadd.f32 %v1765, %v1769
        %v1774 = vadd.f32 %v1766, %v1770
        %v1775 = vadd.f32 %v1767, %v1771
        %v1776 = vadd.f32 %v1768, %v1772
        %v1777 = vld [vmem:[#allocation2 + $0x22] sm:$0xff]
        %v1778 = vld [vmem:[#allocation2 + $0x2a] sm:$0xff]
        %v1779 = vld [vmem:[#allocation2 + $0x32] sm:$0xff]
        %v1780 = vld [vmem:[#allocation2 + $0x3a] sm:$0xff]
        %v1781 = vld [vmem:[#allocation2 + $0x42] sm:$0xff]
        %v1782 = vmul.f32 %v1777, %v1560
        %v1783 = vmul.f32 %v1778, %v1560
        %v1784 = vmul.f32 %v1779, %v1560
        %v1785 = vmul.f32 %v1780, %v1560
        %v1786 = vadd.f32 %v1773, %v1782
        %v1787 = vadd.f32 %v1774, %v1783
        %v1788 = vadd.f32 %v1775, %v1784
        %v1789 = vadd.f32 %v1776, %v1785
        %v1790 = vmul.f32 %v1778, %v1572
        %v1791 = vmul.f32 %v1779, %v1572
        %v1792 = vmul.f32 %v1780, %v1572
        %v1793 = vmul.f32 %v1781, %v1572
        %v1794 = vadd.f32 %v1786, %v1790
        %v1795 = vadd.f32 %v1787, %v1791
        %v1796 = vadd.f32 %v1788, %v1792
        %v1797 = vadd.f32 %v1789, %v1793
        %v1798 = vld [vmem:[#allocation2 + $0x23] sm:$0xff]
        %v1799 = vld [vmem:[#allocation2 + $0x2b] sm:$0xff]
        %v1800 = vld [vmem:[#allocation2 + $0x33] sm:$0xff]
        %v1801 = vld [vmem:[#allocation2 + $0x3b] sm:$0xff]
        %v1802 = vld [vmem:[#allocation2 + $0x43] sm:$0xff]
        %v1803 = vmul.f32 %v1798, %v1589
        %v1804 = vmul.f32 %v1799, %v1589
        %v1805 = vmul.f32 %v1800, %v1589
        %v1806 = vmul.f32 %v1801, %v1589
        %v1807 = vadd.f32 %v1794, %v1803
        %v1808 = vadd.f32 %v1795, %v1804
        %v1809 = vadd.f32 %v1796, %v1805
        %v1810 = vadd.f32 %v1797, %v1806
        %v1811 = vmul.f32 %v1799, %v1601
        %v1812 = vmul.f32 %v1800, %v1601
        %v1813 = vmul.f32 %v1801, %v1601
        %v1814 = vmul.f32 %v1802, %v1601
        %v1815 = vadd.f32 %v1807, %v1811
        %v1816 = vadd.f32 %v1808, %v1812
        %v1817 = vadd.f32 %v1809, %v1813
        %v1818 = vadd.f32 %v1810, %v1814
        %v1819 = vld [vmem:[#allocation2 + $0x24] sm:$0xff]
        %v1820 = vld [vmem:[#allocation2 + $0x2c] sm:$0xff]
        %v1821 = vld [vmem:[#allocation2 + $0x34] sm:$0xff]
        %v1822 = vld [vmem:[#allocation2 + $0x3c] sm:$0xff]
        %v1823 = vld [vmem:[#allocation2 + $0x44] sm:$0xff]
        %v1824 = vmul.f32 %v1819, %v1618
        %v1825 = vmul.f32 %v1820, %v1618
        %v1826 = vmul.f32 %v1821, %v1618
        %v1827 = vmul.f32 %v1822, %v1618
        %v1828 = vadd.f32 %v1815, %v1824
        %v1829 = vadd.f32 %v1816, %v1825
        %v1830 = vadd.f32 %v1817, %v1826
        %v1831 = vadd.f32 %v1818, %v1827
        %v1832 = vmul.f32 %v1820, %v1630
        %v1833 = vmul.f32 %v1821, %v1630
        %v1834 = vmul.f32 %v1822, %v1630
        %v1835 = vmul.f32 %v1823, %v1630
        %v1836 = vadd.f32 %v1828, %v1832
        %v1837 = vadd.f32 %v1829, %v1833
        %v1838 = vadd.f32 %v1830, %v1834
        %v1839 = vadd.f32 %v1831, %v1835
        %v1840 = vld [vmem:[#allocation2 + $0x25] sm:$0xff]
        %v1841 = vld [vmem:[#allocation2 + $0x2d] sm:$0xff]
        %v1842 = vld [vmem:[#allocation2 + $0x35] sm:$0xff]
        %v1843 = vld [vmem:[#allocation2 + $0x3d] sm:$0xff]
        %v1844 = vld [vmem:[#allocation2 + $0x45] sm:$0xff]
        %v1845 = vmul.f32 %v1840, %v1647
        %v1846 = vmul.f32 %v1841, %v1647
        %v1847 = vmul.f32 %v1842, %v1647
        %v1848 = vmul.f32 %v1843, %v1647
        %v1849 = vadd.f32 %v1836, %v1845
        %v1850 = vadd.f32 %v1837, %v1846
        %v1851 = vadd.f32 %v1838, %v1847
        %v1852 = vadd.f32 %v1839, %v1848
        %v1853 = vmul.f32 %v1841, %v1659
        %v1854 = vmul.f32 %v1842, %v1659
        %v1855 = vmul.f32 %v1843, %v1659
        %v1856 = vmul.f32 %v1844, %v1659
        %v1857 = vadd.f32 %v1849, %v1853
        %v1858 = vadd.f32 %v1850, %v1854
        %v1859 = vadd.f32 %v1851, %v1855
        %v1860 = vadd.f32 %v1852, %v1856
        %v1861 = vld [vmem:[#allocation2 + $0x26] sm:$0xff]
        %v1862 = vld [vmem:[#allocation2 + $0x2e] sm:$0xff]
        %v1863 = vld [vmem:[#allocation2 + $0x36] sm:$0xff]
        %v1864 = vld [vmem:[#allocation2 + $0x3e] sm:$0xff]
        %v1865 = vld [vmem:[#allocation2 + $0x46] sm:$0xff]
        %v1866 = vmul.f32 %v1861, %v1676
        %v1867 = vmul.f32 %v1862, %v1676
        %v1868 = vmul.f32 %v1863, %v1676
        %v1869 = vmul.f32 %v1864, %v1676
        %v1870 = vadd.f32 %v1857, %v1866
        %v1871 = vadd.f32 %v1858, %v1867
        %v1872 = vadd.f32 %v1859, %v1868
        %v1873 = vadd.f32 %v1860, %v1869
        %v1874 = vmul.f32 %v1862, %v1688
        %v1875 = vmul.f32 %v1863, %v1688
        %v1876 = vmul.f32 %v1864, %v1688
        %v1877 = vmul.f32 %v1865, %v1688
        %v1878 = vadd.f32 %v1870, %v1874
        %v1879 = vadd.f32 %v1871, %v1875
        %v1880 = vadd.f32 %v1872, %v1876
        %v1881 = vadd.f32 %v1873, %v1877
        %v1882 = vld [vmem:[#allocation2 + $0x27] sm:$0xff]
        %v1883 = vld [vmem:[#allocation2 + $0x2f] sm:$0xff]
        %v1884 = vld [vmem:[#allocation2 + $0x37] sm:$0xff]
        %v1885 = vld [vmem:[#allocation2 + $0x3f] sm:$0xff]
        %v1886 = vld [vmem:[#allocation2 + $0x47] sm:$0xff]
        %v1887 = vmul.f32 %v1882, %v1705
        %v1888 = vmul.f32 %v1883, %v1705
        %v1889 = vmul.f32 %v1884, %v1705
        %v1890 = vmul.f32 %v1885, %v1705
        %v1891 = vadd.f32 %v1878, %v1887
        %v1892 = vadd.f32 %v1879, %v1888
        %v1893 = vadd.f32 %v1880, %v1889
        %v1894 = vadd.f32 %v1881, %v1890
        %v1895 = vmul.f32 %v1883, %v1717
        %v1896 = vmul.f32 %v1884, %v1717
        %v1897 = vmul.f32 %v1885, %v1717
        %v1898 = vmul.f32 %v1886, %v1717
        %v1899 = vadd.f32 %v1891, %v1895
        %v1900 = vadd.f32 %v1892, %v1896
        %v1901 = vadd.f32 %v1893, %v1897
        %v1902 = vadd.f32 %v1894, %v1898
        %1903 = vst [vmem:[#allocation3 + $0x20] sm:$0xff] %v1899
        %1904 = vst [vmem:[#allocation3 + $0x28] sm:$0xff] %v1900
        %1905 = vst [vmem:[#allocation3 + $0x30] sm:$0xff] %v1901
        %1906 = vst [vmem:[#allocation3 + $0x38] sm:$0xff] %v1902
        %v1907 = vld [vmem:[#allocation2 + $0x50] sm:$0xff]
        %v1908 = vld [vmem:[#allocation2 + $0x58] sm:$0xff]
        %v1909 = vld [vmem:[#allocation2 + $0x60] sm:$0xff]
        %v1910 = vld [vmem:[#allocation2 + $0x68] sm:$0xff]
        %v1911 = vmul.f32 %v1907, %v1492
        %v1912 = vmul.f32 %v1908, %v1492
        %v1913 = vmul.f32 %v1909, %v1492
        %v1914 = vmul.f32 %v1910, %v1492
        %v1915 = vld [vmem:[#allocation2 + $0x40] sm:$0xff]
        %v1916 = vld [vmem:[#allocation2 + $0x48] sm:$0xff]
        %v1917 = vmul.f32 %v1915, %v1502
        %v1918 = vmul.f32 %v1916, %v1502
        %v1919 = vmul.f32 %v1907, %v1502
        %v1920 = vmul.f32 %v1908, %v1502
        %v1921 = vadd.f32 %v1911, %v1917
        %v1922 = vadd.f32 %v1912, %v1918
        %v1923 = vadd.f32 %v1913, %v1919
        %v1924 = vadd.f32 %v1914, %v1920
        %v1925 = vmul.f32 %v1916, %v1514
        %v1926 = vmul.f32 %v1907, %v1514
        %v1927 = vmul.f32 %v1908, %v1514
        %v1928 = vmul.f32 %v1909, %v1514
        %v1929 = vadd.f32 %v1921, %v1925
        %v1930 = vadd.f32 %v1922, %v1926
        %v1931 = vadd.f32 %v1923, %v1927
        %v1932 = vadd.f32 %v1924, %v1928
        %v1933 = vld [vmem:[#allocation2 + $0x41] sm:$0xff]
        %v1934 = vld [vmem:[#allocation2 + $0x49] sm:$0xff]
        %v1935 = vld [vmem:[#allocation2 + $0x51] sm:$0xff]
        %v1936 = vld [vmem:[#allocation2 + $0x59] sm:$0xff]
        %v1937 = vld [vmem:[#allocation2 + $0x61] sm:$0xff]
        %v1938 = vmul.f32 %v1933, %v1531
        %v1939 = vmul.f32 %v1934, %v1531
        %v1940 = vmul.f32 %v1935, %v1531
        %v1941 = vmul.f32 %v1936, %v1531
        %v1942 = vadd.f32 %v1929, %v1938
        %v1943 = vadd.f32 %v1930, %v1939
        %v1944 = vadd.f32 %v1931, %v1940
        %v1945 = vadd.f32 %v1932, %v1941
        %v1946 = vmul.f32 %v1934, %v1543
        %v1947 = vmul.f32 %v1935, %v1543
        %v1948 = vmul.f32 %v1936, %v1543
        %v1949 = vmul.f32 %v1937, %v1543
        %v1950 = vadd.f32 %v1942, %v1946
        %v1951 = vadd.f32 %v1943, %v1947
        %v1952 = vadd.f32 %v1944, %v1948
        %v1953 = vadd.f32 %v1945, %v1949
        %v1954 = vld [vmem:[#allocation2 + $0x42] sm:$0xff]
        %v1955 = vld [vmem:[#allocation2 + $0x4a] sm:$0xff]
        %v1956 = vld [vmem:[#allocation2 + $0x52] sm:$0xff]
        %v1957 = vld [vmem:[#allocation2 + $0x5a] sm:$0xff]
        %v1958 = vld [vmem:[#allocation2 + $0x62] sm:$0xff]
        %v1959 = vmul.f32 %v1954, %v1560
        %v1960 = vmul.f32 %v1955, %v1560
        %v1961 = vmul.f32 %v1956, %v1560
        %v1962 = vmul.f32 %v1957, %v1560
        %v1963 = vadd.f32 %v1950, %v1959
        %v1964 = vadd.f32 %v1951, %v1960
        %v1965 = vadd.f32 %v1952, %v1961
        %v1966 = vadd.f32 %v1953, %v1962
        %v1967 = vmul.f32 %v1955, %v1572
        %v1968 = vmul.f32 %v1956, %v1572
        %v1969 = vmul.f32 %v1957, %v1572
        %v1970 = vmul.f32 %v1958, %v1572
        %v1971 = vadd.f32 %v1963, %v1967
        %v1972 = vadd.f32 %v1964, %v1968
        %v1973 = vadd.f32 %v1965, %v1969
        %v1974 = vadd.f32 %v1966, %v1970
        %v1975 = vld [vmem:[#allocation2 + $0x43] sm:$0xff]
        %v1976 = vld [vmem:[#allocation2 + $0x4b] sm:$0xff]
        %v1977 = vld [vmem:[#allocation2 + $0x53] sm:$0xff]
        %v1978 = vld [vmem:[#allocation2 + $0x5b] sm:$0xff]
        %v1979 = vld [vmem:[#allocation2 + $0x63] sm:$0xff]
        %v1980 = vmul.f32 %v1975, %v1589
        %v1981 = vmul.f32 %v1976, %v1589
        %v1982 = vmul.f32 %v1977, %v1589
        %v1983 = vmul.f32 %v1978, %v1589
        %v1984 = vadd.f32 %v1971, %v1980
        %v1985 = vadd.f32 %v1972, %v1981
        %v1986 = vadd.f32 %v1973, %v1982
        %v1987 = vadd.f32 %v1974, %v1983
        %v1988 = vmul.f32 %v1976, %v1601
        %v1989 = vmul.f32 %v1977, %v1601
        %v1990 = vmul.f32 %v1978, %v1601
        %v1991 = vmul.f32 %v1979, %v1601
        %v1992 = vadd.f32 %v1984, %v1988
        %v1993 = vadd.f32 %v1985, %v1989
        %v1994 = vadd.f32 %v1986, %v1990
        %v1995 = vadd.f32 %v1987, %v1991
        %v1996 = vld [vmem:[#allocation2 + $0x44] sm:$0xff]
        %v1997 = vld [vmem:[#allocation2 + $0x4c] sm:$0xff]
        %v1998 = vld [vmem:[#allocation2 + $0x54] sm:$0xff]
        %v1999 = vld [vmem:[#allocation2 + $0x5c] sm:$0xff]
        %v2000 = vld [vmem:[#allocation2 + $0x64] sm:$0xff]
        %v2001 = vmul.f32 %v1996, %v1618
        %v2002 = vmul.f32 %v1997, %v1618
        %v2003 = vmul.f32 %v1998, %v1618
        %v2004 = vmul.f32 %v1999, %v1618
        %v2005 = vadd.f32 %v1992, %v2001
        %v2006 = vadd.f32 %v1993, %v2002
        %v2007 = vadd.f32 %v1994, %v2003
        %v2008 = vadd.f32 %v1995, %v2004
        %v2009 = vmul.f32 %v1997, %v1630
        %v2010 = vmul.f32 %v1998, %v1630
        %v2011 = vmul.f32 %v1999, %v1630
        %v2012 = vmul.f32 %v2000, %v1630
        %v2013 = vadd.f32 %v2005, %v2009
        %v2014 = vadd.f32 %v2006, %v2010
        %v2015 = vadd.f32 %v2007, %v2011
        %v2016 = vadd.f32 %v2008, %v2012
        %v2017 = vld [vmem:[#allocation2 + $0x45] sm:$0xff]
        %v2018 = vld [vmem:[#allocation2 + $0x4d] sm:$0xff]
        %v2019 = vld [vmem:[#allocation2 + $0x55] sm:$0xff]
        %v2020 = vld [vmem:[#allocation2 + $0x5d] sm:$0xff]
        %v2021 = vld [vmem:[#allocation2 + $0x65] sm:$0xff]
        %v2022 = vmul.f32 %v2017, %v1647
        %v2023 = vmul.f32 %v2018, %v1647
        %v2024 = vmul.f32 %v2019, %v1647
        %v2025 = vmul.f32 %v2020, %v1647
        %v2026 = vadd.f32 %v2013, %v2022
        %v2027 = vadd.f32 %v2014, %v2023
        %v2028 = vadd.f32 %v2015, %v2024
        %v2029 = vadd.f32 %v2016, %v2025
        %v2030 = vmul.f32 %v2018, %v1659
        %v2031 = vmul.f32 %v2019, %v1659
        %v2032 = vmul.f32 %v2020, %v1659
        %v2033 = vmul.f32 %v2021, %v1659
        %v2034 = vadd.f32 %v2026, %v2030
        %v2035 = vadd.f32 %v2027, %v2031
        %v2036 = vadd.f32 %v2028, %v2032
        %v2037 = vadd.f32 %v2029, %v2033
        %v2038 = vld [vmem:[#allocation2 + $0x46] sm:$0xff]
        %v2039 = vld [vmem:[#allocation2 + $0x4e] sm:$0xff]
        %v2040 = vld [vmem:[#allocation2 + $0x56] sm:$0xff]
        %v2041 = vld [vmem:[#allocation2 + $0x5e] sm:$0xff]
        %v2042 = vld [vmem:[#allocation2 + $0x66] sm:$0xff]
        %v2043 = vmul.f32 %v2038, %v1676
        %v2044 = vmul.f32 %v2039, %v1676
        %v2045 = vmul.f32 %v2040, %v1676
        %v2046 = vmul.f32 %v2041, %v1676
        %v2047 = vadd.f32 %v2034, %v2043
        %v2048 = vadd.f32 %v2035, %v2044
        %v2049 = vadd.f32 %v2036, %v2045
        %v2050 = vadd.f32 %v2037, %v2046
        %v2051 = vmul.f32 %v2039, %v1688
        %v2052 = vmul.f32 %v2040, %v1688
        %v2053 = vmul.f32 %v2041, %v1688
        %v2054 = vmul.f32 %v2042, %v1688
        %v2055 = vadd.f32 %v2047, %v2051
        %v2056 = vadd.f32 %v2048, %v2052
        %v2057 = vadd.f32 %v2049, %v2053
        %v2058 = vadd.f32 %v2050, %v2054
        %v2059 = vld [vmem:[#allocation2 + $0x47] sm:$0xff]
        %v2060 = vld [vmem:[#allocation2 + $0x4f] sm:$0xff]
        %v2061 = vld [vmem:[#allocation2 + $0x57] sm:$0xff]
        %v2062 = vld [vmem:[#allocation2 + $0x5f] sm:$0xff]
        %v2063 = vld [vmem:[#allocation2 + $0x67] sm:$0xff]
        %v2064 = vmul.f32 %v2059, %v1705
        %v2065 = vmul.f32 %v2060, %v1705
        %v2066 = vmul.f32 %v2061, %v1705
        %v2067 = vmul.f32 %v2062, %v1705
        %v2068 = vadd.f32 %v2055, %v2064
        %v2069 = vadd.f32 %v2056, %v2065
        %v2070 = vadd.f32 %v2057, %v2066
        %v2071 = vadd.f32 %v2058, %v2067
        %v2072 = vmul.f32 %v2060, %v1717
        %v2073 = vmul.f32 %v2061, %v1717
        %v2074 = vmul.f32 %v2062, %v1717
        %v2075 = vmul.f32 %v2063, %v1717
        %v2076 = vadd.f32 %v2068, %v2072
        %v2077 = vadd.f32 %v2069, %v2073
        %v2078 = vadd.f32 %v2070, %v2074
        %v2079 = vadd.f32 %v2071, %v2075
        %2080 = vst [vmem:[#allocation3 + $0x40] sm:$0xff] %v2076
        %2081 = vst [vmem:[#allocation3 + $0x48] sm:$0xff] %v2077
        %2082 = vst [vmem:[#allocation3 + $0x50] sm:$0xff] %v2078
        %2083 = vst [vmem:[#allocation3 + $0x58] sm:$0xff] %v2079
        %v2084 = vld [vmem:[#allocation2 + $0x70] sm:$0xff]
        %v2085 = vld [vmem:[#allocation2 + $0x78] sm:$0xff]
        %v2086 = vld [vmem:[#allocation2 + $0x80] sm:$0xff]
        %v2087 = vld [vmem:[#allocation2 + $0x88] sm:$0xff]
        %v2088 = vmul.f32 %v2084, %v1492
        %v2089 = vmul.f32 %v2085, %v1492
        %v2090 = vmul.f32 %v2086, %v1492
        %v2091 = vmul.f32 %v2087, %v1492
        %v2092 = vld [vmem:[#allocation2 + $0x60] sm:$0xff]
        %v2093 = vld [vmem:[#allocation2 + $0x68] sm:$0xff]
        %v2094 = vld [vmem:[#allocation2 + $0x70] sm:$0xff]
        %v2095 = vld [vmem:[#allocation2 + $0x78] sm:$0xff]
        %v2096 = vld [vmem:[#allocation2 + $0x80] sm:$0xff]
        %v2097 = vmul.f32 %v2092, %v1502
        %v2098 = vmul.f32 %v2093, %v1502
        %v2099 = vmul.f32 %v2094, %v1502
        %v2100 = vmul.f32 %v2095, %v1502
        %v2101 = vadd.f32 %v2088, %v2097
        %v2102 = vadd.f32 %v2089, %v2098
        %v2103 = vadd.f32 %v2090, %v2099
        %v2104 = vadd.f32 %v2091, %v2100
        %v2105 = vmul.f32 %v2093, %v1514
        %v2106 = vmul.f32 %v2094, %v1514
        %v2107 = vmul.f32 %v2095, %v1514
        %v2108 = vmul.f32 %v2096, %v1514
        %v2109 = vadd.f32 %v2101, %v2105
        %v2110 = vadd.f32 %v2102, %v2106
        %v2111 = vadd.f32 %v2103, %v2107
        %v2112 = vadd.f32 %v2104, %v2108
        %v2113 = vld [vmem:[#allocation2 + $0x61] sm:$0xff]
        %v2114 = vld [vmem:[#allocation2 + $0x69] sm:$0xff]
        %v2115 = vld [vmem:[#allocation2 + $0x71] sm:$0xff]
        %v2116 = vld [vmem:[#allocation2 + $0x79] sm:$0xff]
        %v2117 = vld [vmem:[#allocation2 + $0x81] sm:$0xff]
        %v2118 = vmul.f32 %v2113, %v1531
        %v2119 = vmul.f32 %v2114, %v1531
        %v2120 = vmul.f32 %v2115, %v1531
        %v2121 = vmul.f32 %v2116, %v1531
        %v2122 = vadd.f32 %v2109, %v2118
        %v2123 = vadd.f32 %v2110, %v2119
        %v2124 = vadd.f32 %v2111, %v2120
        %v2125 = vadd.f32 %v2112, %v2121
        %v2126 = vmul.f32 %v2114, %v1543
        %v2127 = vmul.f32 %v2115, %v1543
        %v2128 = vmul.f32 %v2116, %v1543
        %v2129 = vmul.f32 %v2117, %v1543
        %v2130 = vadd.f32 %v2122, %v2126
        %v2131 = vadd.f32 %v2123, %v2127
        %v2132 = vadd.f32 %v2124, %v2128
        %v2133 = vadd.f32 %v2125, %v2129
        %v2134 = vld [vmem:[#allocation2 + $0x62] sm:$0xff]
        %v2135 = vld [vmem:[#allocation2 + $0x6a] sm:$0xff]
        %v2136 = vld [vmem:[#allocation2 + $0x72] sm:$0xff]
        %v2137 = vld [vmem:[#allocation2 + $0x7a] sm:$0xff]
        %v2138 = vld [vmem:[#allocation2 + $0x82] sm:$0xff]
        %v2139 = vmul.f32 %v2134, %v1560
        %v2140 = vmul.f32 %v2135, %v1560
        %v2141 = vmul.f32 %v2136, %v1560
        %v2142 = vmul.f32 %v2137, %v1560
        %v2143 = vadd.f32 %v2130, %v2139
        %v2144 = vadd.f32 %v2131, %v2140
        %v2145 = vadd.f32 %v2132, %v2141
        %v2146 = vadd.f32 %v2133, %v2142
        %v2147 = vmul.f32 %v2135, %v1572
        %v2148 = vmul.f32 %v2136, %v1572
        %v2149 = vmul.f32 %v2137, %v1572
        %v2150 = vmul.f32 %v2138, %v1572
        %v2151 = vadd.f32 %v2143, %v2147
        %v2152 = vadd.f32 %v2144, %v2148
        %v2153 = vadd.f32 %v2145, %v2149
        %v2154 = vadd.f32 %v2146, %v2150
        %v2155 = vld [vmem:[#allocation2 + $0x63] sm:$0xff]
        %v2156 = vld [vmem:[#allocation2 + $0x6b] sm:$0xff]
        %v2157 = vld [vmem:[#allocation2 + $0x73] sm:$0xff]
        %v2158 = vld [vmem:[#allocation2 + $0x7b] sm:$0xff]
        %v2159 = vld [vmem:[#allocation2 + $0x83] sm:$0xff]
        %v2160 = vmul.f32 %v2155, %v1589
        %v2161 = vmul.f32 %v2156, %v1589
        %v2162 = vmul.f32 %v2157, %v1589
        %v2163 = vmul.f32 %v2158, %v1589
        %v2164 = vadd.f32 %v2151, %v2160
        %v2165 = vadd.f32 %v2152, %v2161
        %v2166 = vadd.f32 %v2153, %v2162
        %v2167 = vadd.f32 %v2154, %v2163
        %v2168 = vmul.f32 %v2156, %v1601
        %v2169 = vmul.f32 %v2157, %v1601
        %v2170 = vmul.f32 %v2158, %v1601
        %v2171 = vmul.f32 %v2159, %v1601
        %v2172 = vadd.f32 %v2164, %v2168
        %v2173 = vadd.f32 %v2165, %v2169
        %v2174 = vadd.f32 %v2166, %v2170
        %v2175 = vadd.f32 %v2167, %v2171
        %v2176 = vld [vmem:[#allocation2 + $0x64] sm:$0xff]
        %v2177 = vld [vmem:[#allocation2 + $0x6c] sm:$0xff]
        %v2178 = vld [vmem:[#allocation2 + $0x74] sm:$0xff]
        %v2179 = vld [vmem:[#allocation2 + $0x7c] sm:$0xff]
        %v2180 = vld [vmem:[#allocation2 + $0x84] sm:$0xff]
        %v2181 = vmul.f32 %v2176, %v1618
        %v2182 = vmul.f32 %v2177, %v1618
        %v2183 = vmul.f32 %v2178, %v1618
        %v2184 = vmul.f32 %v2179, %v1618
        %v2185 = vadd.f32 %v2172, %v2181
        %v2186 = vadd.f32 %v2173, %v2182
        %v2187 = vadd.f32 %v2174, %v2183
        %v2188 = vadd.f32 %v2175, %v2184
        %v2189 = vmul.f32 %v2177, %v1630
        %v2190 = vmul.f32 %v2178, %v1630
        %v2191 = vmul.f32 %v2179, %v1630
        %v2192 = vmul.f32 %v2180, %v1630
        %v2193 = vadd.f32 %v2185, %v2189
        %v2194 = vadd.f32 %v2186, %v2190
        %v2195 = vadd.f32 %v2187, %v2191
        %v2196 = vadd.f32 %v2188, %v2192
        %v2197 = vld [vmem:[#allocation2 + $0x65] sm:$0xff]
        %v2198 = vld [vmem:[#allocation2 + $0x6d] sm:$0xff]
        %v2199 = vld [vmem:[#allocation2 + $0x75] sm:$0xff]
        %v2200 = vld [vmem:[#allocation2 + $0x7d] sm:$0xff]
        %v2201 = vld [vmem:[#allocation2 + $0x85] sm:$0xff]
        %v2202 = vmul.f32 %v2197, %v1647
        %v2203 = vmul.f32 %v2198, %v1647
        %v2204 = vmul.f32 %v2199, %v1647
        %v2205 = vmul.f32 %v2200, %v1647
        %v2206 = vadd.f32 %v2193, %v2202
        %v2207 = vadd.f32 %v2194, %v2203
        %v2208 = vadd.f32 %v2195, %v2204
        %v2209 = vadd.f32 %v2196, %v2205
        %v2210 = vmul.f32 %v2198, %v1659
        %v2211 = vmul.f32 %v2199, %v1659
        %v2212 = vmul.f32 %v2200, %v1659
        %v2213 = vmul.f32 %v2201, %v1659
        %v2214 = vadd.f32 %v2206, %v2210
        %v2215 = vadd.f32 %v2207, %v2211
        %v2216 = vadd.f32 %v2208, %v2212
        %v2217 = vadd.f32 %v2209, %v2213
        %v2218 = vld [vmem:[#allocation2 + $0x66] sm:$0xff]
        %v2219 = vld [vmem:[#allocation2 + $0x6e] sm:$0xff]
        %v2220 = vld [vmem:[#allocation2 + $0x76] sm:$0xff]
        %v2221 = vld [vmem:[#allocation2 + $0x7e] sm:$0xff]
        %v2222 = vld [vmem:[#allocation2 + $0x86] sm:$0xff]
        %v2223 = vmul.f32 %v2218, %v1676
        %v2224 = vmul.f32 %v2219, %v1676
        %v2225 = vmul.f32 %v2220, %v1676
        %v2226 = vmul.f32 %v2221, %v1676
        %v2227 = vadd.f32 %v2214, %v2223
        %v2228 = vadd.f32 %v2215, %v2224
        %v2229 = vadd.f32 %v2216, %v2225
        %v2230 = vadd.f32 %v2217, %v2226
        %v2231 = vmul.f32 %v2219, %v1688
        %v2232 = vmul.f32 %v2220, %v1688
        %v2233 = vmul.f32 %v2221, %v1688
        %v2234 = vmul.f32 %v2222, %v1688
        %v2235 = vadd.f32 %v2227, %v2231
        %v2236 = vadd.f32 %v2228, %v2232
        %v2237 = vadd.f32 %v2229, %v2233
        %v2238 = vadd.f32 %v2230, %v2234
        %v2239 = vld [vmem:[#allocation2 + $0x67] sm:$0xff]
        %v2240 = vld [vmem:[#allocation2 + $0x6f] sm:$0xff]
        %v2241 = vld [vmem:[#allocation2 + $0x77] sm:$0xff]
        %v2242 = vld [vmem:[#allocation2 + $0x7f] sm:$0xff]
        %v2243 = vld [vmem:[#allocation2 + $0x87] sm:$0xff]
        %v2244 = vmul.f32 %v2239, %v1705
        %v2245 = vmul.f32 %v2240, %v1705
        %v2246 = vmul.f32 %v2241, %v1705
        %v2247 = vmul.f32 %v2242, %v1705
        %v2248 = vadd.f32 %v2235, %v2244
        %v2249 = vadd.f32 %v2236, %v2245
        %v2250 = vadd.f32 %v2237, %v2246
        %v2251 = vadd.f32 %v2238, %v2247
        %v2252 = vmul.f32 %v2240, %v1717
        %v2253 = vmul.f32 %v2241, %v1717
        %v2254 = vmul.f32 %v2242, %v1717
        %v2255 = vmul.f32 %v2243, %v1717
        %v2256 = vadd.f32 %v2248, %v2252
        %v2257 = vadd.f32 %v2249, %v2253
        %v2258 = vadd.f32 %v2250, %v2254
        %v2259 = vadd.f32 %v2251, %v2255
        %2260 = vst [vmem:[#allocation3 + $0x60] sm:$0xff] %v2256
        %2261 = vst [vmem:[#allocation3 + $0x68] sm:$0xff] %v2257
        %2262 = vst [vmem:[#allocation3 + $0x70] sm:$0xff] %v2258
        %2263 = vst [vmem:[#allocation3 + $0x78] sm:$0xff] %v2259
        %v2264 = vld [vmem:[#allocation3] sm:$0xff]
        %v2265 = vld [vmem:[#allocation3 + $0x8] sm:$0xff]
        %v2266 = vld [vmem:[#allocation3 + $0x10] sm:$0xff]
        %v2267 = vld [vmem:[#allocation3 + $0x18] sm:$0xff]
        %v2268 = vld [vmem:[#allocation3 + $0x20] sm:$0xff]
        %v2269 = vld [vmem:[#allocation3 + $0x28] sm:$0xff]
        %v2270 = vld [vmem:[#allocation3 + $0x30] sm:$0xff]
        %v2271 = vld [vmem:[#allocation3 + $0x38] sm:$0xff]
        %v2272 = vld [vmem:[#allocation3 + $0x40] sm:$0xff]
        %v2273 = vld [vmem:[#allocation3 + $0x48] sm:$0xff]
        %v2274 = vld [vmem:[#allocation3 + $0x50] sm:$0xff]
        %v2275 = vld [vmem:[#allocation3 + $0x58] sm:$0xff]
        %v2276 = vld [vmem:[#allocation3 + $0x60] sm:$0xff]
        %v2277 = vld [vmem:[#allocation3 + $0x68] sm:$0xff]
        %v2278 = vld [vmem:[#allocation3 + $0x70] sm:$0xff]
        %v2279 = vld [vmem:[#allocation3 + $0x78] sm:$0xff]
        %v2280 = vld [vmem:[%s9] sm:$0x1]
        %v2281 = vld [vmem:[%s10] sm:$0x1]
        %2282 = vadd.xlane.f32.xlu0 %v2264
        %v2283 = vpop.xlane.xlu0 %2282
        %2284 = vadd.xlane.f32.xlu0 %v2265
        %v2285 = vpop.xlane.xlu0 %2284
        %2286 = vadd.xlane.f32.xlu0 %v2266
        %v2287 = vpop.xlane.xlu0 %2286
        %2288 = vadd.xlane.f32.xlu0 %v2267
        %v2289 = vpop.xlane.xlu0 %2288
        %2290 = vadd.xlane.f32.xlu0 %v2268
        %v2291 = vpop.xlane.xlu0 %2290
        %2292 = vadd.xlane.f32.xlu0 %v2269
        %v2293 = vpop.xlane.xlu0 %2292
        %2294 = vadd.xlane.f32.xlu0 %v2270
        %v2295 = vpop.xlane.xlu0 %2294
        %2296 = vadd.xlane.f32.xlu0 %v2271
        %v2297 = vpop.xlane.xlu0 %2296
        %2298 = vadd.xlane.f32.xlu0 %v2272
        %v2299 = vpop.xlane.xlu0 %2298
        %2300 = vadd.xlane.f32.xlu0 %v2273
        %v2301 = vpop.xlane.xlu0 %2300
        %2302 = vadd.xlane.f32.xlu0 %v2274
        %v2303 = vpop.xlane.xlu0 %2302
        %2304 = vadd.xlane.f32.xlu0 %v2275
        %v2305 = vpop.xlane.xlu0 %2304
        %2306 = vadd.xlane.f32.xlu0 %v2276
        %v2307 = vpop.xlane.xlu0 %2306
        %2308 = vadd.xlane.f32.xlu0 %v2277
        %v2309 = vpop.xlane.xlu0 %2308
        %2310 = vadd.xlane.f32.xlu0 %v2278
        %v2311 = vpop.xlane.xlu0 %2310
        %2312 = vadd.xlane.f32.xlu0 %v2279
        %v2313 = vpop.xlane.xlu0 %2312
        %v2314 = vmul.f32 %v2283, %v638
        %v2315 = vmul.f32 %v2285, %v638
        %v2316 = vmul.f32 %v2287, %v638
        %v2317 = vmul.f32 %v2289, %v638
        %v2318 = vmul.f32 %v2291, %v638
        %v2319 = vmul.f32 %v2293, %v638
        %v2320 = vmul.f32 %v2295, %v638
        %v2321 = vmul.f32 %v2297, %v638
        %v2322 = vmul.f32 %v2299, %v638
        %v2323 = vmul.f32 %v2301, %v638
        %v2324 = vmul.f32 %v2303, %v638
        %v2325 = vmul.f32 %v2305, %v638
        %v2326 = vmul.f32 %v2307, %v638
        %v2327 = vmul.f32 %v2309, %v638
        %v2328 = vmul.f32 %v2311, %v638
        %v2329 = vmul.f32 %v2313, %v638
        %v2330 = vsub.f32 %v2264, %v2314
        %v2331 = vsub.f32 %v2265, %v2315
        %v2332 = vsub.f32 %v2266, %v2316
        %v2333 = vsub.f32 %v2267, %v2317
        %v2334 = vsub.f32 %v2268, %v2318
        %v2335 = vsub.f32 %v2269, %v2319
        %v2336 = vsub.f32 %v2270, %v2320
        %v2337 = vsub.f32 %v2271, %v2321
        %v2338 = vsub.f32 %v2272, %v2322
        %v2339 = vsub.f32 %v2273, %v2323
        %v2340 = vsub.f32 %v2274, %v2324
        %v2341 = vsub.f32 %v2275, %v2325
        %v2342 = vsub.f32 %v2276, %v2326
        %v2343 = vsub.f32 %v2277, %v2327
        %v2344 = vsub.f32 %v2278, %v2328
        %v2345 = vsub.f32 %v2279, %v2329
        %v2346 = vmul.f32 %v2330, %v2330
        %v2347 = vmul.f32 %v2331, %v2331
        %v2348 = vmul.f32 %v2332, %v2332
        %v2349 = vmul.f32 %v2333, %v2333
        %v2350 = vmul.f32 %v2334, %v2334
        %v2351 = vmul.f32 %v2335, %v2335
        %v2352 = vmul.f32 %v2336, %v2336
        %v2353 = vmul.f32 %v2337, %v2337
        %v2354 = vmul.f32 %v2338, %v2338
        %v2355 = vmul.f32 %v2339, %v2339
        %v2356 = vmul.f32 %v2340, %v2340
        %v2357 = vmul.f32 %v2341, %v2341
        %v2358 = vmul.f32 %v2342, %v2342
        %v2359 = vmul.f32 %v2343, %v2343
        %v2360 = vmul.f32 %v2344, %v2344
        %v2361 = vmul.f32 %v2345, %v2345
        %2362 = vadd.xlane.f32.xlu0 %v2346
        %v2363 = vpop.xlane.xlu0 %2362
        %2364 = vadd.xlane.f32.xlu0 %v2347
        %v2365 = vpop.xlane.xlu0 %2364
        %2366 = vadd.xlane.f32.xlu0 %v2348
        %v2367 = vpop.xlane.xlu0 %2366
        %2368 = vadd.xlane.f32.xlu0 %v2349
        %v2369 = vpop.xlane.xlu0 %2368
        %2370 = vadd.xlane.f32.xlu0 %v2350
        %v2371 = vpop.xlane.xlu0 %2370
        %2372 = vadd.xlane.f32.xlu0 %v2351
        %v2373 = vpop.xlane.xlu0 %2372
        %2374 = vadd.xlane.f32.xlu0 %v2352
        %v2375 = vpop.xlane.xlu0 %2374
        %2376 = vadd.xlane.f32.xlu0 %v2353
        %v2377 = vpop.xlane.xlu0 %2376
        %2378 = vadd.xlane.f32.xlu0 %v2354
        %v2379 = vpop.xlane.xlu0 %2378
        %2380 = vadd.xlane.f32.xlu0 %v2355
        %v2381 = vpop.xlane.xlu0 %2380
        %2382 = vadd.xlane.f32.xlu0 %v2356
        %v2383 = vpop.xlane.xlu0 %2382
        %2384 = vadd.xlane.f32.xlu0 %v2357
        %v2385 = vpop.xlane.xlu0 %2384
        %2386 = vadd.xlane.f32.xlu0 %v2358
        %v2387 = vpop.xlane.xlu0 %2386
        %2388 = vadd.xlane.f32.xlu0 %v2359
        %v2389 = vpop.xlane.xlu0 %2388
        %2390 = vadd.xlane.f32.xlu0 %v2360
        %v2391 = vpop.xlane.xlu0 %2390
        %2392 = vadd.xlane.f32.xlu0 %v2361
        %v2393 = vpop.xlane.xlu0 %2392
        %v2394 = vmul.f32 %v2363, %v638
        %v2395 = vmul.f32 %v2365, %v638
        %v2396 = vmul.f32 %v2367, %v638
        %v2397 = vmul.f32 %v2369, %v638
        %v2398 = vmul.f32 %v2371, %v638
        %v2399 = vmul.f32 %v2373, %v638
        %v2400 = vmul.f32 %v2375, %v638
        %v2401 = vmul.f32 %v2377, %v638
        %v2402 = vmul.f32 %v2379, %v638
        %v2403 = vmul.f32 %v2381, %v638
        %v2404 = vmul.f32 %v2383, %v638
        %v2405 = vmul.f32 %v2385, %v638
        %v2406 = vmul.f32 %v2387, %v638
        %v2407 = vmul.f32 %v2389, %v638
        %v2408 = vmul.f32 %v2391, %v638
        %v2409 = vmul.f32 %v2393, %v638
        %v2410 = vadd.f32 %v2394, 1e-05
        %v2411 = vadd.f32 %v2395, 1e-05
        %v2412 = vadd.f32 %v2396, 1e-05
        %v2413 = vadd.f32 %v2397, 1e-05
        %v2414 = vadd.f32 %v2398, 1e-05
        %v2415 = vadd.f32 %v2399, 1e-05
        %v2416 = vadd.f32 %v2400, 1e-05
        %v2417 = vadd.f32 %v2401, 1e-05
        %v2418 = vadd.f32 %v2402, 1e-05
        %v2419 = vadd.f32 %v2403, 1e-05
        %v2420 = vadd.f32 %v2404, 1e-05
        %v2421 = vadd.f32 %v2405, 1e-05
        %v2422 = vadd.f32 %v2406, 1e-05
        %v2423 = vadd.f32 %v2407, 1e-05
        %v2424 = vadd.f32 %v2408, 1e-05
        %v2425 = vadd.f32 %v2409, 1e-05
        %v2426 = vrsqrt.pop %v2410
        %v2427 = vrsqrt.pop %v2411
        %v2428 = vrsqrt.pop %v2412
        %v2429 = vrsqrt.pop %v2413
        %v2430 = vrsqrt.pop %v2414
        %v2431 = vrsqrt.pop %v2415
        %v2432 = vrsqrt.pop %v2416
        %v2433 = vrsqrt.pop %v2417
        %v2434 = vrsqrt.pop %v2418
        %v2435 = vrsqrt.pop %v2419
        %v2436 = vrsqrt.pop %v2420
        %v2437 = vrsqrt.pop %v2421
        %v2438 = vrsqrt.pop %v2422
        %v2439 = vrsqrt.pop %v2423
        %v2440 = vrsqrt.pop %v2424
        %v2441 = vrsqrt.pop %v2425
        %v2442 = vmul.f32 %v2330, %v2426
        %v2443 = vmul.f32 %v2331, %v2427
        %v2444 = vmul.f32 %v2332, %v2428
        %v2445 = vmul.f32 %v2333, %v2429
        %v2446 = vmul.f32 %v2334, %v2430
        %v2447 = vmul.f32 %v2335, %v2431
        %v2448 = vmul.f32 %v2336, %v2432
        %v2449 = vmul.f32 %v2337, %v2433
        %v2450 = vmul.f32 %v2338, %v2434
        %v2451 = vmul.f32 %v2339, %v2435
        %v2452 = vmul.f32 %v2340, %v2436
        %v2453 = vmul.f32 %v2341, %v2437
        %v2454 = vmul.f32 %v2342, %v2438
        %v2455 = vmul.f32 %v2343, %v2439
        %v2456 = vmul.f32 %v2344, %v2440
        %v2457 = vmul.f32 %v2345, %v2441
        %v2459 = vlaneseq
        %v2460 = vshrl.u32 %v2459, 7
        %v2461 = vsub.s32 0, %v2460
        %v2462 = vrot.slane %v2280, %v2461
        %v2464 = vmul.f32 %v2442, %v2462
        %v2465 = vmul.f32 %v2443, %v2462
        %v2466 = vmul.f32 %v2444, %v2462
        %v2467 = vmul.f32 %v2445, %v2462
        %v2468 = vmul.f32 %v2446, %v2462
        %v2469 = vmul.f32 %v2447, %v2462
        %v2470 = vmul.f32 %v2448, %v2462
        %v2471 = vmul.f32 %v2449, %v2462
        %v2472 = vmul.f32 %v2450, %v2462
        %v2473 = vmul.f32 %v2451, %v2462
        %v2474 = vmul.f32 %v2452, %v2462
        %v2475 = vmul.f32 %v2453, %v2462
        %v2476 = vmul.f32 %v2454, %v2462
        %v2477 = vmul.f32 %v2455, %v2462
        %v2478 = vmul.f32 %v2456, %v2462
        %v2479 = vmul.f32 %v2457, %v2462
        %v2481 = vlaneseq
        %v2482 = vshrl.u32 %v2481, 7
        %v2483 = vsub.s32 0, %v2482
        %v2484 = vrot.slane %v2281, %v2483
        %v2486 = vadd.f32 %v2464, %v2484
        %v2487 = vadd.f32 %v2465, %v2484
        %v2488 = vadd.f32 %v2466, %v2484
        %v2489 = vadd.f32 %v2467, %v2484
        %v2490 = vadd.f32 %v2468, %v2484
        %v2491 = vadd.f32 %v2469, %v2484
        %v2492 = vadd.f32 %v2470, %v2484
        %v2493 = vadd.f32 %v2471, %v2484
        %v2494 = vadd.f32 %v2472, %v2484
        %v2495 = vadd.f32 %v2473, %v2484
        %v2496 = vadd.f32 %v2474, %v2484
        %v2497 = vadd.f32 %v2475, %v2484
        %v2498 = vadd.f32 %v2476, %v2484
        %v2499 = vadd.f32 %v2477, %v2484
        %v2500 = vadd.f32 %v2478, %v2484
        %v2501 = vadd.f32 %v2479, %v2484
        %v2502 = vxor.u32 %v2486, 2147483648
        %v2503 = vxor.u32 %v2487, 2147483648
        %v2504 = vxor.u32 %v2488, 2147483648
        %v2505 = vxor.u32 %v2489, 2147483648
        %v2506 = vxor.u32 %v2490, 2147483648
        %v2507 = vxor.u32 %v2491, 2147483648
        %v2508 = vxor.u32 %v2492, 2147483648
        %v2509 = vxor.u32 %v2493, 2147483648
        %v2510 = vxor.u32 %v2494, 2147483648
        %v2511 = vxor.u32 %v2495, 2147483648
        %v2512 = vxor.u32 %v2496, 2147483648
        %v2513 = vxor.u32 %v2497, 2147483648
        %v2514 = vxor.u32 %v2498, 2147483648
        %v2515 = vxor.u32 %v2499, 2147483648
        %v2516 = vxor.u32 %v2500, 2147483648
        %v2517 = vxor.u32 %v2501, 2147483648
        %v2518 = vmul.f32 %v2502, 1.442695
        %v2519 = vpow.pop %v2518
        %v2520 = vmul.f32 %v2503, 1.442695
        %v2521 = vpow.pop %v2520
        %v2522 = vmul.f32 %v2504, 1.442695
        %v2523 = vpow.pop %v2522
        %v2524 = vmul.f32 %v2505, 1.442695
        %v2525 = vpow.pop %v2524
        %v2526 = vmul.f32 %v2506, 1.442695
        %v2527 = vpow.pop %v2526
        %v2528 = vmul.f32 %v2507, 1.442695
        %v2529 = vpow.pop %v2528
        %v2530 = vmul.f32 %v2508, 1.442695
        %v2531 = vpow.pop %v2530
        %v2532 = vmul.f32 %v2509, 1.442695
        %v2533 = vpow.pop %v2532
        %v2534 = vmul.f32 %v2510, 1.442695
        %v2535 = vpow.pop %v2534
        %v2536 = vmul.f32 %v2511, 1.442695
        %v2537 = vpow.pop %v2536
        %v2538 = vmul.f32 %v2512, 1.442695
        %v2539 = vpow.pop %v2538
        %v2540 = vmul.f32 %v2513, 1.442695
        %v2541 = vpow.pop %v2540
        %v2542 = vmul.f32 %v2514, 1.442695
        %v2543 = vpow.pop %v2542
        %v2544 = vmul.f32 %v2515, 1.442695
        %v2545 = vpow.pop %v2544
        %v2546 = vmul.f32 %v2516, 1.442695
        %v2547 = vpow.pop %v2546
        %v2548 = vmul.f32 %v2517, 1.442695
        %v2549 = vpow.pop %v2548
        %v2550 = vadd.f32 %v2519, 1.0
        %v2551 = vadd.f32 %v2521, 1.0
        %v2552 = vadd.f32 %v2523, 1.0
        %v2553 = vadd.f32 %v2525, 1.0
        %v2554 = vadd.f32 %v2527, 1.0
        %v2555 = vadd.f32 %v2529, 1.0
        %v2556 = vadd.f32 %v2531, 1.0
        %v2557 = vadd.f32 %v2533, 1.0
        %v2558 = vadd.f32 %v2535, 1.0
        %v2559 = vadd.f32 %v2537, 1.0
        %v2560 = vadd.f32 %v2539, 1.0
        %v2561 = vadd.f32 %v2541, 1.0
        %v2562 = vadd.f32 %v2543, 1.0
        %v2563 = vadd.f32 %v2545, 1.0
        %v2564 = vadd.f32 %v2547, 1.0
        %v2565 = vadd.f32 %v2549, 1.0
        %v2566 = vrcp.pop %v2550
        %v2567 = vmul.f32 1.0, %v2566
        %v2568 = vrcp.pop %v2551
        %v2569 = vmul.f32 1.0, %v2568
        %v2570 = vrcp.pop %v2552
        %v2571 = vmul.f32 1.0, %v2570
        %v2572 = vrcp.pop %v2553
        %v2573 = vmul.f32 1.0, %v2572
        %v2574 = vrcp.pop %v2554
        %v2575 = vmul.f32 1.0, %v2574
        %v2576 = vrcp.pop %v2555
        %v2577 = vmul.f32 1.0, %v2576
        %v2578 = vrcp.pop %v2556
        %v2579 = vmul.f32 1.0, %v2578
        %v2580 = vrcp.pop %v2557
        %v2581 = vmul.f32 1.0, %v2580
        %v2582 = vrcp.pop %v2558
        %v2583 = vmul.f32 1.0, %v2582
        %v2584 = vrcp.pop %v2559
        %v2585 = vmul.f32 1.0, %v2584
        %v2586 = vrcp.pop %v2560
        %v2587 = vmul.f32 1.0, %v2586
        %v2588 = vrcp.pop %v2561
        %v2589 = vmul.f32 1.0, %v2588
        %v2590 = vrcp.pop %v2562
        %v2591 = vmul.f32 1.0, %v2590
        %v2592 = vrcp.pop %v2563
        %v2593 = vmul.f32 1.0, %v2592
        %v2594 = vrcp.pop %v2564
        %v2595 = vmul.f32 1.0, %v2594
        %v2596 = vrcp.pop %v2565
        %v2597 = vmul.f32 1.0, %v2596
        %v2598 = vmul.f32 %v2486, %v2567
        %v2599 = vmul.f32 %v2487, %v2569
        %v2600 = vmul.f32 %v2488, %v2571
        %v2601 = vmul.f32 %v2489, %v2573
        %v2602 = vmul.f32 %v2490, %v2575
        %v2603 = vmul.f32 %v2491, %v2577
        %v2604 = vmul.f32 %v2492, %v2579
        %v2605 = vmul.f32 %v2493, %v2581
        %v2606 = vmul.f32 %v2494, %v2583
        %v2607 = vmul.f32 %v2495, %v2585
        %v2608 = vmul.f32 %v2496, %v2587
        %v2609 = vmul.f32 %v2497, %v2589
        %v2610 = vmul.f32 %v2498, %v2591
        %v2611 = vmul.f32 %v2499, %v2593
        %v2612 = vmul.f32 %v2500, %v2595
        %v2613 = vmul.f32 %v2501, %v2597
        %v2614 = vpack.c.bf16 %v2599, %v2598
        %v2615 = vpack.c.bf16 %v2601, %v2600
        %v2616 = vpack.c.bf16 %v2603, %v2602
        %v2617 = vpack.c.bf16 %v2605, %v2604
        %v2618 = vpack.c.bf16 %v2607, %v2606
        %v2619 = vpack.c.bf16 %v2609, %v2608
        %v2620 = vpack.c.bf16 %v2611, %v2610
        %v2621 = vpack.c.bf16 %v2613, %v2612
        %v2622 = vld [vmem:[%s11] sm:$0xf]
        %v2623 = vld [vmem:[%s11 + $0x4] sm:$0xf]
        %v2624 = vld [vmem:[%s11 + $0x8] sm:$0xf]
        %v2625 = vld [vmem:[%s11 + $0xc] sm:$0xf]
        %v2626 = vld [vmem:[%s11 + $0x10] sm:$0xf]
        %v2627 = vld [vmem:[%s11 + $0x14] sm:$0xf]
        %v2628 = vld [vmem:[%s11 + $0x18] sm:$0xf]
        %v2629 = vld [vmem:[%s11 + $0x1c] sm:$0xf]
        %v2630 = vld [vmem:[%s11 + $0x20] sm:$0xf]
        %v2631 = vld [vmem:[%s11 + $0x24] sm:$0xf]
        %v2632 = vld [vmem:[%s11 + $0x28] sm:$0xf]
        %v2633 = vld [vmem:[%s11 + $0x2c] sm:$0xf]
        %v2634 = vld [vmem:[%s11 + $0x30] sm:$0xf]
        %v2635 = vld [vmem:[%s11 + $0x34] sm:$0xf]
        %v2636 = vld [vmem:[%s11 + $0x38] sm:$0xf]
        %v2637 = vld [vmem:[%s11 + $0x3c] sm:$0xf]
        %v2654 = vunpack.c.l.b16 %v2622
        %v2655 = vunpack.c.l.b16 %v2623
        %v2656 = vunpack.c.l.b16 %v2624
        %v2657 = vunpack.c.l.b16 %v2625
        %v2658 = vunpack.c.l.b16 %v2626
        %v2659 = vunpack.c.l.b16 %v2627
        %v2660 = vunpack.c.l.b16 %v2628
        %v2661 = vunpack.c.l.b16 %v2629
        %v2662 = vunpack.c.l.b16 %v2630
        %v2663 = vunpack.c.l.b16 %v2631
        %v2664 = vunpack.c.l.b16 %v2632
        %v2665 = vunpack.c.l.b16 %v2633
        %v2666 = vunpack.c.l.b16 %v2634
        %v2667 = vunpack.c.l.b16 %v2635
        %v2668 = vunpack.c.l.b16 %v2636
        %v2669 = vunpack.c.l.b16 %v2637
        %v2670 = vpack.c.b16 %v2655, %v2654
        %v2671 = vpack.c.b16 %v2657, %v2656
        %v2672 = vpack.c.b16 %v2659, %v2658
        %v2673 = vpack.c.b16 %v2661, %v2660
        %v2674 = vpack.c.b16 %v2663, %v2662
        %v2675 = vpack.c.b16 %v2665, %v2664
        %v2676 = vpack.c.b16 %v2667, %v2666
        %v2677 = vpack.c.b16 %v2669, %v2668
        %2686 = vmatprep.subr.bf16.mxu0 0
        %2687 = vmatpush1.bf16.msra.mxu0 %v2670
        %2688 = vmatprep.subr.bf16.mxu0 0
        %2689 = vmatpush1.bf16.msra.mxu0 %v2671
        %2690 = vmatprep.subr.bf16.mxu0 0
        %2691 = vmatpush1.bf16.msra.mxu0 %v2672
        %2692 = vmatprep.subr.bf16.mxu0 0
        %2693 = vmatpush1.bf16.msra.mxu0 %v2673
        %2694 = vmatprep.subr.bf16.mxu0 0
        %2695 = vmatpush1.bf16.msra.mxu0 %v2674
        %2696 = vmatprep.subr.bf16.mxu0 0
        %2697 = vmatpush1.bf16.msra.mxu0 %v2675
        %2698 = vmatprep.subr.bf16.mxu0 0
        %2699 = vmatpush1.bf16.msra.mxu0 %v2676
        %2700 = vmatprep.subr.bf16.mxu0 0
        %2701 = vmatpush1.bf16.msra.mxu0 %v2677
        %2702 = vmatprep.subr.bf16.mxu0 0
        %2703 = vmatpush1.bf16.msra.mxu0 0
        %2704 = vmatprep.subr.bf16.mxu0 0
        %2705 = vmatpush1.bf16.msra.mxu0 0
        %2706 = vmatprep.subr.bf16.mxu0 0
        %2707 = vmatpush1.bf16.msra.mxu0 0
        %2708 = vmatprep.subr.bf16.mxu0 0
        %2709 = vmatpush1.bf16.msra.mxu0 0
        %2710 = vmatprep.subr.bf16.mxu0 0
        %2711 = vmatpush1.bf16.msra.mxu0 0
        %2712 = vmatprep.subr.bf16.mxu0 0
        %2713 = vmatpush1.bf16.msra.mxu0 0
        %2714 = vmatprep.subr.bf16.mxu0 0
        %2715 = vmatpush1.bf16.msra.mxu0 0
        %2716 = vmatprep.subr.bf16.mxu0 0
        %2717 = vmatpush1.bf16.msra.mxu0 0
        %2718 = vmatprep.mubr.bf16.mxu0 0
        %2719 = vmatmul.mubr.bf16.gmra.mrb[0].mxu0 %v2614
        %v2720 = vpop.f32.mrb[0].mxu0
        %v2721 = vadd.f32 0.0, %v2720
        %v2722 = vpop.f32.mrb[0].mxu0
        %v2723 = vpop.f32.mrb[0].mxu0
        %v2724 = vadd.f32 0.0, %v2723
        %v2725 = vpop.f32.mrb[0].mxu0
        %2726 = vmatprep.mubr.bf16.mxu0 0
        %2727 = vmatmul.mubr.bf16.gmra.mrb[0].mxu0 %v2615
        %v2728 = vpop.f32.mrb[0].mxu0
        %v2729 = vadd.f32 0.0, %v2728
        %v2730 = vpop.f32.mrb[0].mxu0
        %v2731 = vpop.f32.mrb[0].mxu0
        %v2732 = vadd.f32 0.0, %v2731
        %v2733 = vpop.f32.mrb[0].mxu0
        %2734 = vmatprep.mubr.bf16.mxu0 0
        %2735 = vmatmul.mubr.bf16.gmra.mrb[0].mxu0 %v2616
        %v2736 = vpop.f32.mrb[0].mxu0
        %v2737 = vadd.f32 0.0, %v2736
        %v2738 = vpop.f32.mrb[0].mxu0
        %v2739 = vpop.f32.mrb[0].mxu0
        %v2740 = vadd.f32 0.0, %v2739
        %v2741 = vpop.f32.mrb[0].mxu0
        %2742 = vmatprep.mubr.bf16.mxu0 0
        %2743 = vmatmul.mubr.bf16.gmra.mrb[0].mxu0 %v2617
        %v2744 = vpop.f32.mrb[0].mxu0
        %v2745 = vadd.f32 0.0, %v2744
        %v2746 = vpop.f32.mrb[0].mxu0
        %v2747 = vpop.f32.mrb[0].mxu0
        %v2748 = vadd.f32 0.0, %v2747
        %v2749 = vpop.f32.mrb[0].mxu0
        %2750 = vmatprep.mubr.bf16.mxu0 0
        %2751 = vmatmul.mubr.bf16.gmra.mrb[0].mxu0 %v2618
        %v2752 = vpop.f32.mrb[0].mxu0
        %v2753 = vadd.f32 0.0, %v2752
        %v2754 = vpop.f32.mrb[0].mxu0
        %v2755 = vpop.f32.mrb[0].mxu0
        %v2756 = vadd.f32 0.0, %v2755
        %v2757 = vpop.f32.mrb[0].mxu0
        %2758 = vmatprep.mubr.bf16.mxu0 0
        %2759 = vmatmul.mubr.bf16.gmra.mrb[0].mxu0 %v2619
        %v2760 = vpop.f32.mrb[0].mxu0
        %v2761 = vadd.f32 0.0, %v2760
        %v2762 = vpop.f32.mrb[0].mxu0
        %v2763 = vpop.f32.mrb[0].mxu0
        %v2764 = vadd.f32 0.0, %v2763
        %v2765 = vpop.f32.mrb[0].mxu0
        %2766 = vmatprep.mubr.bf16.mxu0 0
        %2767 = vmatmul.mubr.bf16.gmra.mrb[0].mxu0 %v2620
        %v2768 = vpop.f32.mrb[0].mxu0
        %v2769 = vadd.f32 0.0, %v2768
        %v2770 = vpop.f32.mrb[0].mxu0
        %v2771 = vpop.f32.mrb[0].mxu0
        %v2772 = vadd.f32 0.0, %v2771
        %v2773 = vpop.f32.mrb[0].mxu0
        %2774 = vmatprep.mubr.bf16.mxu0 0
        %2775 = vmatmul.mubr.bf16.gmra.mrb[0].mxu0 %v2621
        %v2776 = vpop.f32.mrb[0].mxu0
        %v2777 = vadd.f32 0.0, %v2776
        %v2778 = vpop.f32.mrb[0].mxu0
        %v2779 = vpop.f32.mrb[0].mxu0
        %v2780 = vadd.f32 0.0, %v2779
        %v2781 = vpop.f32.mrb[0].mxu0
        %2782 = vdwg.mxu0
        %2783 = vst [vmem:[%s525] sm:$0xff] %v2721
        %2784 = vst [vmem:[%s525 + $0x8] sm:$0xff] %v2724
        %2785 = vst [vmem:[%s525 + $0x10] sm:$0xff] %v2729
        %2786 = vst [vmem:[%s525 + $0x18] sm:$0xff] %v2732
        %2787 = vst [vmem:[%s525 + $0x20] sm:$0xff] %v2737
        %2788 = vst [vmem:[%s525 + $0x28] sm:$0xff] %v2740
        %2789 = vst [vmem:[%s525 + $0x30] sm:$0xff] %v2745
        %2790 = vst [vmem:[%s525 + $0x38] sm:$0xff] %v2748
        %2791 = vst [vmem:[%s525 + $0x40] sm:$0xff] %v2753
        %2792 = vst [vmem:[%s525 + $0x48] sm:$0xff] %v2756
        %2793 = vst [vmem:[%s525 + $0x50] sm:$0xff] %v2761
        %2794 = vst [vmem:[%s525 + $0x58] sm:$0xff] %v2764
        %2795 = vst [vmem:[%s525 + $0x60] sm:$0xff] %v2769
        %2796 = vst [vmem:[%s525 + $0x68] sm:$0xff] %v2772
        %2797 = vst [vmem:[%s525 + $0x70] sm:$0xff] %v2777
        %2798 = vst [vmem:[%s525 + $0x78] sm:$0xff] %v2780
        %s2799 = sand.u32 %s334, 1
        %s2800 = sand.u32 %s334, 1
        %s2801 = smul.addr %s2800, 128
        %s2802 = scalar_lea.vmem [#allocation4], %s2801
        // Predicated region
        $region73: #{tpu_custom_call.1} parent=67 // pred_check
          %p2803 = pneg %p344
        $region74: #{tpu_custom_call.1} parent=67 // pred_check_branch
          %2805 = sbr.rel (%p2803) target = $region76
        $region75: #{tpu_custom_call.1} parent=67 // pred_region
          %s2806 = smul.u32 16, %s28
          %s2807 = ssub.s32 38, %s2806
          %p2808 = scmp.lt.s32.totalorder %s2807, 16
          %s2809 = scalar_select %p2808, %s2807, 16
          %s2810 = smul.u32 128, %s2809
          %p2811 = scmp.ne.s32.totalorder 0, %s2810
          %s2812 = smul.addr %s27, 38
          %s2813 = sadd.s32 %s2806, %s2812
          %s2814 = smul.addr %s2813, 8
          %s2815 = scalar_lea.vmem %s12, %s2814
          // Predicated region
          $region77: #{tpu_custom_call.1} parent=75 // pred_check
            %p2816 = pneg %p2811
          $region78: #{tpu_custom_call.1} parent=75 // pred_check_branch
            %2818 = sbr.rel (%p2816) target = $region80
          $region79: #{tpu_custom_call.1} parent=75 // pred_region
            // Predicated region
            $region81: #{tpu_custom_call.1} parent=79 // pred_check
              _
            $region82: #{tpu_custom_call.1} parent=79 // pred_check_branch
              %2820 = sbr.rel (0) target = $region84
            $region83: #{tpu_custom_call.1} parent=79 // pred_region
              // Predicated region
              $region103: #{tpu_custom_call.1} parent=83 // pred_check
                _
              $region104: #{tpu_custom_call.1} parent=83 // pred_check_branch
                %2899 = sbr.rel (0) target = $region106
              $region105: #{tpu_custom_call.1} parent=83 // pred_region
                %s2900 = sshrl.u32 %s2809, 4
                // While loop
                $region107: #{tpu_custom_call.1} parent=105 // loop_pre_header
                  _
                $region108: #{tpu_custom_call.1} parent=105 // loop_header
                  %s2902 = sphi 0, %s2904
                  %p2903 = scmp.ge.s32.totalorder %s2902, %s2900
                  %s2907 = sphi 0, %s2944
                  %s2908 = sphi %s2802, %s2947
                  %s2909 = sphi %s2815, %s2948
                $region109: #{tpu_custom_call.1} parent=105 // loop_header_branch
                  %2906 = sbr.rel (%p2903) target = $region113
                $region110: #{tpu_custom_call.1} parent=105 // loop_body
                  %v2910 = vld [vmem:[%s2908] sm:$0xff]
                  %2911 = vst [vmem:[%s2909] sm:$0xff] %v2910
                  %v2912 = vld [vmem:[%s2908 + $0x8] sm:$0xff]
                  %2913 = vst [vmem:[%s2909 + $0x8] sm:$0xff] %v2912
                  %v2914 = vld [vmem:[%s2908 + $0x10] sm:$0xff]
                  %2915 = vst [vmem:[%s2909 + $0x10] sm:$0xff] %v2914
                  %v2916 = vld [vmem:[%s2908 + $0x18] sm:$0xff]
                  %2917 = vst [vmem:[%s2909 + $0x18] sm:$0xff] %v2916
                  %v2918 = vld [vmem:[%s2908 + $0x20] sm:$0xff]
                  %2919 = vst [vmem:[%s2909 + $0x20] sm:$0xff] %v2918
                  %v2920 = vld [vmem:[%s2908 + $0x28] sm:$0xff]
                  %2921 = vst [vmem:[%s2909 + $0x28] sm:$0xff] %v2920
                  %v2922 = vld [vmem:[%s2908 + $0x30] sm:$0xff]
                  %2923 = vst [vmem:[%s2909 + $0x30] sm:$0xff] %v2922
                  %v2924 = vld [vmem:[%s2908 + $0x38] sm:$0xff]
                  %2925 = vst [vmem:[%s2909 + $0x38] sm:$0xff] %v2924
                  %v2926 = vld [vmem:[%s2908 + $0x40] sm:$0xff]
                  %2927 = vst [vmem:[%s2909 + $0x40] sm:$0xff] %v2926
                  %v2928 = vld [vmem:[%s2908 + $0x48] sm:$0xff]
                  %2929 = vst [vmem:[%s2909 + $0x48] sm:$0xff] %v2928
                  %v2930 = vld [vmem:[%s2908 + $0x50] sm:$0xff]
                  %2931 = vst [vmem:[%s2909 + $0x50] sm:$0xff] %v2930
                  %v2932 = vld [vmem:[%s2908 + $0x58] sm:$0xff]
                  %2933 = vst [vmem:[%s2909 + $0x58] sm:$0xff] %v2932
                  %v2934 = vld [vmem:[%s2908 + $0x60] sm:$0xff]
                  %2935 = vst [vmem:[%s2909 + $0x60] sm:$0xff] %v2934
                  %v2936 = vld [vmem:[%s2908 + $0x68] sm:$0xff]
                  %2937 = vst [vmem:[%s2909 + $0x68] sm:$0xff] %v2936
                  %v2938 = vld [vmem:[%s2908 + $0x70] sm:$0xff]
                  %2939 = vst [vmem:[%s2909 + $0x70] sm:$0xff] %v2938
                  %v2940 = vld [vmem:[%s2908 + $0x78] sm:$0xff]
                  %2941 = vst [vmem:[%s2909 + $0x78] sm:$0xff] %v2940
                  %s2942 = sadd.s32 1, %s2907
                  %p2943 = scmp.ge.s32.totalorder %s2942, %s2900
                  %s2944 = scalar_select %p2943, 0, %s2942
                  %s2945 = smul.u32 %s2944, 128
                  %s2946 = smul.u32 %s2944, 128
                  %s2947 = scalar_lea.vmem %s2802, %s2945 [#allocation4]
                  %s2948 = scalar_lea.vmem %s2815, %s2946
                $region111: #{tpu_custom_call.1} parent=105 // loop_footer
                  %s2904 = sadd.s32 %s2902, 1
                $region112: #{tpu_custom_call.1} parent=105 // loop_footer_branch
                  %2901 = sbr.rel target = $region108
                $region113: #{tpu_custom_call.1} parent=105 // loop_exit
                  _
                %s2949 = sshrl.u32 %s2809, 4
                %s2950 = sand.u32 %s2809, 15
                %s2951 = smul.u32 %s2949, 16
                %s2952 = smul.u32 8, %s2951
                %s2953 = scalar_lea.vmem %s2802, %s2952 [#allocation4]
                %s2954 = smul.u32 8, %s2951
                %s2955 = scalar_lea.vmem %s2815, %s2954
                // While loop
                $region114: #{tpu_custom_call.1} parent=105 // loop_pre_header
                  _
                $region115: #{tpu_custom_call.1} parent=105 // loop_header
                  %s2957 = sphi 0, %s2959
                  %p2958 = scmp.ge.s32.totalorder %s2957, %s2950
                  %s2962 = sphi 0, %s2969
                  %s2963 = sphi %s2953, %s2972
                  %s2964 = sphi %s2955, %s2973
                $region116: #{tpu_custom_call.1} parent=105 // loop_header_branch
                  %2961 = sbr.rel (%p2958) target = $region120
                $region117: #{tpu_custom_call.1} parent=105 // loop_body
                  %v2965 = vld [vmem:[%s2963] sm:$0xff]
                  %2966 = vst [vmem:[%s2964] sm:$0xff] %v2965
                  %s2967 = sadd.s32 1, %s2962
                  %p2968 = scmp.ge.s32.totalorder %s2967, %s2950
                  %s2969 = scalar_select %p2968, 0, %s2967
                  %s2970 = smul.u32 %s2969, 8
                  %s2971 = smul.u32 %s2969, 8
                  %s2972 = scalar_lea.vmem %s2953, %s2970 [#allocation4]
                  %s2973 = scalar_lea.vmem %s2955, %s2971
                $region118: #{tpu_custom_call.1} parent=105 // loop_footer
                  %s2959 = sadd.s32 %s2957, 1
                $region119: #{tpu_custom_call.1} parent=105 // loop_footer_branch
                  %2956 = sbr.rel target = $region115
                $region120: #{tpu_custom_call.1} parent=105 // loop_exit
                  _
              $region106: #{tpu_custom_call.1} parent=83 // pred_fallthru
                _
              // Predicated region
              $region121: #{tpu_custom_call.1} parent=83 // pred_check
                _
              $region122: #{tpu_custom_call.1} parent=83 // pred_check_branch
                %2975 = sbr.rel target = $region124
              $region123: #{tpu_custom_call.1} parent=83 // pred_region
                _
              $region124: #{tpu_custom_call.1} parent=83 // pred_fallthru
                _
            $region84: #{tpu_custom_call.1} parent=79 // pred_fallthru
              _
            // Predicated region
            $region85: #{tpu_custom_call.1} parent=79 // pred_check
              _
            $region86: #{tpu_custom_call.1} parent=79 // pred_check_branch
              %2822 = sbr.rel target = $region88
            $region87: #{tpu_custom_call.1} parent=79 // pred_region
              %s2824 = sshrl.u32 %s2809, 4
              // While loop
              $region89: #{tpu_custom_call.1} parent=87 // loop_pre_header
                _
              $region90: #{tpu_custom_call.1} parent=87 // loop_header
                %s2826 = sphi 0, %s2828
                %p2827 = scmp.ge.s32.totalorder %s2826, %s2824
                %s2831 = sphi 0, %s2868
                %s2832 = sphi %s2802, %s2871
                %s2833 = sphi %s2815, %s2872
              $region91: #{tpu_custom_call.1} parent=87 // loop_header_branch
                %2830 = sbr.rel (%p2827) target = $region95
              $region92: #{tpu_custom_call.1} parent=87 // loop_body
                %v2834 = vld [vmem:[%s2832] sm:$0xff]
                %2835 = vst [vmem:[%s2833] sm:$0xff] %v2834
                %v2836 = vld [vmem:[%s2832 + $0x8] sm:$0xff]
                %2837 = vst [vmem:[%s2833 + $0x8] sm:$0xff] %v2836
                %v2838 = vld [vmem:[%s2832 + $0x10] sm:$0xff]
                %2839 = vst [vmem:[%s2833 + $0x10] sm:$0xff] %v2838
                %v2840 = vld [vmem:[%s2832 + $0x18] sm:$0xff]
                %2841 = vst [vmem:[%s2833 + $0x18] sm:$0xff] %v2840
                %v2842 = vld [vmem:[%s2832 + $0x20] sm:$0xff]
                %2843 = vst [vmem:[%s2833 + $0x20] sm:$0xff] %v2842
                %v2844 = vld [vmem:[%s2832 + $0x28] sm:$0xff]
                %2845 = vst [vmem:[%s2833 + $0x28] sm:$0xff] %v2844
                %v2846 = vld [vmem:[%s2832 + $0x30] sm:$0xff]
                %2847 = vst [vmem:[%s2833 + $0x30] sm:$0xff] %v2846
                %v2848 = vld [vmem:[%s2832 + $0x38] sm:$0xff]
                %2849 = vst [vmem:[%s2833 + $0x38] sm:$0xff] %v2848
                %v2850 = vld [vmem:[%s2832 + $0x40] sm:$0xff]
                %2851 = vst [vmem:[%s2833 + $0x40] sm:$0xff] %v2850
                %v2852 = vld [vmem:[%s2832 + $0x48] sm:$0xff]
                %2853 = vst [vmem:[%s2833 + $0x48] sm:$0xff] %v2852
                %v2854 = vld [vmem:[%s2832 + $0x50] sm:$0xff]
                %2855 = vst [vmem:[%s2833 + $0x50] sm:$0xff] %v2854
                %v2856 = vld [vmem:[%s2832 + $0x58] sm:$0xff]
                %2857 = vst [vmem:[%s2833 + $0x58] sm:$0xff] %v2856
                %v2858 = vld [vmem:[%s2832 + $0x60] sm:$0xff]
                %2859 = vst [vmem:[%s2833 + $0x60] sm:$0xff] %v2858
                %v2860 = vld [vmem:[%s2832 + $0x68] sm:$0xff]
                %2861 = vst [vmem:[%s2833 + $0x68] sm:$0xff] %v2860
                %v2862 = vld [vmem:[%s2832 + $0x70] sm:$0xff]
                %2863 = vst [vmem:[%s2833 + $0x70] sm:$0xff] %v2862
                %v2864 = vld [vmem:[%s2832 + $0x78] sm:$0xff]
                %2865 = vst [vmem:[%s2833 + $0x78] sm:$0xff] %v2864
                %s2866 = sadd.s32 1, %s2831
                %p2867 = scmp.ge.s32.totalorder %s2866, %s2824
                %s2868 = scalar_select %p2867, 0, %s2866
                %s2869 = smul.u32 %s2868, 128
                %s2870 = smul.u32 %s2868, 128
                %s2871 = scalar_lea.vmem %s2802, %s2869 [#allocation4]
                %s2872 = scalar_lea.vmem %s2815, %s2870
              $region93: #{tpu_custom_call.1} parent=87 // loop_footer
                %s2828 = sadd.s32 %s2826, 1
              $region94: #{tpu_custom_call.1} parent=87 // loop_footer_branch
                %2825 = sbr.rel target = $region90
              $region95: #{tpu_custom_call.1} parent=87 // loop_exit
                _
              %s2873 = sshrl.u32 %s2809, 4
              %s2874 = sand.u32 %s2809, 15
              %s2875 = smul.u32 %s2873, 16
              %s2876 = smul.u32 8, %s2875
              %s2877 = scalar_lea.vmem %s2802, %s2876 [#allocation4]
              %s2878 = smul.u32 8, %s2875
              %s2879 = scalar_lea.vmem %s2815, %s2878
              // While loop
              $region96: #{tpu_custom_call.1} parent=87 // loop_pre_header
                _
              $region97: #{tpu_custom_call.1} parent=87 // loop_header
                %s2881 = sphi 0, %s2883
                %p2882 = scmp.ge.s32.totalorder %s2881, %s2874
                %s2886 = sphi 0, %s2893
                %s2887 = sphi %s2877, %s2896
                %s2888 = sphi %s2879, %s2897
              $region98: #{tpu_custom_call.1} parent=87 // loop_header_branch
                %2885 = sbr.rel (%p2882) target = $region102
              $region99: #{tpu_custom_call.1} parent=87 // loop_body
                %v2889 = vld [vmem:[%s2887] sm:$0xff]
                %2890 = vst [vmem:[%s2888] sm:$0xff] %v2889
                %s2891 = sadd.s32 1, %s2886
                %p2892 = scmp.ge.s32.totalorder %s2891, %s2874
                %s2893 = scalar_select %p2892, 0, %s2891
                %s2894 = smul.u32 %s2893, 8
                %s2895 = smul.u32 %s2893, 8
                %s2896 = scalar_lea.vmem %s2877, %s2894 [#allocation4]
                %s2897 = scalar_lea.vmem %s2879, %s2895
              $region100: #{tpu_custom_call.1} parent=87 // loop_footer
                %s2883 = sadd.s32 %s2881, 1
              $region101: #{tpu_custom_call.1} parent=87 // loop_footer_branch
                %2880 = sbr.rel target = $region97
              $region102: #{tpu_custom_call.1} parent=87 // loop_exit
                _
            $region88: #{tpu_custom_call.1} parent=79 // pred_fallthru
              _
          $region80: #{tpu_custom_call.1} parent=75 // pred_fallthru
            _
          %2976 = vnop
        $region76: #{tpu_custom_call.1} parent=67 // pred_fallthru
          _
      $region68: #{tpu_custom_call.1} parent=5 // pred_fallthru
        _
      %p2977 = scmp.le.s32.totalorder 2, %s18
      // Predicated region
      $region125: #{tpu_custom_call.1} parent=5 // pred_check
        %p2978 = pneg %p2977
      $region126: #{tpu_custom_call.1} parent=5 // pred_check_branch
        %2980 = sbr.rel (%p2978) target = $region128
      $region127: #{tpu_custom_call.1} parent=5 // pred_region
        %s2981 = ssub.s32 %s18, 2
        // Predicated region
        $region129: #{tpu_custom_call.1} parent=127 // pred_check
          %p2982 = pneg %p350
        $region130: #{tpu_custom_call.1} parent=127 // pred_check_branch
          %2984 = sbr.rel (%p2982) target = $region132
        $region131: #{tpu_custom_call.1} parent=127 // pred_region
          %s2985 = sand.u32 %s335, 1
          %s2986 = sand.u32 %s335, 1
          %s2987 = smul.addr %s2986, 128
          %s2988 = scalar_lea.vmem [#allocation4], %s2987
        $region132: #{tpu_custom_call.1} parent=127 // pred_fallthru
          _
      $region128: #{tpu_custom_call.1} parent=5 // pred_fallthru
        _
    $region6: #{tpu_custom_call.1} parent=1 // loop_footer
      %s22 = sadd.s32 1, %s18
    $region7: #{tpu_custom_call.1} parent=1 // loop_footer_branch
      %17 = sbr.rel target = $region3
    $region8: #{tpu_custom_call.1} parent=1 // loop_exit
      _

</llo_original>
